<compile_context>
chip_gen: v6e
topology: v6e:2x2x1
jax: 0.10.0
libtpu: 0.0.40
codegen_flags: <defaults>
</compile_context>

<pallas_src>
import jax
import jax.numpy as jnp
from jax import lax
from jax.experimental import pallas as pl
from jax.experimental.pallas import tpu as pltpu

EPS = 1e-5


# ---------------------------------------------------------------------------
# Kernel 1: the eight branch convolutions (both sets), BN folded.
#   x_ref  : (1, H+2, W+2, C_in)   zero-padded input (whole image, read once)
#   w1_ref : (9, C_in, 4*C_out)    set-1 weights, tap-major, bn1_1 folded
#   b1_ref : (1, 4*C_out)
#   w2_ref : (9, C_in, 4*C_out)    set-2 weights, bn1_2 folded
#   b2_ref : (1, 4*C_out)
#   o1_ref : (1, TH, W, 4*C_out)   relu(bn1_1(conv1_*)), branch-major channels
#   o2_ref : (1, TH, W, 4*C_out)   bn1_2(conv2_*),       branch-major channels
# ---------------------------------------------------------------------------
def _branch_conv_kernel(x_ref, w1_ref, b1_ref, w2_ref, b2_ref, o1_ref, o2_ref):
    th = o1_ref.shape[1]
    w_out = o1_ref.shape[2]
    k = o1_ref.shape[3]
    r0 = pl.program_id(1) * th

    @pl.loop(0, th)
    def _(h):
        acc1 = jnp.zeros((w_out, k), jnp.float32) + b1_ref[...]
        acc2 = jnp.zeros((w_out, k), jnp.float32) + b2_ref[...]
        for kh in range(3):
            row = x_ref[0, r0 + h + kh]            # (W+2, C_in)
            for kw in range(3):
                xwin = row[kw:kw + w_out, :]       # (W, C_in)
                t = 3 * kh + kw
                acc1 += jnp.dot(xwin, w1_ref[t],
                                preferred_element_type=jnp.float32)
                acc2 += jnp.dot(xwin, w2_ref[t],
                                preferred_element_type=jnp.float32)
        o1_ref[0, h] = jnp.maximum(acc1, 0.0).astype(o1_ref.dtype)
        o2_ref[0, h] = acc2.astype(o2_ref.dtype)


# ---------------------------------------------------------------------------
# Kernel 2: conv3 (3x3, pad 1, bn2 folded) + residual add + ReLU.
#   y1p_ref : (1, 2H+2, 2W+2, C)   padded relu'd branch-1 tensor (whole image)
#   y2_ref  : (1, TH, 2W, C)       branch-2 tensor (row tile)
#   w3_ref  : (9, C, C)            conv3 weights, tap-major, bn2 folded
#   b3_ref  : (1, C)
#   o_ref   : (1, TH, 2W, C)
# ---------------------------------------------------------------------------
def _conv3_add_relu_kernel(y1p_ref, y2_ref, w3_ref, b3_ref, o_ref):
    th = o_ref.shape[1]
    w_out = o_ref.shape[2]
    c = o_ref.shape[3]
    r0 = pl.program_id(1) * th

    @pl.loop(0, th)
    def _(h):
        acc = jnp.zeros((w_out, c), jnp.float32) + b3_ref[...]
        for kh in range(3):
            row = y1p_ref[0, r0 + h + kh]          # (2W+2, C)
            for kw in range(3):
                acc += jnp.dot(row[kw:kw + w_out, :], w3_ref[3 * kh + kw],
                               preferred_element_type=jnp.float32)
        acc = acc + y2_ref[0, h].astype(jnp.float32)
        o_ref[0, h] = jnp.maximum(acc, 0.0).astype(o_ref.dtype)


# ---------------------------------------------------------------------------
# Wrapper helpers
# ---------------------------------------------------------------------------
def _row_tile(n_rows):
    for t in (8, 4, 2):
        if n_rows % t == 0:
            return t
    return 1


def _bn_scale_shift(gamma, beta, mean, var):
    s = gamma / jnp.sqrt(var + EPS)
    return s, beta - mean * s


def _extend_to_3x3(w):
    kh, kw = w.shape[2], w.shape[3]
    return jnp.pad(w, ((0, 0), (0, 0), (0, 3 - kh), (0, 3 - kw)))


def _pack_branch_weights(ws, bs, scale, shift):
    """ws: 4 conv weights (C_out, C_in, kh, kw) -> (9, C_in, 4*C_out), (1, 4*C_out)."""
    taps = []
    for w in ws:
        w = _extend_to_3x3(w) * scale[:, None, None, None]
        c_out, c_in = w.shape[0], w.shape[1]
        taps.append(jnp.transpose(w, (2, 3, 1, 0)).reshape(9, c_in, c_out))
    w_taps = jnp.concatenate(taps, axis=-1)
    bias = jnp.concatenate([b * scale + shift for b in bs])[None, :]
    return w_taps, bias


def _interleave_nhwc(z, c_out):
    """(N, H, W, 4*C) branch-major -> (N, 2H, 2W, C) 2x2 pixel shuffle."""
    n, h, w, _ = z.shape
    z = z.reshape(n, h, w, 2, 2, c_out)
    z = jnp.transpose(z, (0, 1, 3, 2, 4, 5))
    return z.reshape(n, 2 * h, 2 * w, c_out)


def up_project_forward(x, p):
    """x: (N, C_in, H, W) float32 NCHW. Returns (N, C_out, 2H, 2W) float32."""
    n, c_in, h, w = x.shape
    c_out = p["w1_1"].shape[0]
    k = 4 * c_out

    # --- fold BatchNorm (inference mode) into the convolutions -------------
    s11, t11 = _bn_scale_shift(p["g1_1"], p["be1_1"], p["m1_1"], p["v1_1"])
    s12, t12 = _bn_scale_shift(p["g1_2"], p["be1_2"], p["m1_2"], p["v1_2"])
    s2, t2 = _bn_scale_shift(p["g2"], p["be2"], p["m2"], p["v2"])

    w1_taps, b1f = _pack_branch_weights(
        [p["w1_1"], p["w1_2"], p["w1_3"], p["w1_4"]],
        [p["b1_1"], p["b1_2"], p["b1_3"], p["b1_4"]], s11, t11)
    w2_taps, b2f = _pack_branch_weights(
        [p["w2_1"], p["w2_2"], p["w2_3"], p["w2_4"]],
        [p["b2_1"], p["b2_2"], p["b2_3"], p["b2_4"]], s12, t12)

    w3f = p["w3"] * s2[:, None, None, None]
    w3_taps = jnp.transpose(w3f, (2, 3, 1, 0)).reshape(9, c_out, c_out)
    b3f = (p["b3"] * s2 + t2)[None, :]

    # --- stage 1: eight branch convs (+ ReLU on set 1) ----------------------
    x_nhwc = jnp.transpose(x, (0, 2, 3, 1))
    x_pad = jnp.pad(x_nhwc, ((0, 0), (1, 1), (1, 1), (0, 0)))

    th1 = _row_tile(h)
    o1, o2 = pl.pallas_call(
        _branch_conv_kernel,
        out_shape=(jax.ShapeDtypeStruct((n, h, w, k), jnp.float32),
                   jax.ShapeDtypeStruct((n, h, w, k), jnp.float32)),
        grid_spec=pltpu.PrefetchScalarGridSpec(
            num_scalar_prefetch=0,
            grid=(n, h // th1),
            in_specs=[
                pl.BlockSpec((1, h + 2, w + 2, c_in), lambda b, r: (b, 0, 0, 0)),
                pl.BlockSpec((9, c_in, k), lambda b, r: (0, 0, 0)),
                pl.BlockSpec((1, k), lambda b, r: (0, 0)),
                pl.BlockSpec((9, c_in, k), lambda b, r: (0, 0, 0)),
                pl.BlockSpec((1, k), lambda b, r: (0, 0)),
            ],
            out_specs=[
                pl.BlockSpec((1, th1, w, k), lambda b, r: (b, r, 0, 0)),
                pl.BlockSpec((1, th1, w, k), lambda b, r: (b, r, 0, 0)),
            ],
        ),
        compiler_params=pltpu.CompilerParams(
            dimension_semantics=("parallel", "parallel")),
    )(x_pad, w1_taps, b1f, w2_taps, b2f)

    # --- 2x2 interleave (pure data movement, left to XLA) -------------------
    y1 = _interleave_nhwc(o1, c_out)   # ReLU already applied in kernel 1
    y2 = _interleave_nhwc(o2, c_out)

    # --- stage 2: 3x3 conv (bn2 folded) + add + ReLU -------------------------
    ho, wo = 2 * h, 2 * w
    y1p = jnp.pad(y1, ((0, 0), (1, 1), (1, 1), (0, 0)))
    th2 = _row_tile(ho)
    out_nhwc = pl.pallas_call(
        _conv3_add_relu_kernel,
        out_shape=jax.ShapeDtypeStruct((n, ho, wo, c_out), jnp.float32),
        grid_spec=pltpu.PrefetchScalarGridSpec(
            num_scalar_prefetch=0,
            grid=(n, ho // th2),
            in_specs=[
                pl.BlockSpec((1, ho + 2, wo + 2, c_out), lambda b, r: (b, 0, 0, 0)),
                pl.BlockSpec((1, th2, wo, c_out), lambda b, r: (b, r, 0, 0)),
                pl.BlockSpec((9, c_out, c_out), lambda b, r: (0, 0, 0)),
                pl.BlockSpec((1, c_out), lambda b, r: (0, 0)),
            ],
            out_specs=pl.BlockSpec((1, th2, wo, c_out), lambda b, r: (b, r, 0, 0)),
        ),
        compiler_params=pltpu.CompilerParams(
            dimension_semantics=("parallel", "parallel")),
    )(y1p, y2, w3_taps, b3f)

    return jnp.transpose(out_nhwc, (0, 3, 1, 2))


# ---------------------------------------------------------------------------
# Pure-JAX reference (mirrors the PyTorch module, inference-mode BN)
# ---------------------------------------------------------------------------
def up_project_ref(x, p):
    def conv(z, w, b, ph, pw):
        out = lax.conv_general_dilated(
            z, w, window_strides=(1, 1), padding=(ph, pw),
            dimension_numbers=("NCHW", "OIHW", "NCHW"),
            precision=lax.Precision.HIGHEST)
        return out + b[None, :, None, None]

    def bn(z, g, be, m, v):
        s = g / jnp.sqrt(v + EPS)
        return z * s[None, :, None, None] + (be - m * s)[None, :, None, None]

    def interleave(a, b_, c, d):
        nn_, ch, hh, ww = a.shape
        top = jnp.stack([a, b_], axis=-1).reshape(nn_, ch, hh, 2 * ww)
        bot = jnp.stack([c, d], axis=-1).reshape(nn_, ch, hh, 2 * ww)
        return jnp.stack([top, bot], axis=-2).reshape(nn_, ch, 2 * hh, 2 * ww)

    o11 = conv(x, p["w1_1"], p["b1_1"], (1, 1), (1, 1))
    o12 = conv(x, p["w1_2"], p["b1_2"], (1, 0), (1, 1))
    o13 = conv(x, p["w1_3"], p["b1_3"], (1, 1), (1, 0))
    o14 = conv(x, p["w1_4"], p["b1_4"], (1, 0), (1, 0))
    o21 = conv(x, p["w2_1"], p["b2_1"], (1, 1), (1, 1))
    o22 = conv(x, p["w2_2"], p["b2_2"], (1, 0), (1, 1))
    o23 = conv(x, p["w2_3"], p["b2_3"], (1, 1), (1, 0))
    o24 = conv(x, p["w2_4"], p["b2_4"], (1, 0), (1, 0))

    out1 = interleave(o11, o12, o13, o14)
    out2 = interleave(o21, o22, o23, o24)

    out1 = jax.nn.relu(bn(out1, p["g1_1"], p["be1_1"], p["m1_1"], p["v1_1"]))
    out1 = conv(out1, p["w3"], p["b3"], (1, 1), (1, 1))
    out1 = bn(out1, p["g2"], p["be2"], p["m2"], p["v2"])
    out2 = bn(out2, p["g1_2"], p["be1_2"], p["m1_2"], p["v1_2"])
    return jax.nn.relu(out1 + out2)


def _make_params(key, c_in, c_out):
    keys = iter(jax.random.split(key, 64))

    def nrm(shape, scale=0.1):
        return scale * jax.random.normal(next(keys), shape, dtype=jnp.float32)

    def bn_params():
        return (1.0 + nrm((c_out,)),                                   # gamma
                nrm((c_out,)),                                         # beta
                nrm((c_out,)),                                         # running mean
                0.5 + jax.random.uniform(next(keys), (c_out,),         # running var
                                         dtype=jnp.float32))

    p = {}
    kshapes = {"1": (3, 3), "2": (2, 3), "3": (3, 2), "4": (2, 2)}
    for s in ("1", "2"):
        for br, (kh, kw) in kshapes.items():
            p[f"w{s}_{br}"] = nrm((c_out, c_in, kh, kw))
            p[f"b{s}_{br}"] = nrm((c_out,))
    p["w3"] = nrm((c_out, c_out, 3, 3))
    p["b3"] = nrm((c_out,))
    p["g1_1"], p["be1_1"], p["m1_1"], p["v1_1"] = bn_params()
    p["g1_2"], p["be1_2"], p["m1_2"], p["v1_2"] = bn_params()
    p["g2"], p["be2"], p["m2"], p["v2"] = bn_params()
    return p


if __name__ == "__main__":
    key = jax.random.PRNGKey(0)
    k_x, k_p = jax.random.split(key)

    N, C_IN, C_OUT, H, W = 2, 4, 4, 16, 16
    x = jax.random.normal(k_x, (N, C_IN, H, W), dtype=jnp.float32)
    params = _make_params(k_p, C_IN, C_OUT)

    out = jax.jit(up_project_forward)(x, params)
    out = jax.block_until_ready(out)

    ref = up_project_ref(x, params)
    assert out.shape == (N, C_OUT, 2 * H, 2 * W), out.shape
    assert jnp.allclose(out, ref, atol=5e-3, rtol=5e-3), (
        float(jnp.max(jnp.abs(out - ref))))
    print("KERNEL_OK")
</pallas_src>

<mosaic_0001>
module attributes {stable_mosaic.version = 11 : i64} {
  func.func @_branch_conv_kernel(%arg0: i32, %arg1: i32, %arg2: memref<1x18x18x4xf32, #tpu.memory_space<vmem>>, %arg3: memref<9x4x16xf32, #tpu.memory_space<vmem>>, %arg4: memref<1x16xf32, #tpu.memory_space<vmem>>, %arg5: memref<9x4x16xf32, #tpu.memory_space<vmem>>, %arg6: memref<1x16xf32, #tpu.memory_space<vmem>>, %arg7: memref<1x8x16x16xf32, #tpu.memory_space<vmem>>, %arg8: memref<1x8x16x16xf32, #tpu.memory_space<vmem>>) attributes {dimension_semantics = [#tpu.dimension_semantics<parallel>, #tpu.dimension_semantics<parallel>], iteration_bounds = array<i64: 2, 2>, scalar_prefetch = 0 : i64, scratch_operands = 0 : i64, tpu.core_type = #tpu.core_type<tc>, window_params = [{transform_indices = @transform_0, window_bounds = array<i64: 1, 18, 18, 4>}, {pipeline_mode = #tpu.pipeline_mode<synchronous>, transform_indices = @transform_1, window_bounds = array<i64: 9, 4, 16>}, {pipeline_mode = #tpu.pipeline_mode<synchronous>, transform_indices = @transform_2, window_bounds = array<i64: 1, 16>}, {pipeline_mode = #tpu.pipeline_mode<synchronous>, transform_indices = @transform_3, window_bounds = array<i64: 9, 4, 16>}, {pipeline_mode = #tpu.pipeline_mode<synchronous>, transform_indices = @transform_4, window_bounds = array<i64: 1, 16>}, {transform_indices = @transform_5, window_bounds = array<i64: 1, 8, 16, 16>}, {transform_indices = @transform_6, window_bounds = array<i64: 1, 8, 16, 16>}]} {
    %c8_i32 = arith.constant 8 : i32
    %0 = arith.muli %arg1, %c8_i32 : i32
    %c0_i32 = arith.constant 0 : i32
    %c8_i32_0 = arith.constant 8 : i32
    %1 = arith.addi %c0_i32, %c8_i32_0 : i32
    %c1_i32 = arith.constant 1 : i32
    scf.for %arg9 = %c0_i32 to %1 step %c1_i32  : i32 {
      %c1_i32_2 = arith.constant 1 : i32
      %2 = arith.muli %arg9, %c1_i32_2 : i32
      %c0_i32_3 = arith.constant 0 : i32
      %3 = arith.addi %c0_i32_3, %2 : i32
      %cst = arith.constant 0.000000e+00 : f32
      %4 = vector.broadcast %cst : f32 to vector<16x16xf32>
      %c0 = arith.constant 0 : index
      %c0_4 = arith.constant 0 : index
      %5 = vector.load %arg4[%c0, %c0_4] : memref<1x16xf32, #tpu.memory_space<vmem>>, vector<1x16xf32>
      %6 = vector.broadcast %5 : vector<1x16xf32> to vector<16x16xf32>
      %7 = arith.addf %4, %6 : vector<16x16xf32>
      %cst_5 = arith.constant 0.000000e+00 : f32
      %8 = vector.broadcast %cst_5 : f32 to vector<16x16xf32>
      %c0_6 = arith.constant 0 : index
      %c0_7 = arith.constant 0 : index
      %9 = vector.load %arg6[%c0_6, %c0_7] : memref<1x16xf32, #tpu.memory_space<vmem>>, vector<1x16xf32>
      %10 = vector.broadcast %9 : vector<1x16xf32> to vector<16x16xf32>
      %11 = arith.addf %8, %10 : vector<16x16xf32>
      %12 = arith.addi %0, %3 : i32
      %c0_i32_8 = arith.constant 0 : i32
      %13 = arith.addi %12, %c0_i32_8 : i32
      %c0_9 = arith.constant 0 : index
      %14 = arith.index_cast %13 : i32 to index
      %c0_10 = arith.constant 0 : index
      %c0_11 = arith.constant 0 : index
      %15 = vector.load %arg2[%c0_9, %14, %c0_10, %c0_11] : memref<1x18x18x4xf32, #tpu.memory_space<vmem>>, vector<1x1x18x4xf32>
      %16 = vector.shape_cast %15 : vector<1x1x18x4xf32> to vector<18x4xf32>
      %17 = vector.extract_strided_slice %16 {offsets = [0, 0], sizes = [16, 4], strides = [1, 1]} : vector<18x4xf32> to vector<16x4xf32>
      %c0_12 = arith.constant 0 : index
      %c0_13 = arith.constant 0 : index
      %c0_14 = arith.constant 0 : index
      %18 = vector.load %arg3[%c0_12, %c0_13, %c0_14] : memref<9x4x16xf32, #tpu.memory_space<vmem>>, vector<1x4x16xf32>
      %19 = vector.shape_cast %18 : vector<1x4x16xf32> to vector<4x16xf32>
      %cst_15 = arith.constant dense<0.000000e+00> : vector<16x16xf32>
      %20 = tpu.matmul %17, %19, %cst_15 {dimension_numbers = #tpu.dot_dimension_numbers<[1], [0], [0], [1], [0, 0, 1, 1], [], []>} : vector<16x4xf32>, vector<4x16xf32>, vector<16x16xf32> -> vector<16x16xf32>
      %21 = arith.addf %7, %20 : vector<16x16xf32>
      %c0_16 = arith.constant 0 : index
      %c0_17 = arith.constant 0 : index
      %c0_18 = arith.constant 0 : index
      %22 = vector.load %arg5[%c0_16, %c0_17, %c0_18] : memref<9x4x16xf32, #tpu.memory_space<vmem>>, vector<1x4x16xf32>
      %23 = vector.shape_cast %22 : vector<1x4x16xf32> to vector<4x16xf32>
      %cst_19 = arith.constant dense<0.000000e+00> : vector<16x16xf32>
      %24 = tpu.matmul %17, %23, %cst_19 {dimension_numbers = #tpu.dot_dimension_numbers<[1], [0], [0], [1], [0, 0, 1, 1], [], []>} : vector<16x4xf32>, vector<4x16xf32>, vector<16x16xf32> -> vector<16x16xf32>
      %25 = arith.addf %11, %24 : vector<16x16xf32>
      %26 = vector.extract_strided_slice %16 {offsets = [1, 0], sizes = [16, 4], strides = [1, 1]} : vector<18x4xf32> to vector<16x4xf32>
      %c1 = arith.constant 1 : index
      %c0_20 = arith.constant 0 : index
      %c0_21 = arith.constant 0 : index
      %27 = vector.load %arg3[%c1, %c0_20, %c0_21] : memref<9x4x16xf32, #tpu.memory_space<vmem>>, vector<1x4x16xf32>
      %28 = vector.shape_cast %27 : vector<1x4x16xf32> to vector<4x16xf32>
      %cst_22 = arith.constant dense<0.000000e+00> : vector<16x16xf32>
      %29 = tpu.matmul %26, %28, %cst_22 {dimension_numbers = #tpu.dot_dimension_numbers<[1], [0], [0], [1], [0, 0, 1, 1], [], []>} : vector<16x4xf32>, vector<4x16xf32>, vector<16x16xf32> -> vector<16x16xf32>
      %30 = arith.addf %21, %29 : vector<16x16xf32>
      %c1_23 = arith.constant 1 : index
      %c0_24 = arith.constant 0 : index
      %c0_25 = arith.constant 0 : index
      %31 = vector.load %arg5[%c1_23, %c0_24, %c0_25] : memref<9x4x16xf32, #tpu.memory_space<vmem>>, vector<1x4x16xf32>
      %32 = vector.shape_cast %31 : vector<1x4x16xf32> to vector<4x16xf32>
      %cst_26 = arith.constant dense<0.000000e+00> : vector<16x16xf32>
      %33 = tpu.matmul %26, %32, %cst_26 {dimension_numbers = #tpu.dot_dimension_numbers<[1], [0], [0], [1], [0, 0, 1, 1], [], []>} : vector<16x4xf32>, vector<4x16xf32>, vector<16x16xf32> -> vector<16x16xf32>
      %34 = arith.addf %25, %33 : vector<16x16xf32>
      %35 = vector.extract_strided_slice %16 {offsets = [2, 0], sizes = [16, 4], strides = [1, 1]} : vector<18x4xf32> to vector<16x4xf32>
      %c2 = arith.constant 2 : index
      %c0_27 = arith.constant 0 : index
      %c0_28 = arith.constant 0 : index
      %36 = vector.load %arg3[%c2, %c0_27, %c0_28] : memref<9x4x16xf32, #tpu.memory_space<vmem>>, vector<1x4x16xf32>
      %37 = vector.shape_cast %36 : vector<1x4x16xf32> to vector<4x16xf32>
      %cst_29 = arith.constant dense<0.000000e+00> : vector<16x16xf32>
      %38 = tpu.matmul %35, %37, %cst_29 {dimension_numbers = #tpu.dot_dimension_numbers<[1], [0], [0], [1], [0, 0, 1, 1], [], []>} : vector<16x4xf32>, vector<4x16xf32>, vector<16x16xf32> -> vector<16x16xf32>
      %39 = arith.addf %30, %38 : vector<16x16xf32>
      %c2_30 = arith.constant 2 : index
      %c0_31 = arith.constant 0 : index
      %c0_32 = arith.constant 0 : index
      %40 = vector.load %arg5[%c2_30, %c0_31, %c0_32] : memref<9x4x16xf32, #tpu.memory_space<vmem>>, vector<1x4x16xf32>
      %41 = vector.shape_cast %40 : vector<1x4x16xf32> to vector<4x16xf32>
      %cst_33 = arith.constant dense<0.000000e+00> : vector<16x16xf32>
      %42 = tpu.matmul %35, %41, %cst_33 {dimension_numbers = #tpu.dot_dimension_numbers<[1], [0], [0], [1], [0, 0, 1, 1], [], []>} : vector<16x4xf32>, vector<4x16xf32>, vector<16x16xf32> -> vector<16x16xf32>
      %43 = arith.addf %34, %42 : vector<16x16xf32>
      %44 = arith.addi %0, %3 : i32
      %c1_i32_34 = arith.constant 1 : i32
      %45 = arith.addi %44, %c1_i32_34 : i32
      %c0_35 = arith.constant 0 : index
      %46 = arith.index_cast %45 : i32 to index
      %c0_36 = arith.constant 0 : index
      %c0_37 = arith.constant 0 : index
      %47 = vector.load %arg2[%c0_35, %46, %c0_36, %c0_37] : memref<1x18x18x4xf32, #tpu.memory_space<vmem>>, vector<1x1x18x4xf32>
      %48 = vector.shape_cast %47 : vector<1x1x18x4xf32> to vector<18x4xf32>
      %49 = vector.extract_strided_slice %48 {offsets = [0, 0], sizes = [16, 4], strides = [1, 1]} : vector<18x4xf32> to vector<16x4xf32>
      %c3 = arith.constant 3 : index
      %c0_38 = arith.constant 0 : index
      %c0_39 = arith.constant 0 : index
      %50 = vector.load %arg3[%c3, %c0_38, %c0_39] : memref<9x4x16xf32, #tpu.memory_space<vmem>>, vector<1x4x16xf32>
      %51 = vector.shape_cast %50 : vector<1x4x16xf32> to vector<4x16xf32>
      %cst_40 = arith.constant dense<0.000000e+00> : vector<16x16xf32>
      %52 = tpu.matmul %49, %51, %cst_40 {dimension_numbers = #tpu.dot_dimension_numbers<[1], [0], [0], [1], [0, 0, 1, 1], [], []>} : vector<16x4xf32>, vector<4x16xf32>, vector<16x16xf32> -> vector<16x16xf32>
      %53 = arith.addf %39, %52 : vector<16x16xf32>
      %c3_41 = arith.constant 3 : index
      %c0_42 = arith.constant 0 : index
      %c0_43 = arith.constant 0 : index
      %54 = vector.load %arg5[%c3_41, %c0_42, %c0_43] : memref<9x4x16xf32, #tpu.memory_space<vmem>>, vector<1x4x16xf32>
      %55 = vector.shape_cast %54 : vector<1x4x16xf32> to vector<4x16xf32>
      %cst_44 = arith.constant dense<0.000000e+00> : vector<16x16xf32>
      %56 = tpu.matmul %49, %55, %cst_44 {dimension_numbers = #tpu.dot_dimension_numbers<[1], [0], [0], [1], [0, 0, 1, 1], [], []>} : vector<16x4xf32>, vector<4x16xf32>, vector<16x16xf32> -> vector<16x16xf32>
      %57 = arith.addf %43, %56 : vector<16x16xf32>
      %58 = vector.extract_strided_slice %48 {offsets = [1, 0], sizes = [16, 4], strides = [1, 1]} : vector<18x4xf32> to vector<16x4xf32>
      %c4 = arith.constant 4 : index
      %c0_45 = arith.constant 0 : index
      %c0_46 = arith.constant 0 : index
      %59 = vector.load %arg3[%c4, %c0_45, %c0_46] : memref<9x4x16xf32, #tpu.memory_space<vmem>>, vector<1x4x16xf32>
      %60 = vector.shape_cast %59 : vector<1x4x16xf32> to vector<4x16xf32>
      %cst_47 = arith.constant dense<0.000000e+00> : vector<16x16xf32>
      %61 = tpu.matmul %58, %60, %cst_47 {dimension_numbers = #tpu.dot_dimension_numbers<[1], [0], [0], [1], [0, 0, 1, 1], [], []>} : vector<16x4xf32>, vector<4x16xf32>, vector<16x16xf32> -> vector<16x16xf32>
      %62 = arith.addf %53, %61 : vector<16x16xf32>
      %c4_48 = arith.constant 4 : index
      %c0_49 = arith.constant 0 : index
      %c0_50 = arith.constant 0 : index
      %63 = vector.load %arg5[%c4_48, %c0_49, %c0_50] : memref<9x4x16xf32, #tpu.memory_space<vmem>>, vector<1x4x16xf32>
      %64 = vector.shape_cast %63 : vector<1x4x16xf32> to vector<4x16xf32>
      %cst_51 = arith.constant dense<0.000000e+00> : vector<16x16xf32>
      %65 = tpu.matmul %58, %64, %cst_51 {dimension_numbers = #tpu.dot_dimension_numbers<[1], [0], [0], [1], [0, 0, 1, 1], [], []>} : vector<16x4xf32>, vector<4x16xf32>, vector<16x16xf32> -> vector<16x16xf32>
      %66 = arith.addf %57, %65 : vector<16x16xf32>
      %67 = vector.extract_strided_slice %48 {offsets = [2, 0], sizes = [16, 4], strides = [1, 1]} : vector<18x4xf32> to vector<16x4xf32>
      %c5 = arith.constant 5 : index
      %c0_52 = arith.constant 0 : index
      %c0_53 = arith.constant 0 : index
      %68 = vector.load %arg3[%c5, %c0_52, %c0_53] : memref<9x4x16xf32, #tpu.memory_space<vmem>>, vector<1x4x16xf32>
      %69 = vector.shape_cast %68 : vector<1x4x16xf32> to vector<4x16xf32>
      %cst_54 = arith.constant dense<0.000000e+00> : vector<16x16xf32>
      %70 = tpu.matmul %67, %69, %cst_54 {dimension_numbers = #tpu.dot_dimension_numbers<[1], [0], [0], [1], [0, 0, 1, 1], [], []>} : vector<16x4xf32>, vector<4x16xf32>, vector<16x16xf32> -> vector<16x16xf32>
      %71 = arith.addf %62, %70 : vector<16x16xf32>
      %c5_55 = arith.constant 5 : index
      %c0_56 = arith.constant 0 : index
      %c0_57 = arith.constant 0 : index
      %72 = vector.load %arg5[%c5_55, %c0_56, %c0_57] : memref<9x4x16xf32, #tpu.memory_space<vmem>>, vector<1x4x16xf32>
      %73 = vector.shape_cast %72 : vector<1x4x16xf32> to vector<4x16xf32>
      %cst_58 = arith.constant dense<0.000000e+00> : vector<16x16xf32>
      %74 = tpu.matmul %67, %73, %cst_58 {dimension_numbers = #tpu.dot_dimension_numbers<[1], [0], [0], [1], [0, 0, 1, 1], [], []>} : vector<16x4xf32>, vector<4x16xf32>, vector<16x16xf32> -> vector<16x16xf32>
      %75 = arith.addf %66, %74 : vector<16x16xf32>
      %76 = arith.addi %0, %3 : i32
      %c2_i32 = arith.constant 2 : i32
      %77 = arith.addi %76, %c2_i32 : i32
      %c0_59 = arith.constant 0 : index
      %78 = arith.index_cast %77 : i32 to index
      %c0_60 = arith.constant 0 : index
      %c0_61 = arith.constant 0 : index
      %79 = vector.load %arg2[%c0_59, %78, %c0_60, %c0_61] : memref<1x18x18x4xf32, #tpu.memory_space<vmem>>, vector<1x1x18x4xf32>
      %80 = vector.shape_cast %79 : vector<1x1x18x4xf32> to vector<18x4xf32>
      %81 = vector.extract_strided_slice %80 {offsets = [0, 0], sizes = [16, 4], strides = [1, 1]} : vector<18x4xf32> to vector<16x4xf32>
      %c6 = arith.constant 6 : index
      %c0_62 = arith.constant 0 : index
      %c0_63 = arith.constant 0 : index
      %82 = vector.load %arg3[%c6, %c0_62, %c0_63] : memref<9x4x16xf32, #tpu.memory_space<vmem>>, vector<1x4x16xf32>
      %83 = vector.shape_cast %82 : vector<1x4x16xf32> to vector<4x16xf32>
      %cst_64 = arith.constant dense<0.000000e+00> : vector<16x16xf32>
      %84 = tpu.matmul %81, %83, %cst_64 {dimension_numbers = #tpu.dot_dimension_numbers<[1], [0], [0], [1], [0, 0, 1, 1], [], []>} : vector<16x4xf32>, vector<4x16xf32>, vector<16x16xf32> -> vector<16x16xf32>
      %85 = arith.addf %71, %84 : vector<16x16xf32>
      %c6_65 = arith.constant 6 : index
      %c0_66 = arith.constant 0 : index
      %c0_67 = arith.constant 0 : index
      %86 = vector.load %arg5[%c6_65, %c0_66, %c0_67] : memref<9x4x16xf32, #tpu.memory_space<vmem>>, vector<1x4x16xf32>
      %87 = vector.shape_cast %86 : vector<1x4x16xf32> to vector<4x16xf32>
      %cst_68 = arith.constant dense<0.000000e+00> : vector<16x16xf32>
      %88 = tpu.matmul %81, %87, %cst_68 {dimension_numbers = #tpu.dot_dimension_numbers<[1], [0], [0], [1], [0, 0, 1, 1], [], []>} : vector<16x4xf32>, vector<4x16xf32>, vector<16x16xf32> -> vector<16x16xf32>
      %89 = arith.addf %75, %88 : vector<16x16xf32>
      %90 = vector.extract_strided_slice %80 {offsets = [1, 0], sizes = [16, 4], strides = [1, 1]} : vector<18x4xf32> to vector<16x4xf32>
      %c7 = arith.constant 7 : index
      %c0_69 = arith.constant 0 : index
      %c0_70 = arith.constant 0 : index
      %91 = vector.load %arg3[%c7, %c0_69, %c0_70] : memref<9x4x16xf32, #tpu.memory_space<vmem>>, vector<1x4x16xf32>
      %92 = vector.shape_cast %91 : vector<1x4x16xf32> to vector<4x16xf32>
      %cst_71 = arith.constant dense<0.000000e+00> : vector<16x16xf32>
      %93 = tpu.matmul %90, %92, %cst_71 {dimension_numbers = #tpu.dot_dimension_numbers<[1], [0], [0], [1], [0, 0, 1, 1], [], []>} : vector<16x4xf32>, vector<4x16xf32>, vector<16x16xf32> -> vector<16x16xf32>
      %94 = arith.addf %85, %93 : vector<16x16xf32>
      %c7_72 = arith.constant 7 : index
      %c0_73 = arith.constant 0 : index
      %c0_74 = arith.constant 0 : index
      %95 = vector.load %arg5[%c7_72, %c0_73, %c0_74] : memref<9x4x16xf32, #tpu.memory_space<vmem>>, vector<1x4x16xf32>
      %96 = vector.shape_cast %95 : vector<1x4x16xf32> to vector<4x16xf32>
      %cst_75 = arith.constant dense<0.000000e+00> : vector<16x16xf32>
      %97 = tpu.matmul %90, %96, %cst_75 {dimension_numbers = #tpu.dot_dimension_numbers<[1], [0], [0], [1], [0, 0, 1, 1], [], []>} : vector<16x4xf32>, vector<4x16xf32>, vector<16x16xf32> -> vector<16x16xf32>
      %98 = arith.addf %89, %97 : vector<16x16xf32>
      %99 = vector.extract_strided_slice %80 {offsets = [2, 0], sizes = [16, 4], strides = [1, 1]} : vector<18x4xf32> to vector<16x4xf32>
      %c8 = arith.constant 8 : index
      %c0_76 = arith.constant 0 : index
      %c0_77 = arith.constant 0 : index
      %100 = vector.load %arg3[%c8, %c0_76, %c0_77] : memref<9x4x16xf32, #tpu.memory_space<vmem>>, vector<1x4x16xf32>
      %101 = vector.shape_cast %100 : vector<1x4x16xf32> to vector<4x16xf32>
      %cst_78 = arith.constant dense<0.000000e+00> : vector<16x16xf32>
      %102 = tpu.matmul %99, %101, %cst_78 {dimension_numbers = #tpu.dot_dimension_numbers<[1], [0], [0], [1], [0, 0, 1, 1], [], []>} : vector<16x4xf32>, vector<4x16xf32>, vector<16x16xf32> -> vector<16x16xf32>
      %103 = arith.addf %94, %102 : vector<16x16xf32>
      %c8_79 = arith.constant 8 : index
      %c0_80 = arith.constant 0 : index
      %c0_81 = arith.constant 0 : index
      %104 = vector.load %arg5[%c8_79, %c0_80, %c0_81] : memref<9x4x16xf32, #tpu.memory_space<vmem>>, vector<1x4x16xf32>
      %105 = vector.shape_cast %104 : vector<1x4x16xf32> to vector<4x16xf32>
      %cst_82 = arith.constant dense<0.000000e+00> : vector<16x16xf32>
      %106 = tpu.matmul %99, %105, %cst_82 {dimension_numbers = #tpu.dot_dimension_numbers<[1], [0], [0], [1], [0, 0, 1, 1], [], []>} : vector<16x4xf32>, vector<4x16xf32>, vector<16x16xf32> -> vector<16x16xf32>
      %107 = arith.addf %98, %106 : vector<16x16xf32>
      %cst_83 = arith.constant 0.000000e+00 : f32
      %108 = vector.broadcast %cst_83 : f32 to vector<16x16xf32>
      %109 = arith.maximumf %103, %108 : vector<16x16xf32>
      %c0_84 = arith.constant 0 : index
      %110 = arith.index_cast %3 : i32 to index
      %c0_85 = arith.constant 0 : index
      %c0_86 = arith.constant 0 : index
      %111 = vector.load %arg7[%c0_84, %110, %c0_85, %c0_86] : memref<1x8x16x16xf32, #tpu.memory_space<vmem>>, vector<1x1x16x16xf32>
      %112 = vector.shape_cast %111 : vector<1x1x16x16xf32> to vector<16x16xf32>
      %113 = vector.shape_cast %109 : vector<16x16xf32> to vector<1x1x16x16xf32>
      tpu.vector_store %arg7[%c0_84, %110, %c0_85, %c0_86], %113 {strides = array<i32>} : memref<1x8x16x16xf32, #tpu.memory_space<vmem>>, vector<1x1x16x16xf32>,
      %c0_87 = arith.constant 0 : index
      %114 = arith.index_cast %3 : i32 to index
      %c0_88 = arith.constant 0 : index
      %c0_89 = arith.constant 0 : index
      %115 = vector.load %arg8[%c0_87, %114, %c0_88, %c0_89] : memref<1x8x16x16xf32, #tpu.memory_space<vmem>>, vector<1x1x16x16xf32>
      %116 = vector.shape_cast %115 : vector<1x1x16x16xf32> to vector<16x16xf32>
      %117 = vector.shape_cast %107 : vector<16x16xf32> to vector<1x1x16x16xf32>
      tpu.vector_store %arg8[%c0_87, %114, %c0_88, %c0_89], %117 {strides = array<i32>} : memref<1x8x16x16xf32, #tpu.memory_space<vmem>>, vector<1x1x16x16xf32>,
    }
    %c8_i32_1 = arith.constant 8 : i32
    return
  }
  func.func @transform_0(%arg0: i32, %arg1: i32) -> (i32, i32, i32, i32) {
    %c0_i32 = arith.constant 0 : i32
    %c0_i32_0 = arith.constant 0 : i32
    %c0_i32_1 = arith.constant 0 : i32
    %c0_i32_2 = arith.constant 0 : i32
    return %arg0, %c0_i32, %c0_i32_0, %c0_i32_1 : i32, i32, i32, i32
  }
  func.func @transform_1(%arg0: i32, %arg1: i32) -> (i32, i32, i32) {
    %c0_i32 = arith.constant 0 : i32
    %c0_i32_0 = arith.constant 0 : i32
    %c0_i32_1 = arith.constant 0 : i32
    %c0_i32_2 = arith.constant 0 : i32
    return %c0_i32, %c0_i32_0, %c0_i32_1 : i32, i32, i32
  }
  func.func @transform_2(%arg0: i32, %arg1: i32) -> (i32, i32) {
    %c0_i32 = arith.constant 0 : i32
    %c0_i32_0 = arith.constant 0 : i32
    %c0_i32_1 = arith.constant 0 : i32
    return %c0_i32, %c0_i32_0 : i32, i32
  }
  func.func @transform_3(%arg0: i32, %arg1: i32) -> (i32, i32, i32) {
    %c0_i32 = arith.constant 0 : i32
    %c0_i32_0 = arith.constant 0 : i32
    %c0_i32_1 = arith.constant 0 : i32
    %c0_i32_2 = arith.constant 0 : i32
    return %c0_i32, %c0_i32_0, %c0_i32_1 : i32, i32, i32
  }
  func.func @transform_4(%arg0: i32, %arg1: i32) -> (i32, i32) {
    %c0_i32 = arith.constant 0 : i32
    %c0_i32_0 = arith.constant 0 : i32
    %c0_i32_1 = arith.constant 0 : i32
    return %c0_i32, %c0_i32_0 : i32, i32
  }
  func.func @transform_5(%arg0: i32, %arg1: i32) -> (i32, i32, i32, i32) {
    %c0_i32 = arith.constant 0 : i32
    %c0_i32_0 = arith.constant 0 : i32
    %c0_i32_1 = arith.constant 0 : i32
    return %arg0, %arg1, %c0_i32, %c0_i32_0 : i32, i32, i32, i32
  }
  func.func @transform_6(%arg0: i32, %arg1: i32) -> (i32, i32, i32, i32) {
    %c0_i32 = arith.constant 0 : i32
    %c0_i32_0 = arith.constant 0 : i32
    %c0_i32_1 = arith.constant 0 : i32
    return %arg0, %arg1, %c0_i32, %c0_i32_0 : i32, i32, i32, i32
  }
}

module attributes {stable_mosaic.version = 11 : i64} {
  func.func @_conv3_add_relu_kernel(%arg0: i32, %arg1: i32, %arg2: memref<1x34x34x4xf32, #tpu.memory_space<vmem>>, %arg3: memref<1x8x32x4xf32, #tpu.memory_space<vmem>>, %arg4: memref<9x4x4xf32, #tpu.memory_space<vmem>>, %arg5: memref<1x4xf32, #tpu.memory_space<vmem>>, %arg6: memref<1x8x32x4xf32, #tpu.memory_space<vmem>>) attributes {dimension_semantics = [#tpu.dimension_semantics<parallel>, #tpu.dimension_semantics<parallel>], iteration_bounds = array<i64: 2, 4>, scalar_prefetch = 0 : i64, scratch_operands = 0 : i64, tpu.core_type = #tpu.core_type<tc>, window_params = [{transform_indices = @transform_0, window_bounds = array<i64: 1, 34, 34, 4>}, {transform_indices = @transform_1, window_bounds = array<i64: 1, 8, 32, 4>}, {pipeline_mode = #tpu.pipeline_mode<synchronous>, transform_indices = @transform_2, window_bounds = array<i64: 9, 4, 4>}, {pipeline_mode = #tpu.pipeline_mode<synchronous>, transform_indices = @transform_3, window_bounds = array<i64: 1, 4>}, {transform_indices = @transform_4, window_bounds = array<i64: 1, 8, 32, 4>}]} {
    %c8_i32 = arith.constant 8 : i32
    %0 = arith.muli %arg1, %c8_i32 : i32
    %c0_i32 = arith.constant 0 : i32
    %c8_i32_0 = arith.constant 8 : i32
    %1 = arith.addi %c0_i32, %c8_i32_0 : i32
    %c1_i32 = arith.constant 1 : i32
    scf.for %arg7 = %c0_i32 to %1 step %c1_i32  : i32 {
      %c1_i32_2 = arith.constant 1 : i32
      %2 = arith.muli %arg7, %c1_i32_2 : i32
      %c0_i32_3 = arith.constant 0 : i32
      %3 = arith.addi %c0_i32_3, %2 : i32
      %cst = arith.constant 0.000000e+00 : f32
      %4 = vector.broadcast %cst : f32 to vector<32x4xf32>
      %c0 = arith.constant 0 : index
      %c0_4 = arith.constant 0 : index
      %5 = vector.load %arg5[%c0, %c0_4] : memref<1x4xf32, #tpu.memory_space<vmem>>, vector<1x4xf32>
      %6 = vector.broadcast %5 : vector<1x4xf32> to vector<32x4xf32>
      %7 = arith.addf %4, %6 : vector<32x4xf32>
      %8 = arith.addi %0, %3 : i32
      %c0_i32_5 = arith.constant 0 : i32
      %9 = arith.addi %8, %c0_i32_5 : i32
      %c0_6 = arith.constant 0 : index
      %10 = arith.index_cast %9 : i32 to index
      %c0_7 = arith.constant 0 : index
      %c0_8 = arith.constant 0 : index
      %11 = vector.load %arg2[%c0_6, %10, %c0_7, %c0_8] : memref<1x34x34x4xf32, #tpu.memory_space<vmem>>, vector<1x1x34x4xf32>
      %12 = vector.shape_cast %11 : vector<1x1x34x4xf32> to vector<34x4xf32>
      %13 = vector.extract_strided_slice %12 {offsets = [0, 0], sizes = [32, 4], strides = [1, 1]} : vector<34x4xf32> to vector<32x4xf32>
      %c0_9 = arith.constant 0 : index
      %c0_10 = arith.constant 0 : index
      %c0_11 = arith.constant 0 : index
      %14 = vector.load %arg4[%c0_9, %c0_10, %c0_11] : memref<9x4x4xf32, #tpu.memory_space<vmem>>, vector<1x4x4xf32>
      %15 = vector.shape_cast %14 : vector<1x4x4xf32> to vector<4x4xf32>
      %cst_12 = arith.constant dense<0.000000e+00> : vector<32x4xf32>
      %16 = tpu.matmul %13, %15, %cst_12 {dimension_numbers = #tpu.dot_dimension_numbers<[1], [0], [0], [1], [0, 0, 1, 1], [], []>} : vector<32x4xf32>, vector<4x4xf32>, vector<32x4xf32> -> vector<32x4xf32>
      %17 = arith.addf %7, %16 : vector<32x4xf32>
      %18 = vector.extract_strided_slice %12 {offsets = [1, 0], sizes = [32, 4], strides = [1, 1]} : vector<34x4xf32> to vector<32x4xf32>
      %c1 = arith.constant 1 : index
      %c0_13 = arith.constant 0 : index
      %c0_14 = arith.constant 0 : index
      %19 = vector.load %arg4[%c1, %c0_13, %c0_14] : memref<9x4x4xf32, #tpu.memory_space<vmem>>, vector<1x4x4xf32>
      %20 = vector.shape_cast %19 : vector<1x4x4xf32> to vector<4x4xf32>
      %cst_15 = arith.constant dense<0.000000e+00> : vector<32x4xf32>
      %21 = tpu.matmul %18, %20, %cst_15 {dimension_numbers = #tpu.dot_dimension_numbers<[1], [0], [0], [1], [0, 0, 1, 1], [], []>} : vector<32x4xf32>, vector<4x4xf32>, vector<32x4xf32> -> vector<32x4xf32>
      %22 = arith.addf %17, %21 : vector<32x4xf32>
      %23 = vector.extract_strided_slice %12 {offsets = [2, 0], sizes = [32, 4], strides = [1, 1]} : vector<34x4xf32> to vector<32x4xf32>
      %c2 = arith.constant 2 : index
      %c0_16 = arith.constant 0 : index
      %c0_17 = arith.constant 0 : index
      %24 = vector.load %arg4[%c2, %c0_16, %c0_17] : memref<9x4x4xf32, #tpu.memory_space<vmem>>, vector<1x4x4xf32>
      %25 = vector.shape_cast %24 : vector<1x4x4xf32> to vector<4x4xf32>
      %cst_18 = arith.constant dense<0.000000e+00> : vector<32x4xf32>
      %26 = tpu.matmul %23, %25, %cst_18 {dimension_numbers = #tpu.dot_dimension_numbers<[1], [0], [0], [1], [0, 0, 1, 1], [], []>} : vector<32x4xf32>, vector<4x4xf32>, vector<32x4xf32> -> vector<32x4xf32>
      %27 = arith.addf %22, %26 : vector<32x4xf32>
      %28 = arith.addi %0, %3 : i32
      %c1_i32_19 = arith.constant 1 : i32
      %29 = arith.addi %28, %c1_i32_19 : i32
      %c0_20 = arith.constant 0 : index
      %30 = arith.index_cast %29 : i32 to index
      %c0_21 = arith.constant 0 : index
      %c0_22 = arith.constant 0 : index
      %31 = vector.load %arg2[%c0_20, %30, %c0_21, %c0_22] : memref<1x34x34x4xf32, #tpu.memory_space<vmem>>, vector<1x1x34x4xf32>
      %32 = vector.shape_cast %31 : vector<1x1x34x4xf32> to vector<34x4xf32>
      %33 = vector.extract_strided_slice %32 {offsets = [0, 0], sizes = [32, 4], strides = [1, 1]} : vector<34x4xf32> to vector<32x4xf32>
      %c3 = arith.constant 3 : index
      %c0_23 = arith.constant 0 : index
      %c0_24 = arith.constant 0 : index
      %34 = vector.load %arg4[%c3, %c0_23, %c0_24] : memref<9x4x4xf32, #tpu.memory_space<vmem>>, vector<1x4x4xf32>
      %35 = vector.shape_cast %34 : vector<1x4x4xf32> to vector<4x4xf32>
      %cst_25 = arith.constant dense<0.000000e+00> : vector<32x4xf32>
      %36 = tpu.matmul %33, %35, %cst_25 {dimension_numbers = #tpu.dot_dimension_numbers<[1], [0], [0], [1], [0, 0, 1, 1], [], []>} : vector<32x4xf32>, vector<4x4xf32>, vector<32x4xf32> -> vector<32x4xf32>
      %37 = arith.addf %27, %36 : vector<32x4xf32>
      %38 = vector.extract_strided_slice %32 {offsets = [1, 0], sizes = [32, 4], strides = [1, 1]} : vector<34x4xf32> to vector<32x4xf32>
      %c4 = arith.constant 4 : index
      %c0_26 = arith.constant 0 : index
      %c0_27 = arith.constant 0 : index
      %39 = vector.load %arg4[%c4, %c0_26, %c0_27] : memref<9x4x4xf32, #tpu.memory_space<vmem>>, vector<1x4x4xf32>
      %40 = vector.shape_cast %39 : vector<1x4x4xf32> to vector<4x4xf32>
      %cst_28 = arith.constant dense<0.000000e+00> : vector<32x4xf32>
      %41 = tpu.matmul %38, %40, %cst_28 {dimension_numbers = #tpu.dot_dimension_numbers<[1], [0], [0], [1], [0, 0, 1, 1], [], []>} : vector<32x4xf32>, vector<4x4xf32>, vector<32x4xf32> -> vector<32x4xf32>
      %42 = arith.addf %37, %41 : vector<32x4xf32>
      %43 = vector.extract_strided_slice %32 {offsets = [2, 0], sizes = [32, 4], strides = [1, 1]} : vector<34x4xf32> to vector<32x4xf32>
      %c5 = arith.constant 5 : index
      %c0_29 = arith.constant 0 : index
      %c0_30 = arith.constant 0 : index
      %44 = vector.load %arg4[%c5, %c0_29, %c0_30] : memref<9x4x4xf32, #tpu.memory_space<vmem>>, vector<1x4x4xf32>
      %45 = vector.shape_cast %44 : vector<1x4x4xf32> to vector<4x4xf32>
      %cst_31 = arith.constant dense<0.000000e+00> : vector<32x4xf32>
      %46 = tpu.matmul %43, %45, %cst_31 {dimension_numbers = #tpu.dot_dimension_numbers<[1], [0], [0], [1], [0, 0, 1, 1], [], []>} : vector<32x4xf32>, vector<4x4xf32>, vector<32x4xf32> -> vector<32x4xf32>
      %47 = arith.addf %42, %46 : vector<32x4xf32>
      %48 = arith.addi %0, %3 : i32
      %c2_i32 = arith.constant 2 : i32
      %49 = arith.addi %48, %c2_i32 : i32
      %c0_32 = arith.constant 0 : index
      %50 = arith.index_cast %49 : i32 to index
      %c0_33 = arith.constant 0 : index
      %c0_34 = arith.constant 0 : index
      %51 = vector.load %arg2[%c0_32, %50, %c0_33, %c0_34] : memref<1x34x34x4xf32, #tpu.memory_space<vmem>>, vector<1x1x34x4xf32>
      %52 = vector.shape_cast %51 : vector<1x1x34x4xf32> to vector<34x4xf32>
      %53 = vector.extract_strided_slice %52 {offsets = [0, 0], sizes = [32, 4], strides = [1, 1]} : vector<34x4xf32> to vector<32x4xf32>
      %c6 = arith.constant 6 : index
      %c0_35 = arith.constant 0 : index
      %c0_36 = arith.constant 0 : index
      %54 = vector.load %arg4[%c6, %c0_35, %c0_36] : memref<9x4x4xf32, #tpu.memory_space<vmem>>, vector<1x4x4xf32>
      %55 = vector.shape_cast %54 : vector<1x4x4xf32> to vector<4x4xf32>
      %cst_37 = arith.constant dense<0.000000e+00> : vector<32x4xf32>
      %56 = tpu.matmul %53, %55, %cst_37 {dimension_numbers = #tpu.dot_dimension_numbers<[1], [0], [0], [1], [0, 0, 1, 1], [], []>} : vector<32x4xf32>, vector<4x4xf32>, vector<32x4xf32> -> vector<32x4xf32>
      %57 = arith.addf %47, %56 : vector<32x4xf32>
      %58 = vector.extract_strided_slice %52 {offsets = [1, 0], sizes = [32, 4], strides = [1, 1]} : vector<34x4xf32> to vector<32x4xf32>
      %c7 = arith.constant 7 : index
      %c0_38 = arith.constant 0 : index
      %c0_39 = arith.constant 0 : index
      %59 = vector.load %arg4[%c7, %c0_38, %c0_39] : memref<9x4x4xf32, #tpu.memory_space<vmem>>, vector<1x4x4xf32>
      %60 = vector.shape_cast %59 : vector<1x4x4xf32> to vector<4x4xf32>
      %cst_40 = arith.constant dense<0.000000e+00> : vector<32x4xf32>
      %61 = tpu.matmul %58, %60, %cst_40 {dimension_numbers = #tpu.dot_dimension_numbers<[1], [0], [0], [1], [0, 0, 1, 1], [], []>} : vector<32x4xf32>, vector<4x4xf32>, vector<32x4xf32> -> vector<32x4xf32>
      %62 = arith.addf %57, %61 : vector<32x4xf32>
      %63 = vector.extract_strided_slice %52 {offsets = [2, 0], sizes = [32, 4], strides = [1, 1]} : vector<34x4xf32> to vector<32x4xf32>
      %c8 = arith.constant 8 : index
      %c0_41 = arith.constant 0 : index
      %c0_42 = arith.constant 0 : index
      %64 = vector.load %arg4[%c8, %c0_41, %c0_42] : memref<9x4x4xf32, #tpu.memory_space<vmem>>, vector<1x4x4xf32>
      %65 = vector.shape_cast %64 : vector<1x4x4xf32> to vector<4x4xf32>
      %cst_43 = arith.constant dense<0.000000e+00> : vector<32x4xf32>
      %66 = tpu.matmul %63, %65, %cst_43 {dimension_numbers = #tpu.dot_dimension_numbers<[1], [0], [0], [1], [0, 0, 1, 1], [], []>} : vector<32x4xf32>, vector<4x4xf32>, vector<32x4xf32> -> vector<32x4xf32>
      %67 = arith.addf %62, %66 : vector<32x4xf32>
      %c0_44 = arith.constant 0 : index
      %68 = arith.index_cast %3 : i32 to index
      %c0_45 = arith.constant 0 : index
      %c0_46 = arith.constant 0 : index
      %69 = vector.load %arg3[%c0_44, %68, %c0_45, %c0_46] : memref<1x8x32x4xf32, #tpu.memory_space<vmem>>, vector<1x1x32x4xf32>
      %70 = vector.shape_cast %69 : vector<1x1x32x4xf32> to vector<32x4xf32>
      %71 = arith.addf %67, %70 : vector<32x4xf32>
      %cst_47 = arith.constant 0.000000e+00 : f32
      %72 = vector.broadcast %cst_47 : f32 to vector<32x4xf32>
      %73 = arith.maximumf %71, %72 : vector<32x4xf32>
      %c0_48 = arith.constant 0 : index
      %74 = arith.index_cast %3 : i32 to index
      %c0_49 = arith.constant 0 : index
      %c0_50 = arith.constant 0 : index
      %75 = vector.load %arg6[%c0_48, %74, %c0_49, %c0_50] : memref<1x8x32x4xf32, #tpu.memory_space<vmem>>, vector<1x1x32x4xf32>
      %76 = vector.shape_cast %75 : vector<1x1x32x4xf32> to vector<32x4xf32>
      %77 = vector.shape_cast %73 : vector<32x4xf32> to vector<1x1x32x4xf32>
      tpu.vector_store %arg6[%c0_48, %74, %c0_49, %c0_50], %77 {strides = array<i32>} : memref<1x8x32x4xf32, #tpu.memory_space<vmem>>, vector<1x1x32x4xf32>,
    }
    %c8_i32_1 = arith.constant 8 : i32
    return
  }
  func.func @transform_0(%arg0: i32, %arg1: i32) -> (i32, i32, i32, i32) {
    %c0_i32 = arith.constant 0 : i32
    %c0_i32_0 = arith.constant 0 : i32
    %c0_i32_1 = arith.constant 0 : i32
    %c0_i32_2 = arith.constant 0 : i32
    return %arg0, %c0_i32, %c0_i32_0, %c0_i32_1 : i32, i32, i32, i32
  }
  func.func @transform_1(%arg0: i32, %arg1: i32) -> (i32, i32, i32, i32) {
    %c0_i32 = arith.constant 0 : i32
    %c0_i32_0 = arith.constant 0 : i32
    %c0_i32_1 = arith.constant 0 : i32
    return %arg0, %arg1, %c0_i32, %c0_i32_0 : i32, i32, i32, i32
  }
  func.func @transform_2(%arg0: i32, %arg1: i32) -> (i32, i32, i32) {
    %c0_i32 = arith.constant 0 : i32
    %c0_i32_0 = arith.constant 0 : i32
    %c0_i32_1 = arith.constant 0 : i32
    %c0_i32_2 = arith.constant 0 : i32
    return %c0_i32, %c0_i32_0, %c0_i32_1 : i32, i32, i32
  }
  func.func @transform_3(%arg0: i32, %arg1: i32) -> (i32, i32) {
    %c0_i32 = arith.constant 0 : i32
    %c0_i32_0 = arith.constant 0 : i32
    %c0_i32_1 = arith.constant 0 : i32
    return %c0_i32, %c0_i32_0 : i32, i32
  }
  func.func @transform_4(%arg0: i32, %arg1: i32) -> (i32, i32, i32, i32) {
    %c0_i32 = arith.constant 0 : i32
    %c0_i32_0 = arith.constant 0 : i32
    %c0_i32_1 = arith.constant 0 : i32
    return %arg0, %arg1, %c0_i32, %c0_i32_0 : i32, i32, i32, i32
  }
}

</mosaic_0001>

<llo_original>
// kernel: up_project_forward.2
$region0: #{up_project_forward.2}
  #allocation0 [shape = 'u32[]', space=smem, size = 0x4, offset = 0x4, fixed_abs, tag = 'smem constant byte address 0x4 - core index']
  #allocation1 [shape = 'u32[144,128]{1,0:T(1,128)}', space=vmem, size = 0x12000, scoped, tag = 'internal scratch']
  %s0 = inlined_call_operand.vmem [shape: f32[2,18,18,4], index: 0, kind: input, shape index: {}]
  %s1 = inlined_call_operand.vmem [shape: f32[9,4,16], index: 1, kind: input, shape index: {}]
  %s2 = inlined_call_operand.vmem [shape: f32[1,16], index: 2, kind: input, shape index: {}]
  %s3 = inlined_call_operand.vmem [shape: f32[9,4,16], index: 3, kind: input, shape index: {}]
  %s4 = inlined_call_operand.vmem [shape: f32[1,16], index: 4, kind: input, shape index: {}]
  %s5 = inlined_call_operand.vmem [shape: f32[2,16,16,16], index: 5, kind: output, shape index: {0}]
  %s6 = inlined_call_operand.vmem [shape: f32[2,16,16,16], index: 6, kind: output, shape index: {1}]
  %7 = xla_tuple %s5, %s6
  %s8 = sld [smem:[#allocation0]]
  $region68: #{up_project_forward.2} parent=0
    _
  %s10 = ssub.s32 1, %s8
  %s11 = scalar_select 0, %s10, %s8
  loop: start=0, step=1, limit=6
  $region2: #{up_project_forward.2} parent=0 // loop_pre_header
    _
  $region3: #{up_project_forward.2} parent=0 // loop_header
    %s13 = sphi 0, %s17
    %p14 = scmp.ge.s32.totalorder %s13, 6
    %s20 = sphi 0, %s32
    %s21 = sphi 0, %s28
    %s22 = sphi 0, %s20
    %s23 = sphi 0, %s21
    %s24 = sphi 0, %s22
    %s25 = sphi 0, %s23
    %s35 = sphi 0, %s37
    %s38 = sphi 0, %s35
    %s39 = sphi 0, %s38
    %s55 = sphi 0, %s39
    %s59 = sphi 0, %s59
    %s61 = sphi 0, %s59
    %s62 = sphi 0, %s61
    %s76 = sphi 0, %s62
    %s80 = sphi 0, %s80
    %s82 = sphi 0, %s80
    %s83 = sphi 0, %s82
    %s97 = sphi 0, %s83
    %s101 = sphi 0, %s101
    %s103 = sphi 0, %s101
    %s104 = sphi 0, %s103
    %s118 = sphi 0, %s104
    %s122 = sphi 0, %s122
    %s124 = sphi 0, %s122
    %s125 = sphi 0, %s124
    %s139 = sphi 0, %s125
    %s147 = sphi 0, %s149
    %s150 = sphi 0, %s147
    %s151 = sphi 0, %s150
    %s167 = sphi 0, %s151
    %s175 = sphi 0, %s177
    %s178 = sphi 0, %s175
    %s179 = sphi 0, %s178
    %s195 = sphi 0, %s179
  $region4: #{up_project_forward.2} parent=0 // loop_header_branch
    %16 = sbr.rel (%p14) target = $region8
  $region5: #{up_project_forward.2} parent=0 // loop_body
    %s18 = ssub.s32 %s13, 1
    %s19 = ssub.s32 %s13, 2
    %s26 = sadd.s32 1, %s21
    %p27 = scmp.ge.s32.totalorder %s26, 2
    %s28 = scalar_select %p27, 0, %s26
    %s29 = sadd.s32 1, %s20
    %s30 = scalar_select %p27, %s29, %s20
    %p31 = scmp.ge.s32.totalorder %s30, 2
    %s32 = scalar_select %p31, 0, %s30
    %s33 = ssub.s32 %s20, %s32
    %p34 = scmp.eq.s32.totalorder %s33, 0
    %s36 = sadd.s32 %s35, 1
    %s37 = scalar_select %p34, %s35, %s36
    %p40 = pneg %p34
    %p41 = scmp.eq.s32.totalorder %s13, 3
    %p42 = por %p40, %p41
    %p43 = scmp.ne.s32.totalorder %s35, %s38
    %p44 = scmp.eq.s32.totalorder %s13, 0
    %p45 = por %p43, %p44
    %p46 = scmp.ne.s32.totalorder %s35, %s38
    %p47 = scmp.eq.s32.totalorder %s18, 3
    %p48 = por %p46, %p47
    %p49 = scmp.ne.s32.totalorder %s38, %s39
    %p50 = scmp.eq.s32.totalorder %s18, 0
    %p51 = por %p49, %p50
    %p52 = scmp.ne.s32.totalorder %s38, %s39
    %p53 = scmp.eq.s32.totalorder %s19, 3
    %p54 = por %p52, %p53
    %p56 = scmp.ne.s32.totalorder %s39, %s55
    %p57 = scmp.eq.s32.totalorder %s19, 0
    %p58 = por %p56, %p57
    %s60 = sadd.s32 %s59, 1
    %p63 = scmp.eq.s32.totalorder %s13, 3
    %p64 = scmp.ne.s32.totalorder %s59, %s61
    %p65 = scmp.eq.s32.totalorder %s13, 0
    %p66 = por %p64, %p65
    %p67 = scmp.ne.s32.totalorder %s59, %s61
    %p68 = scmp.eq.s32.totalorder %s18, 3
    %p69 = por %p67, %p68
    %p70 = scmp.ne.s32.totalorder %s61, %s62
    %p71 = scmp.eq.s32.totalorder %s18, 0
    %p72 = por %p70, %p71
    %p73 = scmp.ne.s32.totalorder %s61, %s62
    %p74 = scmp.eq.s32.totalorder %s19, 3
    %p75 = por %p73, %p74
    %p77 = scmp.ne.s32.totalorder %s62, %s76
    %p78 = scmp.eq.s32.totalorder %s19, 0
    %p79 = por %p77, %p78
    %s81 = sadd.s32 %s80, 1
    %p84 = scmp.eq.s32.totalorder %s13, 3
    %p85 = scmp.ne.s32.totalorder %s80, %s82
    %p86 = scmp.eq.s32.totalorder %s13, 0
    %p87 = por %p85, %p86
    %p88 = scmp.ne.s32.totalorder %s80, %s82
    %p89 = scmp.eq.s32.totalorder %s18, 3
    %p90 = por %p88, %p89
    %p91 = scmp.ne.s32.totalorder %s82, %s83
    %p92 = scmp.eq.s32.totalorder %s18, 0
    %p93 = por %p91, %p92
    %p94 = scmp.ne.s32.totalorder %s82, %s83
    %p95 = scmp.eq.s32.totalorder %s19, 3
    %p96 = por %p94, %p95
    %p98 = scmp.ne.s32.totalorder %s83, %s97
    %p99 = scmp.eq.s32.totalorder %s19, 0
    %p100 = por %p98, %p99
    %s102 = sadd.s32 %s101, 1
    %p105 = scmp.eq.s32.totalorder %s13, 3
    %p106 = scmp.ne.s32.totalorder %s101, %s103
    %p107 = scmp.eq.s32.totalorder %s13, 0
    %p108 = por %p106, %p107
    %p109 = scmp.ne.s32.totalorder %s101, %s103
    %p110 = scmp.eq.s32.totalorder %s18, 3
    %p111 = por %p109, %p110
    %p112 = scmp.ne.s32.totalorder %s103, %s104
    %p113 = scmp.eq.s32.totalorder %s18, 0
    %p114 = por %p112, %p113
    %p115 = scmp.ne.s32.totalorder %s103, %s104
    %p116 = scmp.eq.s32.totalorder %s19, 3
    %p117 = por %p115, %p116
    %p119 = scmp.ne.s32.totalorder %s104, %s118
    %p120 = scmp.eq.s32.totalorder %s19, 0
    %p121 = por %p119, %p120
    %s123 = sadd.s32 %s122, 1
    %p126 = scmp.eq.s32.totalorder %s13, 3
    %p127 = scmp.ne.s32.totalorder %s122, %s124
    %p128 = scmp.eq.s32.totalorder %s13, 0
    %p129 = por %p127, %p128
    %p130 = scmp.ne.s32.totalorder %s122, %s124
    %p131 = scmp.eq.s32.totalorder %s18, 3
    %p132 = por %p130, %p131
    %p133 = scmp.ne.s32.totalorder %s124, %s125
    %p134 = scmp.eq.s32.totalorder %s18, 0
    %p135 = por %p133, %p134
    %p136 = scmp.ne.s32.totalorder %s124, %s125
    %p137 = scmp.eq.s32.totalorder %s19, 3
    %p138 = por %p136, %p137
    %p140 = scmp.ne.s32.totalorder %s125, %s139
    %p141 = scmp.eq.s32.totalorder %s19, 0
    %p142 = por %p140, %p141
    %s143 = ssub.s32 %s20, %s32
    %s144 = ssub.s32 %s21, %s28
    %s145 = sor.u32 %s143, %s144
    %p146 = scmp.eq.s32.totalorder %s145, 0
    %s148 = sadd.s32 %s147, 1
    %s149 = scalar_select %p146, %s147, %s148
    %p152 = pneg %p146
    %p153 = scmp.eq.s32.totalorder %s13, 3
    %p154 = por %p152, %p153
    %p155 = scmp.ne.s32.totalorder %s147, %s150
    %p156 = scmp.eq.s32.totalorder %s13, 0
    %p157 = por %p155, %p156
    %p158 = scmp.ne.s32.totalorder %s147, %s150
    %p159 = scmp.eq.s32.totalorder %s18, 3
    %p160 = por %p158, %p159
    %p161 = scmp.ne.s32.totalorder %s150, %s151
    %p162 = scmp.eq.s32.totalorder %s18, 0
    %p163 = por %p161, %p162
    %p164 = scmp.ne.s32.totalorder %s150, %s151
    %p165 = scmp.eq.s32.totalorder %s19, 3
    %p166 = por %p164, %p165
    %p168 = scmp.ne.s32.totalorder %s151, %s167
    %p169 = scmp.eq.s32.totalorder %s19, 0
    %p170 = por %p168, %p169
    %s171 = ssub.s32 %s20, %s32
    %s172 = ssub.s32 %s21, %s28
    %s173 = sor.u32 %s171, %s172
    %p174 = scmp.eq.s32.totalorder %s173, 0
    %s176 = sadd.s32 %s175, 1
    %s177 = scalar_select %p174, %s175, %s176
    %p180 = pneg %p174
    %p181 = scmp.eq.s32.totalorder %s13, 3
    %p182 = por %p180, %p181
    %p183 = scmp.ne.s32.totalorder %s175, %s178
    %p184 = scmp.eq.s32.totalorder %s13, 0
    %p185 = por %p183, %p184
    %p186 = scmp.ne.s32.totalorder %s175, %s178
    %p187 = scmp.eq.s32.totalorder %s18, 3
    %p188 = por %p186, %p187
    %p189 = scmp.ne.s32.totalorder %s178, %s179
    %p190 = scmp.eq.s32.totalorder %s18, 0
    %p191 = por %p189, %p190
    %p192 = scmp.ne.s32.totalorder %s178, %s179
    %p193 = scmp.eq.s32.totalorder %s19, 3
    %p194 = por %p192, %p193
    %p196 = scmp.ne.s32.totalorder %s179, %s195
    %p197 = scmp.eq.s32.totalorder %s19, 0
    %p198 = por %p196, %p197
    %p199 = scmp.le.s32.totalorder 1, %s13
    %p200 = scmp.lt.s32.totalorder %s13, 5
    %p201 = pnand %p199, %p200
    %p202 = pneg %p201
    // Predicated region
    $region9: #{up_project_forward.2} parent=5 // pred_check
      _
    $region10: #{up_project_forward.2} parent=5 // pred_check_branch
      %204 = sbr.rel (%p201) target = $region12
    $region11: #{up_project_forward.2} parent=5 // pred_region
      %s205 = ssub.s32 %s13, 1
      // Predicated region
      $region13: #{up_project_forward.2} parent=11 // pred_check
        %p206 = pneg %p72
      $region14: #{up_project_forward.2} parent=11 // pred_check_branch
        %208 = sbr.rel (%p206) target = $region16
      $region15: #{up_project_forward.2} parent=11 // pred_region
        _
      $region16: #{up_project_forward.2} parent=11 // pred_fallthru
        _
      // Predicated region
      $region17: #{up_project_forward.2} parent=11 // pred_check
        %p209 = pneg %p93
      $region18: #{up_project_forward.2} parent=11 // pred_check_branch
        %211 = sbr.rel (%p209) target = $region20
      $region19: #{up_project_forward.2} parent=11 // pred_region
        _
      $region20: #{up_project_forward.2} parent=11 // pred_fallthru
        _
      // Predicated region
      $region21: #{up_project_forward.2} parent=11 // pred_check
        %p212 = pneg %p114
      $region22: #{up_project_forward.2} parent=11 // pred_check_branch
        %214 = sbr.rel (%p212) target = $region24
      $region23: #{up_project_forward.2} parent=11 // pred_region
        _
      $region24: #{up_project_forward.2} parent=11 // pred_fallthru
        _
      // Predicated region
      $region25: #{up_project_forward.2} parent=11 // pred_check
        %p215 = pneg %p135
      $region26: #{up_project_forward.2} parent=11 // pred_check_branch
        %217 = sbr.rel (%p215) target = $region28
      $region27: #{up_project_forward.2} parent=11 // pred_region
        _
      $region28: #{up_project_forward.2} parent=11 // pred_fallthru
        _
    $region12: #{up_project_forward.2} parent=5 // pred_fallthru
      _
    %p218 = scmp.lt.s32.totalorder %s13, 4
    // Predicated region
    $region29: #{up_project_forward.2} parent=5 // pred_check
      %p219 = pneg %p218
    $region30: #{up_project_forward.2} parent=5 // pred_check_branch
      %221 = sbr.rel (%p219) target = $region32
    $region31: #{up_project_forward.2} parent=5 // pred_region
      // Predicated region
      $region33: #{up_project_forward.2} parent=31 // pred_check
        %p222 = pneg %p45
      $region34: #{up_project_forward.2} parent=31 // pred_check_branch
        %224 = sbr.rel (%p222) target = $region36
      $region35: #{up_project_forward.2} parent=31 // pred_region
        %p225 = scmp.lt.s32.totalorder %s20, 1
        %s226 = scalar_select %p225, %s20, 1
        %s227 = smul.addr %s226, 54
        %s228 = smul.addr %s227, 8
        %s229 = scalar_lea.vmem %s0, %s228
      $region36: #{up_project_forward.2} parent=31 // pred_fallthru
        _
    $region32: #{up_project_forward.2} parent=5 // pred_fallthru
      _
    %p230 = scmp.le.s32.totalorder 1, %s13
    %p231 = scmp.lt.s32.totalorder %s13, 5
    %p232 = pnand %p230, %p231
    %p233 = pneg %p232
    // Predicated region
    $region37: #{up_project_forward.2} parent=5 // pred_check
      _
    $region38: #{up_project_forward.2} parent=5 // pred_check_branch
      %235 = sbr.rel (%p232) target = $region40
    $region39: #{up_project_forward.2} parent=5 // pred_region
      %s236 = ssub.s32 %s13, 1
      %p237 = scmp.lt.s32.totalorder %s22, 1
      %s238 = scalar_select %p237, %s22, 1
      %s239 = smul.addr %s238, 54
      %s240 = smul.addr %s239, 8
      %s241 = scalar_lea.vmem %s0, %s240
      %p242 = pneg %p51
      %p243 = pneg %p48
      %p244 = pneg %p72
      %p245 = pneg %p69
      %p246 = pneg %p93
      %p247 = pneg %p90
      %p248 = pneg %p114
      %p249 = pneg %p111
      %p250 = pneg %p135
      %p251 = pneg %p132
      %p252 = pneg %p163
      %p253 = pneg %p160
      %s254 = smul.u32 8, %s23
      %p255 = scmp.lt.s32.totalorder %s22, 1
      %s256 = scalar_select %p255, %s22, 1
      %p257 = scmp.lt.s32.totalorder %s254, 15
      %s258 = scalar_select %p257, %s254, 15
      %s259 = smul.addr %s258, 2
      %s260 = smul.addr %s256, 32
      %s261 = sadd.s32 %s259, %s260
      %s262 = smul.addr %s261, 8
      %s263 = scalar_lea.vmem %s5, %s262
      %p264 = pneg %p191
      %p265 = pneg %p188
      %s266 = smul.u32 8, %s23
      %p267 = scmp.lt.s32.totalorder %s22, 1
      %s268 = scalar_select %p267, %s22, 1
      %p269 = scmp.lt.s32.totalorder %s266, 15
      %s270 = scalar_select %p269, %s266, 15
      %s271 = smul.addr %s270, 2
      %s272 = smul.addr %s268, 32
      %s273 = sadd.s32 %s271, %s272
      %s274 = smul.addr %s273, 8
      %s275 = scalar_lea.vmem %s6, %s274
      %p276 = scmp.lt.s32.totalorder %s22, 1
      %s277 = scalar_select %p276, %s22, 1
      %s278 = smul.addr %s277, 54
      %s279 = smul.addr %s278, 8
      %s280 = scalar_lea.vmem %s0, %s279
      %s281 = smul.u32 8, %s23
      %p282 = scmp.lt.s32.totalorder %s22, 1
      %s283 = scalar_select %p282, %s22, 1
      %p284 = scmp.lt.s32.totalorder %s281, 15
      %s285 = scalar_select %p284, %s281, 15
      %s286 = smul.addr %s285, 2
      %s287 = smul.addr %s283, 32
      %s288 = sadd.s32 %s286, %s287
      %s289 = smul.addr %s288, 8
      %s290 = scalar_lea.vmem %s5, %s289
      %s291 = smul.u32 8, %s23
      %s292 = smul.u32 8, %s23
      %p293 = scmp.lt.s32.totalorder %s22, 1
      %s294 = scalar_select %p293, %s22, 1
      %p295 = scmp.lt.s32.totalorder %s292, 15
      %s296 = scalar_select %p295, %s292, 15
      %s297 = smul.addr %s296, 2
      %s298 = smul.addr %s294, 32
      %s299 = sadd.s32 %s297, %s298
      %s300 = smul.addr %s299, 8
      %s301 = scalar_lea.vmem %s6, %s300
      %s302 = smul.u32 8, %s23
      %s303 = smul.u32 %s23, 8
      loop: start=0, step=1, limit=8
      $region41: #{up_project_forward.2} parent=39 // loop_pre_header
        _
      $region42: #{up_project_forward.2} parent=39 // loop_header
        %s305 = sphi 0, %s309
        %p306 = scmp.ge.s32.totalorder %s305, 8
      $region43: #{up_project_forward.2} parent=39 // loop_header_branch
        %308 = sbr.rel (%p306) target = $region47
      $region44: #{up_project_forward.2} parent=39 // loop_body
        %v310 = vld [vmem:[%s2] sm:$0x1]
        %v312 = vlaneseq
        %v313 = vshrl.u32 %v312, 7
        %v314 = vsub.s32 0, %v313
        %v315 = vrot.slane %v310, %v314
        %v317 = vadd.f32 %v315, 0.0
        %v318 = vld [vmem:[%s4] sm:$0x1]
        %v320 = vlaneseq
        %v321 = vshrl.u32 %v320, 7
        %v322 = vsub.s32 0, %v321
        %v323 = vrot.slane %v318, %v322
        %v325 = vadd.f32 %v323, 0.0
        %s326 = sadd.s32 %s303, %s305
        %s327 = smul.u32 %s326, 24
        %s328 = scalar_lea.vmem %s280, %s327
        %v329 = vld [vmem:[%s328] sm:$0xff]
        %v330 = vld [vmem:[%s328 + $0x8] sm:$0xff]
        %v331 = vld [vmem:[%s328 + $0x10] sm:$0x3]
        %v332 = vld [vmem:[%s1] sm:$0xf]
        %vm333 = vcmask 31744
        %v335 = vsel %vm333, %v329, 0
        %v338 = vsel %vm333, %v330, 0
        %vm340 = vcmask 1043456
        %v342 = vsel %vm340, %v332, 0
        %344 = vmatprep.subr.mxu0 0.0
        %345 = vmatpush1.msra.mxu0 0.0
        %346 = vmatprep.subr.mxu0 0.0
        %347 = vmatpush1.msra.mxu0 0.0
        %348 = vmatprep.subr.mxu0 0.0
        %349 = vmatpush1.msra.mxu0 0.0
        %350 = vmatprep.subr.mxu0 0.0
        %351 = vmatpush1.msra.mxu0 0.0
        %352 = vmatprep.subr.mxu0 0.0
        %353 = vmatpush1.msra.mxu0 0.0
        %354 = vmatprep.subr.mxu0 0.0
        %355 = vmatpush1.msra.mxu0 0.0
        %356 = vmatprep.subr.mxu0 0.0
        %357 = vmatpush1.msra.mxu0 0.0
        %358 = vmatprep.subr.mxu0 0.0
        %359 = vmatpush1.msra.mxu0 0.0
        %360 = vmatprep.subr.mxu0 0.0
        %361 = vmatpush1.msra.mxu0 0.0
        %362 = vmatprep.subr.mxu0 0.0
        %363 = vmatpush1.msra.mxu0 0.0
        %364 = vmatprep.subr.mxu0 0.0
        %365 = vmatpush1.msra.mxu0 0.0
        %366 = vmatprep.subr.mxu0 0.0
        %367 = vmatpush1.msra.mxu0 0.0
        %368 = vmatprep.subr.mxu0 0.0
        %369 = vmatpush1.msra.mxu0 0.0
        %370 = vmatprep.subr.mxu0 0.0
        %371 = vmatpush1.msra.mxu0 0.0
        %372 = vmatprep.subr.mxu0 0.0
        %373 = vmatpush1.msra.mxu0 0.0
        %374 = vmatprep.subr.mxu0 0.0
        %375 = vmatpush1.msra.mxu0 %v342
        %376 = vmatprep.subr.mxu0 0.0
        %377 = vmatpush2.msra.mxu0 0.0
        %378 = vmatprep.subr.mxu0 0.0
        %379 = vmatpush2.msra.mxu0 0.0
        %380 = vmatprep.subr.mxu0 0.0
        %381 = vmatpush2.msra.mxu0 0.0
        %382 = vmatprep.subr.mxu0 0.0
        %383 = vmatpush2.msra.mxu0 0.0
        %384 = vmatprep.subr.mxu0 0.0
        %385 = vmatpush2.msra.mxu0 0.0
        %386 = vmatprep.subr.mxu0 0.0
        %387 = vmatpush2.msra.mxu0 0.0
        %388 = vmatprep.subr.mxu0 0.0
        %389 = vmatpush2.msra.mxu0 0.0
        %390 = vmatprep.subr.mxu0 0.0
        %391 = vmatpush2.msra.mxu0 0.0
        %392 = vmatprep.subr.mxu0 0.0
        %393 = vmatpush2.msra.mxu0 0.0
        %394 = vmatprep.subr.mxu0 0.0
        %395 = vmatpush2.msra.mxu0 0.0
        %396 = vmatprep.subr.mxu0 0.0
        %397 = vmatpush2.msra.mxu0 0.0
        %398 = vmatprep.subr.mxu0 0.0
        %399 = vmatpush2.msra.mxu0 0.0
        %400 = vmatprep.subr.mxu0 0.0
        %401 = vmatpush2.msra.mxu0 0.0
        %402 = vmatprep.subr.mxu0 0.0
        %403 = vmatpush2.msra.mxu0 0.0
        %404 = vmatprep.subr.mxu0 0.0
        %405 = vmatpush2.msra.mxu0 0.0
        %406 = vmatprep.subr.mxu0 0.0
        %407 = vmatpush2.msra.mxu0 0.0
        %408 = vmatprep.mubr.f32.mxu0 0.0
        %409 = vmatmul.mubr.f32.gmra.mxu0 %v335
        %v410 = vpop.f32.mrf.mxu0
        %v411 = vadd.f32 0.0, %v410
        %v412 = vpop.f32.mrf.mxu0
        %413 = vmatprep.mubr.f32.mxu0 0.0
        %414 = vmatmul.mubr.f32.gmra.mxu0 %v338
        %v415 = vpop.f32.mrf.mxu0
        %v416 = vadd.f32 0.0, %v415
        %v417 = vpop.f32.mrf.mxu0
        %418 = vdwg.mxu0
        %v419 = vadd.f32 %v317, %v411
        %v420 = vadd.f32 %v317, %v416
        %v421 = vld [vmem:[%s3] sm:$0xf]
        %v423 = vsel %vm340, %v421, 0
        %425 = vmatprep.subr.mxu0 0.0
        %426 = vmatpush1.msra.mxu0 0.0
        %427 = vmatprep.subr.mxu0 0.0
        %428 = vmatpush1.msra.mxu0 0.0
        %429 = vmatprep.subr.mxu0 0.0
        %430 = vmatpush1.msra.mxu0 0.0
        %431 = vmatprep.subr.mxu0 0.0
        %432 = vmatpush1.msra.mxu0 0.0
        %433 = vmatprep.subr.mxu0 0.0
        %434 = vmatpush1.msra.mxu0 0.0
        %435 = vmatprep.subr.mxu0 0.0
        %436 = vmatpush1.msra.mxu0 0.0
        %437 = vmatprep.subr.mxu0 0.0
        %438 = vmatpush1.msra.mxu0 0.0
        %439 = vmatprep.subr.mxu0 0.0
        %440 = vmatpush1.msra.mxu0 0.0
        %441 = vmatprep.subr.mxu0 0.0
        %442 = vmatpush1.msra.mxu0 0.0
        %443 = vmatprep.subr.mxu0 0.0
        %444 = vmatpush1.msra.mxu0 0.0
        %445 = vmatprep.subr.mxu0 0.0
        %446 = vmatpush1.msra.mxu0 0.0
        %447 = vmatprep.subr.mxu0 0.0
        %448 = vmatpush1.msra.mxu0 0.0
        %449 = vmatprep.subr.mxu0 0.0
        %450 = vmatpush1.msra.mxu0 0.0
        %451 = vmatprep.subr.mxu0 0.0
        %452 = vmatpush1.msra.mxu0 0.0
        %453 = vmatprep.subr.mxu0 0.0
        %454 = vmatpush1.msra.mxu0 0.0
        %455 = vmatprep.subr.mxu0 0.0
        %456 = vmatpush1.msra.mxu0 %v423
        %457 = vmatprep.subr.mxu0 0.0
        %458 = vmatpush2.msra.mxu0 0.0
        %459 = vmatprep.subr.mxu0 0.0
        %460 = vmatpush2.msra.mxu0 0.0
        %461 = vmatprep.subr.mxu0 0.0
        %462 = vmatpush2.msra.mxu0 0.0
        %463 = vmatprep.subr.mxu0 0.0
        %464 = vmatpush2.msra.mxu0 0.0
        %465 = vmatprep.subr.mxu0 0.0
        %466 = vmatpush2.msra.mxu0 0.0
        %467 = vmatprep.subr.mxu0 0.0
        %468 = vmatpush2.msra.mxu0 0.0
        %469 = vmatprep.subr.mxu0 0.0
        %470 = vmatpush2.msra.mxu0 0.0
        %471 = vmatprep.subr.mxu0 0.0
        %472 = vmatpush2.msra.mxu0 0.0
        %473 = vmatprep.subr.mxu0 0.0
        %474 = vmatpush2.msra.mxu0 0.0
        %475 = vmatprep.subr.mxu0 0.0
        %476 = vmatpush2.msra.mxu0 0.0
        %477 = vmatprep.subr.mxu0 0.0
        %478 = vmatpush2.msra.mxu0 0.0
        %479 = vmatprep.subr.mxu0 0.0
        %480 = vmatpush2.msra.mxu0 0.0
        %481 = vmatprep.subr.mxu0 0.0
        %482 = vmatpush2.msra.mxu0 0.0
        %483 = vmatprep.subr.mxu0 0.0
        %484 = vmatpush2.msra.mxu0 0.0
        %485 = vmatprep.subr.mxu0 0.0
        %486 = vmatpush2.msra.mxu0 0.0
        %487 = vmatprep.subr.mxu0 0.0
        %488 = vmatpush2.msra.mxu0 0.0
        %489 = vmatprep.mubr.f32.mxu0 0.0
        %490 = vmatmul.mubr.f32.gmra.mxu0 %v335
        %v491 = vpop.f32.mrf.mxu0
        %v492 = vadd.f32 0.0, %v491
        %v493 = vpop.f32.mrf.mxu0
        %494 = vmatprep.mubr.f32.mxu0 0.0
        %495 = vmatmul.mubr.f32.gmra.mxu0 %v338
        %v496 = vpop.f32.mrf.mxu0
        %v497 = vadd.f32 0.0, %v496
        %v498 = vpop.f32.mrf.mxu0
        %499 = vdwg.mxu0
        %v500 = vadd.f32 %v325, %v492
        %v501 = vadd.f32 %v325, %v497
        %s502 = scalar_lea.vmem %s1, 4
        %v503 = vld [vmem:[%s502] sm:$0xf]
        %vm505 = vcmask 1046528
        %v506 = vrot.slane %v329, 1
        %v507 = vrot.slane %v330, 1
        %v508 = vsel %vm505, %v506, %v507
        %v509 = vrot.slane %v331, 1
        %v510 = vsel %vm505, %v507, %v509
        %v511 = vsel %vm333, %v508, 0
        %v513 = vsel %vm333, %v510, 0
        %v516 = vsel %vm340, %v503, 0
        %518 = vmatprep.subr.mxu0 0.0
        %519 = vmatpush1.msra.mxu0 0.0
        %520 = vmatprep.subr.mxu0 0.0
        %521 = vmatpush1.msra.mxu0 0.0
        %522 = vmatprep.subr.mxu0 0.0
        %523 = vmatpush1.msra.mxu0 0.0
        %524 = vmatprep.subr.mxu0 0.0
        %525 = vmatpush1.msra.mxu0 0.0
        %526 = vmatprep.subr.mxu0 0.0
        %527 = vmatpush1.msra.mxu0 0.0
        %528 = vmatprep.subr.mxu0 0.0
        %529 = vmatpush1.msra.mxu0 0.0
        %530 = vmatprep.subr.mxu0 0.0
        %531 = vmatpush1.msra.mxu0 0.0
        %532 = vmatprep.subr.mxu0 0.0
        %533 = vmatpush1.msra.mxu0 0.0
        %534 = vmatprep.subr.mxu0 0.0
        %535 = vmatpush1.msra.mxu0 0.0
        %536 = vmatprep.subr.mxu0 0.0
        %537 = vmatpush1.msra.mxu0 0.0
        %538 = vmatprep.subr.mxu0 0.0
        %539 = vmatpush1.msra.mxu0 0.0
        %540 = vmatprep.subr.mxu0 0.0
        %541 = vmatpush1.msra.mxu0 0.0
        %542 = vmatprep.subr.mxu0 0.0
        %543 = vmatpush1.msra.mxu0 0.0
        %544 = vmatprep.subr.mxu0 0.0
        %545 = vmatpush1.msra.mxu0 0.0
        %546 = vmatprep.subr.mxu0 0.0
        %547 = vmatpush1.msra.mxu0 0.0
        %548 = vmatprep.subr.mxu0 0.0
        %549 = vmatpush1.msra.mxu0 %v516
        %550 = vmatprep.subr.mxu0 0.0
        %551 = vmatpush2.msra.mxu0 0.0
        %552 = vmatprep.subr.mxu0 0.0
        %553 = vmatpush2.msra.mxu0 0.0
        %554 = vmatprep.subr.mxu0 0.0
        %555 = vmatpush2.msra.mxu0 0.0
        %556 = vmatprep.subr.mxu0 0.0
        %557 = vmatpush2.msra.mxu0 0.0
        %558 = vmatprep.subr.mxu0 0.0
        %559 = vmatpush2.msra.mxu0 0.0
        %560 = vmatprep.subr.mxu0 0.0
        %561 = vmatpush2.msra.mxu0 0.0
        %562 = vmatprep.subr.mxu0 0.0
        %563 = vmatpush2.msra.mxu0 0.0
        %564 = vmatprep.subr.mxu0 0.0
        %565 = vmatpush2.msra.mxu0 0.0
        %566 = vmatprep.subr.mxu0 0.0
        %567 = vmatpush2.msra.mxu0 0.0
        %568 = vmatprep.subr.mxu0 0.0
        %569 = vmatpush2.msra.mxu0 0.0
        %570 = vmatprep.subr.mxu0 0.0
        %571 = vmatpush2.msra.mxu0 0.0
        %572 = vmatprep.subr.mxu0 0.0
        %573 = vmatpush2.msra.mxu0 0.0
        %574 = vmatprep.subr.mxu0 0.0
        %575 = vmatpush2.msra.mxu0 0.0
        %576 = vmatprep.subr.mxu0 0.0
        %577 = vmatpush2.msra.mxu0 0.0
        %578 = vmatprep.subr.mxu0 0.0
        %579 = vmatpush2.msra.mxu0 0.0
        %580 = vmatprep.subr.mxu0 0.0
        %581 = vmatpush2.msra.mxu0 0.0
        %582 = vmatprep.mubr.f32.mxu0 0.0
        %583 = vmatmul.mubr.f32.gmra.mxu0 %v511
        %v584 = vpop.f32.mrf.mxu0
        %v585 = vadd.f32 0.0, %v584
        %v586 = vpop.f32.mrf.mxu0
        %587 = vmatprep.mubr.f32.mxu0 0.0
        %588 = vmatmul.mubr.f32.gmra.mxu0 %v513
        %v589 = vpop.f32.mrf.mxu0
        %v590 = vadd.f32 0.0, %v589
        %v591 = vpop.f32.mrf.mxu0
        %592 = vdwg.mxu0
        %v593 = vadd.f32 %v419, %v585
        %v594 = vadd.f32 %v420, %v590
        %s595 = scalar_lea.vmem %s3, 4
        %v596 = vld [vmem:[%s595] sm:$0xf]
        %v598 = vsel %vm340, %v596, 0
        %600 = vmatprep.subr.mxu0 0.0
        %601 = vmatpush1.msra.mxu0 0.0
        %602 = vmatprep.subr.mxu0 0.0
        %603 = vmatpush1.msra.mxu0 0.0
        %604 = vmatprep.subr.mxu0 0.0
        %605 = vmatpush1.msra.mxu0 0.0
        %606 = vmatprep.subr.mxu0 0.0
        %607 = vmatpush1.msra.mxu0 0.0
        %608 = vmatprep.subr.mxu0 0.0
        %609 = vmatpush1.msra.mxu0 0.0
        %610 = vmatprep.subr.mxu0 0.0
        %611 = vmatpush1.msra.mxu0 0.0
        %612 = vmatprep.subr.mxu0 0.0
        %613 = vmatpush1.msra.mxu0 0.0
        %614 = vmatprep.subr.mxu0 0.0
        %615 = vmatpush1.msra.mxu0 0.0
        %616 = vmatprep.subr.mxu0 0.0
        %617 = vmatpush1.msra.mxu0 0.0
        %618 = vmatprep.subr.mxu0 0.0
        %619 = vmatpush1.msra.mxu0 0.0
        %620 = vmatprep.subr.mxu0 0.0
        %621 = vmatpush1.msra.mxu0 0.0
        %622 = vmatprep.subr.mxu0 0.0
        %623 = vmatpush1.msra.mxu0 0.0
        %624 = vmatprep.subr.mxu0 0.0
        %625 = vmatpush1.msra.mxu0 0.0
        %626 = vmatprep.subr.mxu0 0.0
        %627 = vmatpush1.msra.mxu0 0.0
        %628 = vmatprep.subr.mxu0 0.0
        %629 = vmatpush1.msra.mxu0 0.0
        %630 = vmatprep.subr.mxu0 0.0
        %631 = vmatpush1.msra.mxu0 %v598
        %632 = vmatprep.subr.mxu0 0.0
        %633 = vmatpush2.msra.mxu0 0.0
        %634 = vmatprep.subr.mxu0 0.0
        %635 = vmatpush2.msra.mxu0 0.0
        %636 = vmatprep.subr.mxu0 0.0
        %637 = vmatpush2.msra.mxu0 0.0
        %638 = vmatprep.subr.mxu0 0.0
        %639 = vmatpush2.msra.mxu0 0.0
        %640 = vmatprep.subr.mxu0 0.0
        %641 = vmatpush2.msra.mxu0 0.0
        %642 = vmatprep.subr.mxu0 0.0
        %643 = vmatpush2.msra.mxu0 0.0
        %644 = vmatprep.subr.mxu0 0.0
        %645 = vmatpush2.msra.mxu0 0.0
        %646 = vmatprep.subr.mxu0 0.0
        %647 = vmatpush2.msra.mxu0 0.0
        %648 = vmatprep.subr.mxu0 0.0
        %649 = vmatpush2.msra.mxu0 0.0
        %650 = vmatprep.subr.mxu0 0.0
        %651 = vmatpush2.msra.mxu0 0.0
        %652 = vmatprep.subr.mxu0 0.0
        %653 = vmatpush2.msra.mxu0 0.0
        %654 = vmatprep.subr.mxu0 0.0
        %655 = vmatpush2.msra.mxu0 0.0
        %656 = vmatprep.subr.mxu0 0.0
        %657 = vmatpush2.msra.mxu0 0.0
        %658 = vmatprep.subr.mxu0 0.0
        %659 = vmatpush2.msra.mxu0 0.0
        %660 = vmatprep.subr.mxu0 0.0
        %661 = vmatpush2.msra.mxu0 0.0
        %662 = vmatprep.subr.mxu0 0.0
        %663 = vmatpush2.msra.mxu0 0.0
        %664 = vmatprep.mubr.f32.mxu0 0.0
        %665 = vmatmul.mubr.f32.gmra.mxu0 %v511
        %v666 = vpop.f32.mrf.mxu0
        %v667 = vadd.f32 0.0, %v666
        %v668 = vpop.f32.mrf.mxu0
        %669 = vmatprep.mubr.f32.mxu0 0.0
        %670 = vmatmul.mubr.f32.gmra.mxu0 %v513
        %v671 = vpop.f32.mrf.mxu0
        %v672 = vadd.f32 0.0, %v671
        %v673 = vpop.f32.mrf.mxu0
        %674 = vdwg.mxu0
        %v675 = vadd.f32 %v500, %v667
        %v676 = vadd.f32 %v501, %v672
        %s677 = scalar_lea.vmem %s1, 8
        %v678 = vld [vmem:[%s677] sm:$0xf]
        %vm679 = vcmask 1045504
        %v680 = vrot.slane %v329, 2
        %v681 = vrot.slane %v330, 2
        %v682 = vsel %vm679, %v680, %v681
        %v683 = vrot.slane %v331, 2
        %v684 = vsel %vm679, %v681, %v683
        %v685 = vsel %vm333, %v682, 0
        %v687 = vsel %vm333, %v684, 0
        %v690 = vsel %vm340, %v678, 0
        %692 = vmatprep.subr.mxu0 0.0
        %693 = vmatpush1.msra.mxu0 0.0
        %694 = vmatprep.subr.mxu0 0.0
        %695 = vmatpush1.msra.mxu0 0.0
        %696 = vmatprep.subr.mxu0 0.0
        %697 = vmatpush1.msra.mxu0 0.0
        %698 = vmatprep.subr.mxu0 0.0
        %699 = vmatpush1.msra.mxu0 0.0
        %700 = vmatprep.subr.mxu0 0.0
        %701 = vmatpush1.msra.mxu0 0.0
        %702 = vmatprep.subr.mxu0 0.0
        %703 = vmatpush1.msra.mxu0 0.0
        %704 = vmatprep.subr.mxu0 0.0
        %705 = vmatpush1.msra.mxu0 0.0
        %706 = vmatprep.subr.mxu0 0.0
        %707 = vmatpush1.msra.mxu0 0.0
        %708 = vmatprep.subr.mxu0 0.0
        %709 = vmatpush1.msra.mxu0 0.0
        %710 = vmatprep.subr.mxu0 0.0
        %711 = vmatpush1.msra.mxu0 0.0
        %712 = vmatprep.subr.mxu0 0.0
        %713 = vmatpush1.msra.mxu0 0.0
        %714 = vmatprep.subr.mxu0 0.0
        %715 = vmatpush1.msra.mxu0 0.0
        %716 = vmatprep.subr.mxu0 0.0
        %717 = vmatpush1.msra.mxu0 0.0
        %718 = vmatprep.subr.mxu0 0.0
        %719 = vmatpush1.msra.mxu0 0.0
        %720 = vmatprep.subr.mxu0 0.0
        %721 = vmatpush1.msra.mxu0 0.0
        %722 = vmatprep.subr.mxu0 0.0
        %723 = vmatpush1.msra.mxu0 %v690
        %724 = vmatprep.subr.mxu0 0.0
        %725 = vmatpush2.msra.mxu0 0.0
        %726 = vmatprep.subr.mxu0 0.0
        %727 = vmatpush2.msra.mxu0 0.0
        %728 = vmatprep.subr.mxu0 0.0
        %729 = vmatpush2.msra.mxu0 0.0
        %730 = vmatprep.subr.mxu0 0.0
        %731 = vmatpush2.msra.mxu0 0.0
        %732 = vmatprep.subr.mxu0 0.0
        %733 = vmatpush2.msra.mxu0 0.0
        %734 = vmatprep.subr.mxu0 0.0
        %735 = vmatpush2.msra.mxu0 0.0
        %736 = vmatprep.subr.mxu0 0.0
        %737 = vmatpush2.msra.mxu0 0.0
        %738 = vmatprep.subr.mxu0 0.0
        %739 = vmatpush2.msra.mxu0 0.0
        %740 = vmatprep.subr.mxu0 0.0
        %741 = vmatpush2.msra.mxu0 0.0
        %742 = vmatprep.subr.mxu0 0.0
        %743 = vmatpush2.msra.mxu0 0.0
        %744 = vmatprep.subr.mxu0 0.0
        %745 = vmatpush2.msra.mxu0 0.0
        %746 = vmatprep.subr.mxu0 0.0
        %747 = vmatpush2.msra.mxu0 0.0
        %748 = vmatprep.subr.mxu0 0.0
        %749 = vmatpush2.msra.mxu0 0.0
        %750 = vmatprep.subr.mxu0 0.0
        %751 = vmatpush2.msra.mxu0 0.0
        %752 = vmatprep.subr.mxu0 0.0
        %753 = vmatpush2.msra.mxu0 0.0
        %754 = vmatprep.subr.mxu0 0.0
        %755 = vmatpush2.msra.mxu0 0.0
        %756 = vmatprep.mubr.f32.mxu0 0.0
        %757 = vmatmul.mubr.f32.gmra.mxu0 %v685
        %v758 = vpop.f32.mrf.mxu0
        %v759 = vadd.f32 0.0, %v758
        %v760 = vpop.f32.mrf.mxu0
        %761 = vmatprep.mubr.f32.mxu0 0.0
        %762 = vmatmul.mubr.f32.gmra.mxu0 %v687
        %v763 = vpop.f32.mrf.mxu0
        %v764 = vadd.f32 0.0, %v763
        %v765 = vpop.f32.mrf.mxu0
        %766 = vdwg.mxu0
        %v767 = vadd.f32 %v593, %v759
        %v768 = vadd.f32 %v594, %v764
        %s769 = scalar_lea.vmem %s3, 8
        %v770 = vld [vmem:[%s769] sm:$0xf]
        %v772 = vsel %vm340, %v770, 0
        %774 = vmatprep.subr.mxu0 0.0
        %775 = vmatpush1.msra.mxu0 0.0
        %776 = vmatprep.subr.mxu0 0.0
        %777 = vmatpush1.msra.mxu0 0.0
        %778 = vmatprep.subr.mxu0 0.0
        %779 = vmatpush1.msra.mxu0 0.0
        %780 = vmatprep.subr.mxu0 0.0
        %781 = vmatpush1.msra.mxu0 0.0
        %782 = vmatprep.subr.mxu0 0.0
        %783 = vmatpush1.msra.mxu0 0.0
        %784 = vmatprep.subr.mxu0 0.0
        %785 = vmatpush1.msra.mxu0 0.0
        %786 = vmatprep.subr.mxu0 0.0
        %787 = vmatpush1.msra.mxu0 0.0
        %788 = vmatprep.subr.mxu0 0.0
        %789 = vmatpush1.msra.mxu0 0.0
        %790 = vmatprep.subr.mxu0 0.0
        %791 = vmatpush1.msra.mxu0 0.0
        %792 = vmatprep.subr.mxu0 0.0
        %793 = vmatpush1.msra.mxu0 0.0
        %794 = vmatprep.subr.mxu0 0.0
        %795 = vmatpush1.msra.mxu0 0.0
        %796 = vmatprep.subr.mxu0 0.0
        %797 = vmatpush1.msra.mxu0 0.0
        %798 = vmatprep.subr.mxu0 0.0
        %799 = vmatpush1.msra.mxu0 0.0
        %800 = vmatprep.subr.mxu0 0.0
        %801 = vmatpush1.msra.mxu0 0.0
        %802 = vmatprep.subr.mxu0 0.0
        %803 = vmatpush1.msra.mxu0 0.0
        %804 = vmatprep.subr.mxu0 0.0
        %805 = vmatpush1.msra.mxu0 %v772
        %806 = vmatprep.subr.mxu0 0.0
        %807 = vmatpush2.msra.mxu0 0.0
        %808 = vmatprep.subr.mxu0 0.0
        %809 = vmatpush2.msra.mxu0 0.0
        %810 = vmatprep.subr.mxu0 0.0
        %811 = vmatpush2.msra.mxu0 0.0
        %812 = vmatprep.subr.mxu0 0.0
        %813 = vmatpush2.msra.mxu0 0.0
        %814 = vmatprep.subr.mxu0 0.0
        %815 = vmatpush2.msra.mxu0 0.0
        %816 = vmatprep.subr.mxu0 0.0
        %817 = vmatpush2.msra.mxu0 0.0
        %818 = vmatprep.subr.mxu0 0.0
        %819 = vmatpush2.msra.mxu0 0.0
        %820 = vmatprep.subr.mxu0 0.0
        %821 = vmatpush2.msra.mxu0 0.0
        %822 = vmatprep.subr.mxu0 0.0
        %823 = vmatpush2.msra.mxu0 0.0
        %824 = vmatprep.subr.mxu0 0.0
        %825 = vmatpush2.msra.mxu0 0.0
        %826 = vmatprep.subr.mxu0 0.0
        %827 = vmatpush2.msra.mxu0 0.0
        %828 = vmatprep.subr.mxu0 0.0
        %829 = vmatpush2.msra.mxu0 0.0
        %830 = vmatprep.subr.mxu0 0.0
        %831 = vmatpush2.msra.mxu0 0.0
        %832 = vmatprep.subr.mxu0 0.0
        %833 = vmatpush2.msra.mxu0 0.0
        %834 = vmatprep.subr.mxu0 0.0
        %835 = vmatpush2.msra.mxu0 0.0
        %836 = vmatprep.subr.mxu0 0.0
        %837 = vmatpush2.msra.mxu0 0.0
        %838 = vmatprep.mubr.f32.mxu0 0.0
        %839 = vmatmul.mubr.f32.gmra.mxu0 %v685
        %v840 = vpop.f32.mrf.mxu0
        %v841 = vadd.f32 0.0, %v840
        %v842 = vpop.f32.mrf.mxu0
        %843 = vmatprep.mubr.f32.mxu0 0.0
        %844 = vmatmul.mubr.f32.gmra.mxu0 %v687
        %v845 = vpop.f32.mrf.mxu0
        %v846 = vadd.f32 0.0, %v845
        %v847 = vpop.f32.mrf.mxu0
        %848 = vdwg.mxu0
        %v849 = vadd.f32 %v675, %v841
        %v850 = vadd.f32 %v676, %v846
        %s851 = sadd.s32 %s326, 1
        %s852 = smul.u32 %s851, 24
        %s853 = scalar_lea.vmem %s280, %s852
        %v854 = vld [vmem:[%s853] sm:$0xff]
        %v855 = vld [vmem:[%s853 + $0x8] sm:$0xff]
        %v856 = vld [vmem:[%s853 + $0x10] sm:$0x3]
        %s857 = scalar_lea.vmem %s1, 12
        %v858 = vld [vmem:[%s857] sm:$0xf]
        %v860 = vsel %vm333, %v854, 0
        %v863 = vsel %vm333, %v855, 0
        %v866 = vsel %vm340, %v858, 0
        %868 = vmatprep.subr.mxu0 0.0
        %869 = vmatpush1.msra.mxu0 0.0
        %870 = vmatprep.subr.mxu0 0.0
        %871 = vmatpush1.msra.mxu0 0.0
        %872 = vmatprep.subr.mxu0 0.0
        %873 = vmatpush1.msra.mxu0 0.0
        %874 = vmatprep.subr.mxu0 0.0
        %875 = vmatpush1.msra.mxu0 0.0
        %876 = vmatprep.subr.mxu0 0.0
        %877 = vmatpush1.msra.mxu0 0.0
        %878 = vmatprep.subr.mxu0 0.0
        %879 = vmatpush1.msra.mxu0 0.0
        %880 = vmatprep.subr.mxu0 0.0
        %881 = vmatpush1.msra.mxu0 0.0
        %882 = vmatprep.subr.mxu0 0.0
        %883 = vmatpush1.msra.mxu0 0.0
        %884 = vmatprep.subr.mxu0 0.0
        %885 = vmatpush1.msra.mxu0 0.0
        %886 = vmatprep.subr.mxu0 0.0
        %887 = vmatpush1.msra.mxu0 0.0
        %888 = vmatprep.subr.mxu0 0.0
        %889 = vmatpush1.msra.mxu0 0.0
        %890 = vmatprep.subr.mxu0 0.0
        %891 = vmatpush1.msra.mxu0 0.0
        %892 = vmatprep.subr.mxu0 0.0
        %893 = vmatpush1.msra.mxu0 0.0
        %894 = vmatprep.subr.mxu0 0.0
        %895 = vmatpush1.msra.mxu0 0.0
        %896 = vmatprep.subr.mxu0 0.0
        %897 = vmatpush1.msra.mxu0 0.0
        %898 = vmatprep.subr.mxu0 0.0
        %899 = vmatpush1.msra.mxu0 %v866
        %900 = vmatprep.subr.mxu0 0.0
        %901 = vmatpush2.msra.mxu0 0.0
        %902 = vmatprep.subr.mxu0 0.0
        %903 = vmatpush2.msra.mxu0 0.0
        %904 = vmatprep.subr.mxu0 0.0
        %905 = vmatpush2.msra.mxu0 0.0
        %906 = vmatprep.subr.mxu0 0.0
        %907 = vmatpush2.msra.mxu0 0.0
        %908 = vmatprep.subr.mxu0 0.0
        %909 = vmatpush2.msra.mxu0 0.0
        %910 = vmatprep.subr.mxu0 0.0
        %911 = vmatpush2.msra.mxu0 0.0
        %912 = vmatprep.subr.mxu0 0.0
        %913 = vmatpush2.msra.mxu0 0.0
        %914 = vmatprep.subr.mxu0 0.0
        %915 = vmatpush2.msra.mxu0 0.0
        %916 = vmatprep.subr.mxu0 0.0
        %917 = vmatpush2.msra.mxu0 0.0
        %918 = vmatprep.subr.mxu0 0.0
        %919 = vmatpush2.msra.mxu0 0.0
        %920 = vmatprep.subr.mxu0 0.0
        %921 = vmatpush2.msra.mxu0 0.0
        %922 = vmatprep.subr.mxu0 0.0
        %923 = vmatpush2.msra.mxu0 0.0
        %924 = vmatprep.subr.mxu0 0.0
        %925 = vmatpush2.msra.mxu0 0.0
        %926 = vmatprep.subr.mxu0 0.0
        %927 = vmatpush2.msra.mxu0 0.0
        %928 = vmatprep.subr.mxu0 0.0
        %929 = vmatpush2.msra.mxu0 0.0
        %930 = vmatprep.subr.mxu0 0.0
        %931 = vmatpush2.msra.mxu0 0.0
        %932 = vmatprep.mubr.f32.mxu0 0.0
        %933 = vmatmul.mubr.f32.gmra.mxu0 %v860
        %v934 = vpop.f32.mrf.mxu0
        %v935 = vadd.f32 0.0, %v934
        %v936 = vpop.f32.mrf.mxu0
        %937 = vmatprep.mubr.f32.mxu0 0.0
        %938 = vmatmul.mubr.f32.gmra.mxu0 %v863
        %v939 = vpop.f32.mrf.mxu0
        %v940 = vadd.f32 0.0, %v939
        %v941 = vpop.f32.mrf.mxu0
        %942 = vdwg.mxu0
        %v943 = vadd.f32 %v767, %v935
        %v944 = vadd.f32 %v768, %v940
        %s945 = scalar_lea.vmem %s3, 12
        %v946 = vld [vmem:[%s945] sm:$0xf]
        %v948 = vsel %vm340, %v946, 0
        %950 = vmatprep.subr.mxu0 0.0
        %951 = vmatpush1.msra.mxu0 0.0
        %952 = vmatprep.subr.mxu0 0.0
        %953 = vmatpush1.msra.mxu0 0.0
        %954 = vmatprep.subr.mxu0 0.0
        %955 = vmatpush1.msra.mxu0 0.0
        %956 = vmatprep.subr.mxu0 0.0
        %957 = vmatpush1.msra.mxu0 0.0
        %958 = vmatprep.subr.mxu0 0.0
        %959 = vmatpush1.msra.mxu0 0.0
        %960 = vmatprep.subr.mxu0 0.0
        %961 = vmatpush1.msra.mxu0 0.0
        %962 = vmatprep.subr.mxu0 0.0
        %963 = vmatpush1.msra.mxu0 0.0
        %964 = vmatprep.subr.mxu0 0.0
        %965 = vmatpush1.msra.mxu0 0.0
        %966 = vmatprep.subr.mxu0 0.0
        %967 = vmatpush1.msra.mxu0 0.0
        %968 = vmatprep.subr.mxu0 0.0
        %969 = vmatpush1.msra.mxu0 0.0
        %970 = vmatprep.subr.mxu0 0.0
        %971 = vmatpush1.msra.mxu0 0.0
        %972 = vmatprep.subr.mxu0 0.0
        %973 = vmatpush1.msra.mxu0 0.0
        %974 = vmatprep.subr.mxu0 0.0
        %975 = vmatpush1.msra.mxu0 0.0
        %976 = vmatprep.subr.mxu0 0.0
        %977 = vmatpush1.msra.mxu0 0.0
        %978 = vmatprep.subr.mxu0 0.0
        %979 = vmatpush1.msra.mxu0 0.0
        %980 = vmatprep.subr.mxu0 0.0
        %981 = vmatpush1.msra.mxu0 %v948
        %982 = vmatprep.subr.mxu0 0.0
        %983 = vmatpush2.msra.mxu0 0.0
        %984 = vmatprep.subr.mxu0 0.0
        %985 = vmatpush2.msra.mxu0 0.0
        %986 = vmatprep.subr.mxu0 0.0
        %987 = vmatpush2.msra.mxu0 0.0
        %988 = vmatprep.subr.mxu0 0.0
        %989 = vmatpush2.msra.mxu0 0.0
        %990 = vmatprep.subr.mxu0 0.0
        %991 = vmatpush2.msra.mxu0 0.0
        %992 = vmatprep.subr.mxu0 0.0
        %993 = vmatpush2.msra.mxu0 0.0
        %994 = vmatprep.subr.mxu0 0.0
        %995 = vmatpush2.msra.mxu0 0.0
        %996 = vmatprep.subr.mxu0 0.0
        %997 = vmatpush2.msra.mxu0 0.0
        %998 = vmatprep.subr.mxu0 0.0
        %999 = vmatpush2.msra.mxu0 0.0
        %1000 = vmatprep.subr.mxu0 0.0
        %1001 = vmatpush2.msra.mxu0 0.0
        %1002 = vmatprep.subr.mxu0 0.0
        %1003 = vmatpush2.msra.mxu0 0.0
        %1004 = vmatprep.subr.mxu0 0.0
        %1005 = vmatpush2.msra.mxu0 0.0
        %1006 = vmatprep.subr.mxu0 0.0
        %1007 = vmatpush2.msra.mxu0 0.0
        %1008 = vmatprep.subr.mxu0 0.0
        %1009 = vmatpush2.msra.mxu0 0.0
        %1010 = vmatprep.subr.mxu0 0.0
        %1011 = vmatpush2.msra.mxu0 0.0
        %1012 = vmatprep.subr.mxu0 0.0
        %1013 = vmatpush2.msra.mxu0 0.0
        %1014 = vmatprep.mubr.f32.mxu0 0.0
        %1015 = vmatmul.mubr.f32.gmra.mxu0 %v860
        %v1016 = vpop.f32.mrf.mxu0
        %v1017 = vadd.f32 0.0, %v1016
        %v1018 = vpop.f32.mrf.mxu0
        %1019 = vmatprep.mubr.f32.mxu0 0.0
        %1020 = vmatmul.mubr.f32.gmra.mxu0 %v863
        %v1021 = vpop.f32.mrf.mxu0
        %v1022 = vadd.f32 0.0, %v1021
        %v1023 = vpop.f32.mrf.mxu0
        %1024 = vdwg.mxu0
        %v1025 = vadd.f32 %v849, %v1017
        %v1026 = vadd.f32 %v850, %v1022
        %s1027 = scalar_lea.vmem %s1, 16
        %v1028 = vld [vmem:[%s1027] sm:$0xf]
        %v1030 = vrot.slane %v854, 1
        %v1031 = vrot.slane %v855, 1
        %v1032 = vsel %vm505, %v1030, %v1031
        %v1033 = vrot.slane %v856, 1
        %v1034 = vsel %vm505, %v1031, %v1033
        %v1035 = vsel %vm333, %v1032, 0
        %v1037 = vsel %vm333, %v1034, 0
        %v1040 = vsel %vm340, %v1028, 0
        %1042 = vmatprep.subr.mxu0 0.0
        %1043 = vmatpush1.msra.mxu0 0.0
        %1044 = vmatprep.subr.mxu0 0.0
        %1045 = vmatpush1.msra.mxu0 0.0
        %1046 = vmatprep.subr.mxu0 0.0
        %1047 = vmatpush1.msra.mxu0 0.0
        %1048 = vmatprep.subr.mxu0 0.0
        %1049 = vmatpush1.msra.mxu0 0.0
        %1050 = vmatprep.subr.mxu0 0.0
        %1051 = vmatpush1.msra.mxu0 0.0
        %1052 = vmatprep.subr.mxu0 0.0
        %1053 = vmatpush1.msra.mxu0 0.0
        %1054 = vmatprep.subr.mxu0 0.0
        %1055 = vmatpush1.msra.mxu0 0.0
        %1056 = vmatprep.subr.mxu0 0.0
        %1057 = vmatpush1.msra.mxu0 0.0
        %1058 = vmatprep.subr.mxu0 0.0
        %1059 = vmatpush1.msra.mxu0 0.0
        %1060 = vmatprep.subr.mxu0 0.0
        %1061 = vmatpush1.msra.mxu0 0.0
        %1062 = vmatprep.subr.mxu0 0.0
        %1063 = vmatpush1.msra.mxu0 0.0
        %1064 = vmatprep.subr.mxu0 0.0
        %1065 = vmatpush1.msra.mxu0 0.0
        %1066 = vmatprep.subr.mxu0 0.0
        %1067 = vmatpush1.msra.mxu0 0.0
        %1068 = vmatprep.subr.mxu0 0.0
        %1069 = vmatpush1.msra.mxu0 0.0
        %1070 = vmatprep.subr.mxu0 0.0
        %1071 = vmatpush1.msra.mxu0 0.0
        %1072 = vmatprep.subr.mxu0 0.0
        %1073 = vmatpush1.msra.mxu0 %v1040
        %1074 = vmatprep.subr.mxu0 0.0
        %1075 = vmatpush2.msra.mxu0 0.0
        %1076 = vmatprep.subr.mxu0 0.0
        %1077 = vmatpush2.msra.mxu0 0.0
        %1078 = vmatprep.subr.mxu0 0.0
        %1079 = vmatpush2.msra.mxu0 0.0
        %1080 = vmatprep.subr.mxu0 0.0
        %1081 = vmatpush2.msra.mxu0 0.0
        %1082 = vmatprep.subr.mxu0 0.0
        %1083 = vmatpush2.msra.mxu0 0.0
        %1084 = vmatprep.subr.mxu0 0.0
        %1085 = vmatpush2.msra.mxu0 0.0
        %1086 = vmatprep.subr.mxu0 0.0
        %1087 = vmatpush2.msra.mxu0 0.0
        %1088 = vmatprep.subr.mxu0 0.0
        %1089 = vmatpush2.msra.mxu0 0.0
        %1090 = vmatprep.subr.mxu0 0.0
        %1091 = vmatpush2.msra.mxu0 0.0
        %1092 = vmatprep.subr.mxu0 0.0
        %1093 = vmatpush2.msra.mxu0 0.0
        %1094 = vmatprep.subr.mxu0 0.0
        %1095 = vmatpush2.msra.mxu0 0.0
        %1096 = vmatprep.subr.mxu0 0.0
        %1097 = vmatpush2.msra.mxu0 0.0
        %1098 = vmatprep.subr.mxu0 0.0
        %1099 = vmatpush2.msra.mxu0 0.0
        %1100 = vmatprep.subr.mxu0 0.0
        %1101 = vmatpush2.msra.mxu0 0.0
        %1102 = vmatprep.subr.mxu0 0.0
        %1103 = vmatpush2.msra.mxu0 0.0
        %1104 = vmatprep.subr.mxu0 0.0
        %1105 = vmatpush2.msra.mxu0 0.0
        %1106 = vmatprep.mubr.f32.mxu0 0.0
        %1107 = vmatmul.mubr.f32.gmra.mxu0 %v1035
        %v1108 = vpop.f32.mrf.mxu0
        %v1109 = vadd.f32 0.0, %v1108
        %v1110 = vpop.f32.mrf.mxu0
        %1111 = vmatprep.mubr.f32.mxu0 0.0
        %1112 = vmatmul.mubr.f32.gmra.mxu0 %v1037
        %v1113 = vpop.f32.mrf.mxu0
        %v1114 = vadd.f32 0.0, %v1113
        %v1115 = vpop.f32.mrf.mxu0
        %1116 = vdwg.mxu0
        %v1117 = vadd.f32 %v943, %v1109
        %v1118 = vadd.f32 %v944, %v1114
        %s1119 = scalar_lea.vmem %s3, 16
        %v1120 = vld [vmem:[%s1119] sm:$0xf]
        %v1122 = vsel %vm340, %v1120, 0
        %1124 = vmatprep.subr.mxu0 0.0
        %1125 = vmatpush1.msra.mxu0 0.0
        %1126 = vmatprep.subr.mxu0 0.0
        %1127 = vmatpush1.msra.mxu0 0.0
        %1128 = vmatprep.subr.mxu0 0.0
        %1129 = vmatpush1.msra.mxu0 0.0
        %1130 = vmatprep.subr.mxu0 0.0
        %1131 = vmatpush1.msra.mxu0 0.0
        %1132 = vmatprep.subr.mxu0 0.0
        %1133 = vmatpush1.msra.mxu0 0.0
        %1134 = vmatprep.subr.mxu0 0.0
        %1135 = vmatpush1.msra.mxu0 0.0
        %1136 = vmatprep.subr.mxu0 0.0
        %1137 = vmatpush1.msra.mxu0 0.0
        %1138 = vmatprep.subr.mxu0 0.0
        %1139 = vmatpush1.msra.mxu0 0.0
        %1140 = vmatprep.subr.mxu0 0.0
        %1141 = vmatpush1.msra.mxu0 0.0
        %1142 = vmatprep.subr.mxu0 0.0
        %1143 = vmatpush1.msra.mxu0 0.0
        %1144 = vmatprep.subr.mxu0 0.0
        %1145 = vmatpush1.msra.mxu0 0.0
        %1146 = vmatprep.subr.mxu0 0.0
        %1147 = vmatpush1.msra.mxu0 0.0
        %1148 = vmatprep.subr.mxu0 0.0
        %1149 = vmatpush1.msra.mxu0 0.0
        %1150 = vmatprep.subr.mxu0 0.0
        %1151 = vmatpush1.msra.mxu0 0.0
        %1152 = vmatprep.subr.mxu0 0.0
        %1153 = vmatpush1.msra.mxu0 0.0
        %1154 = vmatprep.subr.mxu0 0.0
        %1155 = vmatpush1.msra.mxu0 %v1122
        %1156 = vmatprep.subr.mxu0 0.0
        %1157 = vmatpush2.msra.mxu0 0.0
        %1158 = vmatprep.subr.mxu0 0.0
        %1159 = vmatpush2.msra.mxu0 0.0
        %1160 = vmatprep.subr.mxu0 0.0
        %1161 = vmatpush2.msra.mxu0 0.0
        %1162 = vmatprep.subr.mxu0 0.0
        %1163 = vmatpush2.msra.mxu0 0.0
        %1164 = vmatprep.subr.mxu0 0.0
        %1165 = vmatpush2.msra.mxu0 0.0
        %1166 = vmatprep.subr.mxu0 0.0
        %1167 = vmatpush2.msra.mxu0 0.0
        %1168 = vmatprep.subr.mxu0 0.0
        %1169 = vmatpush2.msra.mxu0 0.0
        %1170 = vmatprep.subr.mxu0 0.0
        %1171 = vmatpush2.msra.mxu0 0.0
        %1172 = vmatprep.subr.mxu0 0.0
        %1173 = vmatpush2.msra.mxu0 0.0
        %1174 = vmatprep.subr.mxu0 0.0
        %1175 = vmatpush2.msra.mxu0 0.0
        %1176 = vmatprep.subr.mxu0 0.0
        %1177 = vmatpush2.msra.mxu0 0.0
        %1178 = vmatprep.subr.mxu0 0.0
        %1179 = vmatpush2.msra.mxu0 0.0
        %1180 = vmatprep.subr.mxu0 0.0
        %1181 = vmatpush2.msra.mxu0 0.0
        %1182 = vmatprep.subr.mxu0 0.0
        %1183 = vmatpush2.msra.mxu0 0.0
        %1184 = vmatprep.subr.mxu0 0.0
        %1185 = vmatpush2.msra.mxu0 0.0
        %1186 = vmatprep.subr.mxu0 0.0
        %1187 = vmatpush2.msra.mxu0 0.0
        %1188 = vmatprep.mubr.f32.mxu0 0.0
        %1189 = vmatmul.mubr.f32.gmra.mxu0 %v1035
        %v1190 = vpop.f32.mrf.mxu0
        %v1191 = vadd.f32 0.0, %v1190
        %v1192 = vpop.f32.mrf.mxu0
        %1193 = vmatprep.mubr.f32.mxu0 0.0
        %1194 = vmatmul.mubr.f32.gmra.mxu0 %v1037
        %v1195 = vpop.f32.mrf.mxu0
        %v1196 = vadd.f32 0.0, %v1195
        %v1197 = vpop.f32.mrf.mxu0
        %1198 = vdwg.mxu0
        %v1199 = vadd.f32 %v1025, %v1191
        %v1200 = vadd.f32 %v1026, %v1196
        %s1201 = scalar_lea.vmem %s1, 20
        %v1202 = vld [vmem:[%s1201] sm:$0xf]
        %v1203 = vrot.slane %v854, 2
        %v1204 = vrot.slane %v855, 2
        %v1205 = vsel %vm679, %v1203, %v1204
        %v1206 = vrot.slane %v856, 2
        %v1207 = vsel %vm679, %v1204, %v1206
        %v1208 = vsel %vm333, %v1205, 0
        %v1210 = vsel %vm333, %v1207, 0
        %v1213 = vsel %vm340, %v1202, 0
        %1215 = vmatprep.subr.mxu0 0.0
        %1216 = vmatpush1.msra.mxu0 0.0
        %1217 = vmatprep.subr.mxu0 0.0
        %1218 = vmatpush1.msra.mxu0 0.0
        %1219 = vmatprep.subr.mxu0 0.0
        %1220 = vmatpush1.msra.mxu0 0.0
        %1221 = vmatprep.subr.mxu0 0.0
        %1222 = vmatpush1.msra.mxu0 0.0
        %1223 = vmatprep.subr.mxu0 0.0
        %1224 = vmatpush1.msra.mxu0 0.0
        %1225 = vmatprep.subr.mxu0 0.0
        %1226 = vmatpush1.msra.mxu0 0.0
        %1227 = vmatprep.subr.mxu0 0.0
        %1228 = vmatpush1.msra.mxu0 0.0
        %1229 = vmatprep.subr.mxu0 0.0
        %1230 = vmatpush1.msra.mxu0 0.0
        %1231 = vmatprep.subr.mxu0 0.0
        %1232 = vmatpush1.msra.mxu0 0.0
        %1233 = vmatprep.subr.mxu0 0.0
        %1234 = vmatpush1.msra.mxu0 0.0
        %1235 = vmatprep.subr.mxu0 0.0
        %1236 = vmatpush1.msra.mxu0 0.0
        %1237 = vmatprep.subr.mxu0 0.0
        %1238 = vmatpush1.msra.mxu0 0.0
        %1239 = vmatprep.subr.mxu0 0.0
        %1240 = vmatpush1.msra.mxu0 0.0
        %1241 = vmatprep.subr.mxu0 0.0
        %1242 = vmatpush1.msra.mxu0 0.0
        %1243 = vmatprep.subr.mxu0 0.0
        %1244 = vmatpush1.msra.mxu0 0.0
        %1245 = vmatprep.subr.mxu0 0.0
        %1246 = vmatpush1.msra.mxu0 %v1213
        %1247 = vmatprep.subr.mxu0 0.0
        %1248 = vmatpush2.msra.mxu0 0.0
        %1249 = vmatprep.subr.mxu0 0.0
        %1250 = vmatpush2.msra.mxu0 0.0
        %1251 = vmatprep.subr.mxu0 0.0
        %1252 = vmatpush2.msra.mxu0 0.0
        %1253 = vmatprep.subr.mxu0 0.0
        %1254 = vmatpush2.msra.mxu0 0.0
        %1255 = vmatprep.subr.mxu0 0.0
        %1256 = vmatpush2.msra.mxu0 0.0
        %1257 = vmatprep.subr.mxu0 0.0
        %1258 = vmatpush2.msra.mxu0 0.0
        %1259 = vmatprep.subr.mxu0 0.0
        %1260 = vmatpush2.msra.mxu0 0.0
        %1261 = vmatprep.subr.mxu0 0.0
        %1262 = vmatpush2.msra.mxu0 0.0
        %1263 = vmatprep.subr.mxu0 0.0
        %1264 = vmatpush2.msra.mxu0 0.0
        %1265 = vmatprep.subr.mxu0 0.0
        %1266 = vmatpush2.msra.mxu0 0.0
        %1267 = vmatprep.subr.mxu0 0.0
        %1268 = vmatpush2.msra.mxu0 0.0
        %1269 = vmatprep.subr.mxu0 0.0
        %1270 = vmatpush2.msra.mxu0 0.0
        %1271 = vmatprep.subr.mxu0 0.0
        %1272 = vmatpush2.msra.mxu0 0.0
        %1273 = vmatprep.subr.mxu0 0.0
        %1274 = vmatpush2.msra.mxu0 0.0
        %1275 = vmatprep.subr.mxu0 0.0
        %1276 = vmatpush2.msra.mxu0 0.0
        %1277 = vmatprep.subr.mxu0 0.0
        %1278 = vmatpush2.msra.mxu0 0.0
        %1279 = vmatprep.mubr.f32.mxu0 0.0
        %1280 = vmatmul.mubr.f32.gmra.mxu0 %v1208
        %v1281 = vpop.f32.mrf.mxu0
        %v1282 = vadd.f32 0.0, %v1281
        %v1283 = vpop.f32.mrf.mxu0
        %1284 = vmatprep.mubr.f32.mxu0 0.0
        %1285 = vmatmul.mubr.f32.gmra.mxu0 %v1210
        %v1286 = vpop.f32.mrf.mxu0
        %v1287 = vadd.f32 0.0, %v1286
        %v1288 = vpop.f32.mrf.mxu0
        %1289 = vdwg.mxu0
        %v1290 = vadd.f32 %v1117, %v1282
        %v1291 = vadd.f32 %v1118, %v1287
        %s1292 = scalar_lea.vmem %s3, 20
        %v1293 = vld [vmem:[%s1292] sm:$0xf]
        %v1295 = vsel %vm340, %v1293, 0
        %1297 = vmatprep.subr.mxu0 0.0
        %1298 = vmatpush1.msra.mxu0 0.0
        %1299 = vmatprep.subr.mxu0 0.0
        %1300 = vmatpush1.msra.mxu0 0.0
        %1301 = vmatprep.subr.mxu0 0.0
        %1302 = vmatpush1.msra.mxu0 0.0
        %1303 = vmatprep.subr.mxu0 0.0
        %1304 = vmatpush1.msra.mxu0 0.0
        %1305 = vmatprep.subr.mxu0 0.0
        %1306 = vmatpush1.msra.mxu0 0.0
        %1307 = vmatprep.subr.mxu0 0.0
        %1308 = vmatpush1.msra.mxu0 0.0
        %1309 = vmatprep.subr.mxu0 0.0
        %1310 = vmatpush1.msra.mxu0 0.0
        %1311 = vmatprep.subr.mxu0 0.0
        %1312 = vmatpush1.msra.mxu0 0.0
        %1313 = vmatprep.subr.mxu0 0.0
        %1314 = vmatpush1.msra.mxu0 0.0
        %1315 = vmatprep.subr.mxu0 0.0
        %1316 = vmatpush1.msra.mxu0 0.0
        %1317 = vmatprep.subr.mxu0 0.0
        %1318 = vmatpush1.msra.mxu0 0.0
        %1319 = vmatprep.subr.mxu0 0.0
        %1320 = vmatpush1.msra.mxu0 0.0
        %1321 = vmatprep.subr.mxu0 0.0
        %1322 = vmatpush1.msra.mxu0 0.0
        %1323 = vmatprep.subr.mxu0 0.0
        %1324 = vmatpush1.msra.mxu0 0.0
        %1325 = vmatprep.subr.mxu0 0.0
        %1326 = vmatpush1.msra.mxu0 0.0
        %1327 = vmatprep.subr.mxu0 0.0
        %1328 = vmatpush1.msra.mxu0 %v1295
        %1329 = vmatprep.subr.mxu0 0.0
        %1330 = vmatpush2.msra.mxu0 0.0
        %1331 = vmatprep.subr.mxu0 0.0
        %1332 = vmatpush2.msra.mxu0 0.0
        %1333 = vmatprep.subr.mxu0 0.0
        %1334 = vmatpush2.msra.mxu0 0.0
        %1335 = vmatprep.subr.mxu0 0.0
        %1336 = vmatpush2.msra.mxu0 0.0
        %1337 = vmatprep.subr.mxu0 0.0
        %1338 = vmatpush2.msra.mxu0 0.0
        %1339 = vmatprep.subr.mxu0 0.0
        %1340 = vmatpush2.msra.mxu0 0.0
        %1341 = vmatprep.subr.mxu0 0.0
        %1342 = vmatpush2.msra.mxu0 0.0
        %1343 = vmatprep.subr.mxu0 0.0
        %1344 = vmatpush2.msra.mxu0 0.0
        %1345 = vmatprep.subr.mxu0 0.0
        %1346 = vmatpush2.msra.mxu0 0.0
        %1347 = vmatprep.subr.mxu0 0.0
        %1348 = vmatpush2.msra.mxu0 0.0
        %1349 = vmatprep.subr.mxu0 0.0
        %1350 = vmatpush2.msra.mxu0 0.0
        %1351 = vmatprep.subr.mxu0 0.0
        %1352 = vmatpush2.msra.mxu0 0.0
        %1353 = vmatprep.subr.mxu0 0.0
        %1354 = vmatpush2.msra.mxu0 0.0
        %1355 = vmatprep.subr.mxu0 0.0
        %1356 = vmatpush2.msra.mxu0 0.0
        %1357 = vmatprep.subr.mxu0 0.0
        %1358 = vmatpush2.msra.mxu0 0.0
        %1359 = vmatprep.subr.mxu0 0.0
        %1360 = vmatpush2.msra.mxu0 0.0
        %1361 = vmatprep.mubr.f32.mxu0 0.0
        %1362 = vmatmul.mubr.f32.gmra.mxu0 %v1208
        %v1363 = vpop.f32.mrf.mxu0
        %v1364 = vadd.f32 0.0, %v1363
        %v1365 = vpop.f32.mrf.mxu0
        %1366 = vmatprep.mubr.f32.mxu0 0.0
        %1367 = vmatmul.mubr.f32.gmra.mxu0 %v1210
        %v1368 = vpop.f32.mrf.mxu0
        %v1369 = vadd.f32 0.0, %v1368
        %v1370 = vpop.f32.mrf.mxu0
        %1371 = vdwg.mxu0
        %v1372 = vadd.f32 %v1199, %v1364
        %v1373 = vadd.f32 %v1200, %v1369
        %s1374 = sadd.s32 %s326, 2
        %s1375 = smul.u32 %s1374, 24
        %s1376 = scalar_lea.vmem %s280, %s1375
        %v1377 = vld [vmem:[%s1376] sm:$0xff]
        %v1378 = vld [vmem:[%s1376 + $0x8] sm:$0xff]
        %v1379 = vld [vmem:[%s1376 + $0x10] sm:$0x3]
        %s1380 = scalar_lea.vmem %s1, 24
        %v1381 = vld [vmem:[%s1380] sm:$0xf]
        %v1383 = vsel %vm333, %v1377, 0
        %v1386 = vsel %vm333, %v1378, 0
        %v1389 = vsel %vm340, %v1381, 0
        %1391 = vmatprep.subr.mxu0 0.0
        %1392 = vmatpush1.msra.mxu0 0.0
        %1393 = vmatprep.subr.mxu0 0.0
        %1394 = vmatpush1.msra.mxu0 0.0
        %1395 = vmatprep.subr.mxu0 0.0
        %1396 = vmatpush1.msra.mxu0 0.0
        %1397 = vmatprep.subr.mxu0 0.0
        %1398 = vmatpush1.msra.mxu0 0.0
        %1399 = vmatprep.subr.mxu0 0.0
        %1400 = vmatpush1.msra.mxu0 0.0
        %1401 = vmatprep.subr.mxu0 0.0
        %1402 = vmatpush1.msra.mxu0 0.0
        %1403 = vmatprep.subr.mxu0 0.0
        %1404 = vmatpush1.msra.mxu0 0.0
        %1405 = vmatprep.subr.mxu0 0.0
        %1406 = vmatpush1.msra.mxu0 0.0
        %1407 = vmatprep.subr.mxu0 0.0
        %1408 = vmatpush1.msra.mxu0 0.0
        %1409 = vmatprep.subr.mxu0 0.0
        %1410 = vmatpush1.msra.mxu0 0.0
        %1411 = vmatprep.subr.mxu0 0.0
        %1412 = vmatpush1.msra.mxu0 0.0
        %1413 = vmatprep.subr.mxu0 0.0
        %1414 = vmatpush1.msra.mxu0 0.0
        %1415 = vmatprep.subr.mxu0 0.0
        %1416 = vmatpush1.msra.mxu0 0.0
        %1417 = vmatprep.subr.mxu0 0.0
        %1418 = vmatpush1.msra.mxu0 0.0
        %1419 = vmatprep.subr.mxu0 0.0
        %1420 = vmatpush1.msra.mxu0 0.0
        %1421 = vmatprep.subr.mxu0 0.0
        %1422 = vmatpush1.msra.mxu0 %v1389
        %1423 = vmatprep.subr.mxu0 0.0
        %1424 = vmatpush2.msra.mxu0 0.0
        %1425 = vmatprep.subr.mxu0 0.0
        %1426 = vmatpush2.msra.mxu0 0.0
        %1427 = vmatprep.subr.mxu0 0.0
        %1428 = vmatpush2.msra.mxu0 0.0
        %1429 = vmatprep.subr.mxu0 0.0
        %1430 = vmatpush2.msra.mxu0 0.0
        %1431 = vmatprep.subr.mxu0 0.0
        %1432 = vmatpush2.msra.mxu0 0.0
        %1433 = vmatprep.subr.mxu0 0.0
        %1434 = vmatpush2.msra.mxu0 0.0
        %1435 = vmatprep.subr.mxu0 0.0
        %1436 = vmatpush2.msra.mxu0 0.0
        %1437 = vmatprep.subr.mxu0 0.0
        %1438 = vmatpush2.msra.mxu0 0.0
        %1439 = vmatprep.subr.mxu0 0.0
        %1440 = vmatpush2.msra.mxu0 0.0
        %1441 = vmatprep.subr.mxu0 0.0
        %1442 = vmatpush2.msra.mxu0 0.0
        %1443 = vmatprep.subr.mxu0 0.0
        %1444 = vmatpush2.msra.mxu0 0.0
        %1445 = vmatprep.subr.mxu0 0.0
        %1446 = vmatpush2.msra.mxu0 0.0
        %1447 = vmatprep.subr.mxu0 0.0
        %1448 = vmatpush2.msra.mxu0 0.0
        %1449 = vmatprep.subr.mxu0 0.0
        %1450 = vmatpush2.msra.mxu0 0.0
        %1451 = vmatprep.subr.mxu0 0.0
        %1452 = vmatpush2.msra.mxu0 0.0
        %1453 = vmatprep.subr.mxu0 0.0
        %1454 = vmatpush2.msra.mxu0 0.0
        %1455 = vmatprep.mubr.f32.mxu0 0.0
        %1456 = vmatmul.mubr.f32.gmra.mxu0 %v1383
        %v1457 = vpop.f32.mrf.mxu0
        %v1458 = vadd.f32 0.0, %v1457
        %v1459 = vpop.f32.mrf.mxu0
        %1460 = vmatprep.mubr.f32.mxu0 0.0
        %1461 = vmatmul.mubr.f32.gmra.mxu0 %v1386
        %v1462 = vpop.f32.mrf.mxu0
        %v1463 = vadd.f32 0.0, %v1462
        %v1464 = vpop.f32.mrf.mxu0
        %1465 = vdwg.mxu0
        %v1466 = vadd.f32 %v1290, %v1458
        %v1467 = vadd.f32 %v1291, %v1463
        %s1468 = scalar_lea.vmem %s3, 24
        %v1469 = vld [vmem:[%s1468] sm:$0xf]
        %v1471 = vsel %vm340, %v1469, 0
        %1473 = vmatprep.subr.mxu0 0.0
        %1474 = vmatpush1.msra.mxu0 0.0
        %1475 = vmatprep.subr.mxu0 0.0
        %1476 = vmatpush1.msra.mxu0 0.0
        %1477 = vmatprep.subr.mxu0 0.0
        %1478 = vmatpush1.msra.mxu0 0.0
        %1479 = vmatprep.subr.mxu0 0.0
        %1480 = vmatpush1.msra.mxu0 0.0
        %1481 = vmatprep.subr.mxu0 0.0
        %1482 = vmatpush1.msra.mxu0 0.0
        %1483 = vmatprep.subr.mxu0 0.0
        %1484 = vmatpush1.msra.mxu0 0.0
        %1485 = vmatprep.subr.mxu0 0.0
        %1486 = vmatpush1.msra.mxu0 0.0
        %1487 = vmatprep.subr.mxu0 0.0
        %1488 = vmatpush1.msra.mxu0 0.0
        %1489 = vmatprep.subr.mxu0 0.0
        %1490 = vmatpush1.msra.mxu0 0.0
        %1491 = vmatprep.subr.mxu0 0.0
        %1492 = vmatpush1.msra.mxu0 0.0
        %1493 = vmatprep.subr.mxu0 0.0
        %1494 = vmatpush1.msra.mxu0 0.0
        %1495 = vmatprep.subr.mxu0 0.0
        %1496 = vmatpush1.msra.mxu0 0.0
        %1497 = vmatprep.subr.mxu0 0.0
        %1498 = vmatpush1.msra.mxu0 0.0
        %1499 = vmatprep.subr.mxu0 0.0
        %1500 = vmatpush1.msra.mxu0 0.0
        %1501 = vmatprep.subr.mxu0 0.0
        %1502 = vmatpush1.msra.mxu0 0.0
        %1503 = vmatprep.subr.mxu0 0.0
        %1504 = vmatpush1.msra.mxu0 %v1471
        %1505 = vmatprep.subr.mxu0 0.0
        %1506 = vmatpush2.msra.mxu0 0.0
        %1507 = vmatprep.subr.mxu0 0.0
        %1508 = vmatpush2.msra.mxu0 0.0
        %1509 = vmatprep.subr.mxu0 0.0
        %1510 = vmatpush2.msra.mxu0 0.0
        %1511 = vmatprep.subr.mxu0 0.0
        %1512 = vmatpush2.msra.mxu0 0.0
        %1513 = vmatprep.subr.mxu0 0.0
        %1514 = vmatpush2.msra.mxu0 0.0
        %1515 = vmatprep.subr.mxu0 0.0
        %1516 = vmatpush2.msra.mxu0 0.0
        %1517 = vmatprep.subr.mxu0 0.0
        %1518 = vmatpush2.msra.mxu0 0.0
        %1519 = vmatprep.subr.mxu0 0.0
        %1520 = vmatpush2.msra.mxu0 0.0
        %1521 = vmatprep.subr.mxu0 0.0
        %1522 = vmatpush2.msra.mxu0 0.0
        %1523 = vmatprep.subr.mxu0 0.0
        %1524 = vmatpush2.msra.mxu0 0.0
        %1525 = vmatprep.subr.mxu0 0.0
        %1526 = vmatpush2.msra.mxu0 0.0
        %1527 = vmatprep.subr.mxu0 0.0
        %1528 = vmatpush2.msra.mxu0 0.0
        %1529 = vmatprep.subr.mxu0 0.0
        %1530 = vmatpush2.msra.mxu0 0.0
        %1531 = vmatprep.subr.mxu0 0.0
        %1532 = vmatpush2.msra.mxu0 0.0
        %1533 = vmatprep.subr.mxu0 0.0
        %1534 = vmatpush2.msra.mxu0 0.0
        %1535 = vmatprep.subr.mxu0 0.0
        %1536 = vmatpush2.msra.mxu0 0.0
        %1537 = vmatprep.mubr.f32.mxu0 0.0
        %1538 = vmatmul.mubr.f32.gmra.mxu0 %v1383
        %v1539 = vpop.f32.mrf.mxu0
        %v1540 = vadd.f32 0.0, %v1539
        %v1541 = vpop.f32.mrf.mxu0
        %1542 = vmatprep.mubr.f32.mxu0 0.0
        %1543 = vmatmul.mubr.f32.gmra.mxu0 %v1386
        %v1544 = vpop.f32.mrf.mxu0
        %v1545 = vadd.f32 0.0, %v1544
        %v1546 = vpop.f32.mrf.mxu0
        %1547 = vdwg.mxu0
        %v1548 = vadd.f32 %v1372, %v1540
        %v1549 = vadd.f32 %v1373, %v1545
        %s1550 = scalar_lea.vmem %s1, 28
        %v1551 = vld [vmem:[%s1550] sm:$0xf]
        %v1553 = vrot.slane %v1377, 1
        %v1554 = vrot.slane %v1378, 1
        %v1555 = vsel %vm505, %v1553, %v1554
        %v1556 = vrot.slane %v1379, 1
        %v1557 = vsel %vm505, %v1554, %v1556
        %v1558 = vsel %vm333, %v1555, 0
        %v1560 = vsel %vm333, %v1557, 0
        %v1563 = vsel %vm340, %v1551, 0
        %1565 = vmatprep.subr.mxu0 0.0
        %1566 = vmatpush1.msra.mxu0 0.0
        %1567 = vmatprep.subr.mxu0 0.0
        %1568 = vmatpush1.msra.mxu0 0.0
        %1569 = vmatprep.subr.mxu0 0.0
        %1570 = vmatpush1.msra.mxu0 0.0
        %1571 = vmatprep.subr.mxu0 0.0
        %1572 = vmatpush1.msra.mxu0 0.0
        %1573 = vmatprep.subr.mxu0 0.0
        %1574 = vmatpush1.msra.mxu0 0.0
        %1575 = vmatprep.subr.mxu0 0.0
        %1576 = vmatpush1.msra.mxu0 0.0
        %1577 = vmatprep.subr.mxu0 0.0
        %1578 = vmatpush1.msra.mxu0 0.0
        %1579 = vmatprep.subr.mxu0 0.0
        %1580 = vmatpush1.msra.mxu0 0.0
        %1581 = vmatprep.subr.mxu0 0.0
        %1582 = vmatpush1.msra.mxu0 0.0
        %1583 = vmatprep.subr.mxu0 0.0
        %1584 = vmatpush1.msra.mxu0 0.0
        %1585 = vmatprep.subr.mxu0 0.0
        %1586 = vmatpush1.msra.mxu0 0.0
        %1587 = vmatprep.subr.mxu0 0.0
        %1588 = vmatpush1.msra.mxu0 0.0
        %1589 = vmatprep.subr.mxu0 0.0
        %1590 = vmatpush1.msra.mxu0 0.0
        %1591 = vmatprep.subr.mxu0 0.0
        %1592 = vmatpush1.msra.mxu0 0.0
        %1593 = vmatprep.subr.mxu0 0.0
        %1594 = vmatpush1.msra.mxu0 0.0
        %1595 = vmatprep.subr.mxu0 0.0
        %1596 = vmatpush1.msra.mxu0 %v1563
        %1597 = vmatprep.subr.mxu0 0.0
        %1598 = vmatpush2.msra.mxu0 0.0
        %1599 = vmatprep.subr.mxu0 0.0
        %1600 = vmatpush2.msra.mxu0 0.0
        %1601 = vmatprep.subr.mxu0 0.0
        %1602 = vmatpush2.msra.mxu0 0.0
        %1603 = vmatprep.subr.mxu0 0.0
        %1604 = vmatpush2.msra.mxu0 0.0
        %1605 = vmatprep.subr.mxu0 0.0
        %1606 = vmatpush2.msra.mxu0 0.0
        %1607 = vmatprep.subr.mxu0 0.0
        %1608 = vmatpush2.msra.mxu0 0.0
        %1609 = vmatprep.subr.mxu0 0.0
        %1610 = vmatpush2.msra.mxu0 0.0
        %1611 = vmatprep.subr.mxu0 0.0
        %1612 = vmatpush2.msra.mxu0 0.0
        %1613 = vmatprep.subr.mxu0 0.0
        %1614 = vmatpush2.msra.mxu0 0.0
        %1615 = vmatprep.subr.mxu0 0.0
        %1616 = vmatpush2.msra.mxu0 0.0
        %1617 = vmatprep.subr.mxu0 0.0
        %1618 = vmatpush2.msra.mxu0 0.0
        %1619 = vmatprep.subr.mxu0 0.0
        %1620 = vmatpush2.msra.mxu0 0.0
        %1621 = vmatprep.subr.mxu0 0.0
        %1622 = vmatpush2.msra.mxu0 0.0
        %1623 = vmatprep.subr.mxu0 0.0
        %1624 = vmatpush2.msra.mxu0 0.0
        %1625 = vmatprep.subr.mxu0 0.0
        %1626 = vmatpush2.msra.mxu0 0.0
        %1627 = vmatprep.subr.mxu0 0.0
        %1628 = vmatpush2.msra.mxu0 0.0
        %1629 = vmatprep.mubr.f32.mxu0 0.0
        %1630 = vmatmul.mubr.f32.gmra.mxu0 %v1558
        %v1631 = vpop.f32.mrf.mxu0
        %v1632 = vadd.f32 0.0, %v1631
        %v1633 = vpop.f32.mrf.mxu0
        %1634 = vmatprep.mubr.f32.mxu0 0.0
        %1635 = vmatmul.mubr.f32.gmra.mxu0 %v1560
        %v1636 = vpop.f32.mrf.mxu0
        %v1637 = vadd.f32 0.0, %v1636
        %v1638 = vpop.f32.mrf.mxu0
        %1639 = vdwg.mxu0
        %v1640 = vadd.f32 %v1466, %v1632
        %v1641 = vadd.f32 %v1467, %v1637
        %s1642 = scalar_lea.vmem %s3, 28
        %v1643 = vld [vmem:[%s1642] sm:$0xf]
        %v1645 = vsel %vm340, %v1643, 0
        %1647 = vmatprep.subr.mxu0 0.0
        %1648 = vmatpush1.msra.mxu0 0.0
        %1649 = vmatprep.subr.mxu0 0.0
        %1650 = vmatpush1.msra.mxu0 0.0
        %1651 = vmatprep.subr.mxu0 0.0
        %1652 = vmatpush1.msra.mxu0 0.0
        %1653 = vmatprep.subr.mxu0 0.0
        %1654 = vmatpush1.msra.mxu0 0.0
        %1655 = vmatprep.subr.mxu0 0.0
        %1656 = vmatpush1.msra.mxu0 0.0
        %1657 = vmatprep.subr.mxu0 0.0
        %1658 = vmatpush1.msra.mxu0 0.0
        %1659 = vmatprep.subr.mxu0 0.0
        %1660 = vmatpush1.msra.mxu0 0.0
        %1661 = vmatprep.subr.mxu0 0.0
        %1662 = vmatpush1.msra.mxu0 0.0
        %1663 = vmatprep.subr.mxu0 0.0
        %1664 = vmatpush1.msra.mxu0 0.0
        %1665 = vmatprep.subr.mxu0 0.0
        %1666 = vmatpush1.msra.mxu0 0.0
        %1667 = vmatprep.subr.mxu0 0.0
        %1668 = vmatpush1.msra.mxu0 0.0
        %1669 = vmatprep.subr.mxu0 0.0
        %1670 = vmatpush1.msra.mxu0 0.0
        %1671 = vmatprep.subr.mxu0 0.0
        %1672 = vmatpush1.msra.mxu0 0.0
        %1673 = vmatprep.subr.mxu0 0.0
        %1674 = vmatpush1.msra.mxu0 0.0
        %1675 = vmatprep.subr.mxu0 0.0
        %1676 = vmatpush1.msra.mxu0 0.0
        %1677 = vmatprep.subr.mxu0 0.0
        %1678 = vmatpush1.msra.mxu0 %v1645
        %1679 = vmatprep.subr.mxu0 0.0
        %1680 = vmatpush2.msra.mxu0 0.0
        %1681 = vmatprep.subr.mxu0 0.0
        %1682 = vmatpush2.msra.mxu0 0.0
        %1683 = vmatprep.subr.mxu0 0.0
        %1684 = vmatpush2.msra.mxu0 0.0
        %1685 = vmatprep.subr.mxu0 0.0
        %1686 = vmatpush2.msra.mxu0 0.0
        %1687 = vmatprep.subr.mxu0 0.0
        %1688 = vmatpush2.msra.mxu0 0.0
        %1689 = vmatprep.subr.mxu0 0.0
        %1690 = vmatpush2.msra.mxu0 0.0
        %1691 = vmatprep.subr.mxu0 0.0
        %1692 = vmatpush2.msra.mxu0 0.0
        %1693 = vmatprep.subr.mxu0 0.0
        %1694 = vmatpush2.msra.mxu0 0.0
        %1695 = vmatprep.subr.mxu0 0.0
        %1696 = vmatpush2.msra.mxu0 0.0
        %1697 = vmatprep.subr.mxu0 0.0
        %1698 = vmatpush2.msra.mxu0 0.0
        %1699 = vmatprep.subr.mxu0 0.0
        %1700 = vmatpush2.msra.mxu0 0.0
        %1701 = vmatprep.subr.mxu0 0.0
        %1702 = vmatpush2.msra.mxu0 0.0
        %1703 = vmatprep.subr.mxu0 0.0
        %1704 = vmatpush2.msra.mxu0 0.0
        %1705 = vmatprep.subr.mxu0 0.0
        %1706 = vmatpush2.msra.mxu0 0.0
        %1707 = vmatprep.subr.mxu0 0.0
        %1708 = vmatpush2.msra.mxu0 0.0
        %1709 = vmatprep.subr.mxu0 0.0
        %1710 = vmatpush2.msra.mxu0 0.0
        %1711 = vmatprep.mubr.f32.mxu0 0.0
        %1712 = vmatmul.mubr.f32.gmra.mxu0 %v1558
        %v1713 = vpop.f32.mrf.mxu0
        %v1714 = vadd.f32 0.0, %v1713
        %v1715 = vpop.f32.mrf.mxu0
        %1716 = vmatprep.mubr.f32.mxu0 0.0
        %1717 = vmatmul.mubr.f32.gmra.mxu0 %v1560
        %v1718 = vpop.f32.mrf.mxu0
        %v1719 = vadd.f32 0.0, %v1718
        %v1720 = vpop.f32.mrf.mxu0
        %1721 = vdwg.mxu0
        %v1722 = vadd.f32 %v1548, %v1714
        %v1723 = vadd.f32 %v1549, %v1719
        %s1724 = scalar_lea.vmem %s1, 32
        %v1725 = vld [vmem:[%s1724] sm:$0xf]
        %v1726 = vrot.slane %v1377, 2
        %v1727 = vrot.slane %v1378, 2
        %v1728 = vsel %vm679, %v1726, %v1727
        %v1729 = vrot.slane %v1379, 2
        %v1730 = vsel %vm679, %v1727, %v1729
        %v1731 = vsel %vm333, %v1728, 0
        %v1733 = vsel %vm333, %v1730, 0
        %v1736 = vsel %vm340, %v1725, 0
        %1738 = vmatprep.subr.mxu0 0.0
        %1739 = vmatpush1.msra.mxu0 0.0
        %1740 = vmatprep.subr.mxu0 0.0
        %1741 = vmatpush1.msra.mxu0 0.0
        %1742 = vmatprep.subr.mxu0 0.0
        %1743 = vmatpush1.msra.mxu0 0.0
        %1744 = vmatprep.subr.mxu0 0.0
        %1745 = vmatpush1.msra.mxu0 0.0
        %1746 = vmatprep.subr.mxu0 0.0
        %1747 = vmatpush1.msra.mxu0 0.0
        %1748 = vmatprep.subr.mxu0 0.0
        %1749 = vmatpush1.msra.mxu0 0.0
        %1750 = vmatprep.subr.mxu0 0.0
        %1751 = vmatpush1.msra.mxu0 0.0
        %1752 = vmatprep.subr.mxu0 0.0
        %1753 = vmatpush1.msra.mxu0 0.0
        %1754 = vmatprep.subr.mxu0 0.0
        %1755 = vmatpush1.msra.mxu0 0.0
        %1756 = vmatprep.subr.mxu0 0.0
        %1757 = vmatpush1.msra.mxu0 0.0
        %1758 = vmatprep.subr.mxu0 0.0
        %1759 = vmatpush1.msra.mxu0 0.0
        %1760 = vmatprep.subr.mxu0 0.0
        %1761 = vmatpush1.msra.mxu0 0.0
        %1762 = vmatprep.subr.mxu0 0.0
        %1763 = vmatpush1.msra.mxu0 0.0
        %1764 = vmatprep.subr.mxu0 0.0
        %1765 = vmatpush1.msra.mxu0 0.0
        %1766 = vmatprep.subr.mxu0 0.0
        %1767 = vmatpush1.msra.mxu0 0.0
        %1768 = vmatprep.subr.mxu0 0.0
        %1769 = vmatpush1.msra.mxu0 %v1736
        %1770 = vmatprep.subr.mxu0 0.0
        %1771 = vmatpush2.msra.mxu0 0.0
        %1772 = vmatprep.subr.mxu0 0.0
        %1773 = vmatpush2.msra.mxu0 0.0
        %1774 = vmatprep.subr.mxu0 0.0
        %1775 = vmatpush2.msra.mxu0 0.0
        %1776 = vmatprep.subr.mxu0 0.0
        %1777 = vmatpush2.msra.mxu0 0.0
        %1778 = vmatprep.subr.mxu0 0.0
        %1779 = vmatpush2.msra.mxu0 0.0
        %1780 = vmatprep.subr.mxu0 0.0
        %1781 = vmatpush2.msra.mxu0 0.0
        %1782 = vmatprep.subr.mxu0 0.0
        %1783 = vmatpush2.msra.mxu0 0.0
        %1784 = vmatprep.subr.mxu0 0.0
        %1785 = vmatpush2.msra.mxu0 0.0
        %1786 = vmatprep.subr.mxu0 0.0
        %1787 = vmatpush2.msra.mxu0 0.0
        %1788 = vmatprep.subr.mxu0 0.0
        %1789 = vmatpush2.msra.mxu0 0.0
        %1790 = vmatprep.subr.mxu0 0.0
        %1791 = vmatpush2.msra.mxu0 0.0
        %1792 = vmatprep.subr.mxu0 0.0
        %1793 = vmatpush2.msra.mxu0 0.0
        %1794 = vmatprep.subr.mxu0 0.0
        %1795 = vmatpush2.msra.mxu0 0.0
        %1796 = vmatprep.subr.mxu0 0.0
        %1797 = vmatpush2.msra.mxu0 0.0
        %1798 = vmatprep.subr.mxu0 0.0
        %1799 = vmatpush2.msra.mxu0 0.0
        %1800 = vmatprep.subr.mxu0 0.0
        %1801 = vmatpush2.msra.mxu0 0.0
        %1802 = vmatprep.mubr.f32.mxu0 0.0
        %1803 = vmatmul.mubr.f32.gmra.mxu0 %v1731
        %v1804 = vpop.f32.mrf.mxu0
        %v1805 = vadd.f32 0.0, %v1804
        %v1806 = vpop.f32.mrf.mxu0
        %1807 = vmatprep.mubr.f32.mxu0 0.0
        %1808 = vmatmul.mubr.f32.gmra.mxu0 %v1733
        %v1809 = vpop.f32.mrf.mxu0
        %v1810 = vadd.f32 0.0, %v1809
        %v1811 = vpop.f32.mrf.mxu0
        %1812 = vdwg.mxu0
        %v1813 = vadd.f32 %v1640, %v1805
        %v1814 = vadd.f32 %v1641, %v1810
        %s1815 = scalar_lea.vmem %s3, 32
        %v1816 = vld [vmem:[%s1815] sm:$0xf]
        %v1818 = vsel %vm340, %v1816, 0
        %1820 = vmatprep.subr.mxu0 0.0
        %1821 = vmatpush1.msra.mxu0 0.0
        %1822 = vmatprep.subr.mxu0 0.0
        %1823 = vmatpush1.msra.mxu0 0.0
        %1824 = vmatprep.subr.mxu0 0.0
        %1825 = vmatpush1.msra.mxu0 0.0
        %1826 = vmatprep.subr.mxu0 0.0
        %1827 = vmatpush1.msra.mxu0 0.0
        %1828 = vmatprep.subr.mxu0 0.0
        %1829 = vmatpush1.msra.mxu0 0.0
        %1830 = vmatprep.subr.mxu0 0.0
        %1831 = vmatpush1.msra.mxu0 0.0
        %1832 = vmatprep.subr.mxu0 0.0
        %1833 = vmatpush1.msra.mxu0 0.0
        %1834 = vmatprep.subr.mxu0 0.0
        %1835 = vmatpush1.msra.mxu0 0.0
        %1836 = vmatprep.subr.mxu0 0.0
        %1837 = vmatpush1.msra.mxu0 0.0
        %1838 = vmatprep.subr.mxu0 0.0
        %1839 = vmatpush1.msra.mxu0 0.0
        %1840 = vmatprep.subr.mxu0 0.0
        %1841 = vmatpush1.msra.mxu0 0.0
        %1842 = vmatprep.subr.mxu0 0.0
        %1843 = vmatpush1.msra.mxu0 0.0
        %1844 = vmatprep.subr.mxu0 0.0
        %1845 = vmatpush1.msra.mxu0 0.0
        %1846 = vmatprep.subr.mxu0 0.0
        %1847 = vmatpush1.msra.mxu0 0.0
        %1848 = vmatprep.subr.mxu0 0.0
        %1849 = vmatpush1.msra.mxu0 0.0
        %1850 = vmatprep.subr.mxu0 0.0
        %1851 = vmatpush1.msra.mxu0 %v1818
        %1852 = vmatprep.subr.mxu0 0.0
        %1853 = vmatpush2.msra.mxu0 0.0
        %1854 = vmatprep.subr.mxu0 0.0
        %1855 = vmatpush2.msra.mxu0 0.0
        %1856 = vmatprep.subr.mxu0 0.0
        %1857 = vmatpush2.msra.mxu0 0.0
        %1858 = vmatprep.subr.mxu0 0.0
        %1859 = vmatpush2.msra.mxu0 0.0
        %1860 = vmatprep.subr.mxu0 0.0
        %1861 = vmatpush2.msra.mxu0 0.0
        %1862 = vmatprep.subr.mxu0 0.0
        %1863 = vmatpush2.msra.mxu0 0.0
        %1864 = vmatprep.subr.mxu0 0.0
        %1865 = vmatpush2.msra.mxu0 0.0
        %1866 = vmatprep.subr.mxu0 0.0
        %1867 = vmatpush2.msra.mxu0 0.0
        %1868 = vmatprep.subr.mxu0 0.0
        %1869 = vmatpush2.msra.mxu0 0.0
        %1870 = vmatprep.subr.mxu0 0.0
        %1871 = vmatpush2.msra.mxu0 0.0
        %1872 = vmatprep.subr.mxu0 0.0
        %1873 = vmatpush2.msra.mxu0 0.0
        %1874 = vmatprep.subr.mxu0 0.0
        %1875 = vmatpush2.msra.mxu0 0.0
        %1876 = vmatprep.subr.mxu0 0.0
        %1877 = vmatpush2.msra.mxu0 0.0
        %1878 = vmatprep.subr.mxu0 0.0
        %1879 = vmatpush2.msra.mxu0 0.0
        %1880 = vmatprep.subr.mxu0 0.0
        %1881 = vmatpush2.msra.mxu0 0.0
        %1882 = vmatprep.subr.mxu0 0.0
        %1883 = vmatpush2.msra.mxu0 0.0
        %1884 = vmatprep.mubr.f32.mxu0 0.0
        %1885 = vmatmul.mubr.f32.gmra.mxu0 %v1731
        %v1886 = vpop.f32.mrf.mxu0
        %v1887 = vadd.f32 0.0, %v1886
        %v1888 = vpop.f32.mrf.mxu0
        %1889 = vmatprep.mubr.f32.mxu0 0.0
        %1890 = vmatmul.mubr.f32.gmra.mxu0 %v1733
        %v1891 = vpop.f32.mrf.mxu0
        %v1892 = vadd.f32 0.0, %v1891
        %v1893 = vpop.f32.mrf.mxu0
        %1894 = vdwg.mxu0
        %v1895 = vadd.f32 %v1722, %v1887
        %v1896 = vadd.f32 %v1723, %v1892
        %v1897 = vmax.f32 %v1813, 0.0
        %v1898 = vmax.f32 %v1814, 0.0
        %s1899 = smul.u32 %s305, 16
        %s1900 = scalar_lea.vmem %s290, %s1899
        %vm1901 = vcmask 130048
        %1902 = vst.msk [vmem:[%s1900] sm:$0xff] %vm1901, %v1897
        %1903 = vst.msk [vmem:[%s1900 + $0x8] sm:$0xff] %vm1901, %v1898
        %s1904 = scalar_lea.vmem %s301, %s1899
        %1905 = vst.msk [vmem:[%s1904] sm:$0xff] %vm1901, %v1895
        %1906 = vst.msk [vmem:[%s1904 + $0x8] sm:$0xff] %vm1901, %v1896
      $region45: #{up_project_forward.2} parent=39 // loop_footer
        %s309 = sadd.s32 1, %s305
      $region46: #{up_project_forward.2} parent=39 // loop_footer_branch
        %304 = sbr.rel target = $region42
      $region47: #{up_project_forward.2} parent=39 // loop_exit
        _
      %s1907 = smul.u32 8, %s23
      %p1908 = scmp.lt.s32.totalorder %s22, 1
      %s1909 = scalar_select %p1908, %s22, 1
      %p1910 = scmp.lt.s32.totalorder %s1907, 15
      %s1911 = scalar_select %p1910, %s1907, 15
      %s1912 = smul.addr %s1911, 2
      %s1913 = smul.addr %s1909, 32
      %s1914 = sadd.s32 %s1912, %s1913
      %s1915 = smul.addr %s1914, 8
      %s1916 = scalar_lea.vmem %s5, %s1915
      %s1917 = smul.u32 8, %s23
      %p1918 = scmp.lt.s32.totalorder %s22, 1
      %s1919 = scalar_select %p1918, %s22, 1
      %p1920 = scmp.lt.s32.totalorder %s1917, 15
      %s1921 = scalar_select %p1920, %s1917, 15
      %s1922 = smul.addr %s1921, 2
      %s1923 = smul.addr %s1919, 32
      %s1924 = sadd.s32 %s1922, %s1923
      %s1925 = smul.addr %s1924, 8
      %s1926 = scalar_lea.vmem %s6, %s1925
      // Predicated region
      $region48: #{up_project_forward.2} parent=39 // pred_check
        %p1927 = pneg %p160
      $region49: #{up_project_forward.2} parent=39 // pred_check_branch
        %1929 = sbr.rel (%p1927) target = $region51
      $region50: #{up_project_forward.2} parent=39 // pred_region
        %s1930 = smul.u32 8, %s23
      $region51: #{up_project_forward.2} parent=39 // pred_fallthru
        _
      // Predicated region
      $region52: #{up_project_forward.2} parent=39 // pred_check
        %p1931 = pneg %p188
      $region53: #{up_project_forward.2} parent=39 // pred_check_branch
        %1933 = sbr.rel (%p1931) target = $region55
      $region54: #{up_project_forward.2} parent=39 // pred_region
        %s1934 = smul.u32 8, %s23
      $region55: #{up_project_forward.2} parent=39 // pred_fallthru
        _
    $region40: #{up_project_forward.2} parent=5 // pred_fallthru
      _
    %p1935 = scmp.le.s32.totalorder 2, %s13
    // Predicated region
    $region56: #{up_project_forward.2} parent=5 // pred_check
      %p1936 = pneg %p1935
    $region57: #{up_project_forward.2} parent=5 // pred_check_branch
      %1938 = sbr.rel (%p1936) target = $region59
    $region58: #{up_project_forward.2} parent=5 // pred_region
      %s1939 = ssub.s32 %s13, 2
      // Predicated region
      $region60: #{up_project_forward.2} parent=58 // pred_check
        %p1940 = pneg %p166
      $region61: #{up_project_forward.2} parent=58 // pred_check_branch
        %1942 = sbr.rel (%p1940) target = $region63
      $region62: #{up_project_forward.2} parent=58 // pred_region
        %s1943 = smul.u32 8, %s25
        %p1944 = scmp.lt.s32.totalorder %s24, 1
        %s1945 = scalar_select %p1944, %s24, 1
        %p1946 = scmp.lt.s32.totalorder %s1943, 15
        %s1947 = scalar_select %p1946, %s1943, 15
        %s1948 = smul.addr %s1947, 2
        %s1949 = smul.addr %s1945, 32
        %s1950 = sadd.s32 %s1948, %s1949
        %s1951 = smul.addr %s1950, 8
        %s1952 = scalar_lea.vmem %s5, %s1951
      $region63: #{up_project_forward.2} parent=58 // pred_fallthru
        _
      // Predicated region
      $region64: #{up_project_forward.2} parent=58 // pred_check
        %p1953 = pneg %p194
      $region65: #{up_project_forward.2} parent=58 // pred_check_branch
        %1955 = sbr.rel (%p1953) target = $region67
      $region66: #{up_project_forward.2} parent=58 // pred_region
        %s1956 = smul.u32 8, %s25
        %p1957 = scmp.lt.s32.totalorder %s24, 1
        %s1958 = scalar_select %p1957, %s24, 1
        %p1959 = scmp.lt.s32.totalorder %s1956, 15
        %s1960 = scalar_select %p1959, %s1956, 15
        %s1961 = smul.addr %s1960, 2
        %s1962 = smul.addr %s1958, 32
        %s1963 = sadd.s32 %s1961, %s1962
        %s1964 = smul.addr %s1963, 8
        %s1965 = scalar_lea.vmem %s6, %s1964
      $region67: #{up_project_forward.2} parent=58 // pred_fallthru
        _
    $region59: #{up_project_forward.2} parent=5 // pred_fallthru
      _
  $region6: #{up_project_forward.2} parent=0 // loop_footer
    %s17 = sadd.s32 1, %s13
  $region7: #{up_project_forward.2} parent=0 // loop_footer_branch
    %12 = sbr.rel target = $region3
  $region8: #{up_project_forward.2} parent=0 // loop_exit
    _

// kernel: up_project_forward.3
$region0: #{up_project_forward.3}
  #allocation0 [shape = 'u32[]', space=smem, size = 0x4, offset = 0x4, fixed_abs, tag = 'smem constant byte address 0x4 - core index']
  #allocation1 [shape = 'u32[144,128]{1,0:T(1,128)}', space=vmem, size = 0x12000, scoped, tag = 'internal scratch']
  %s0 = inlined_call_operand.vmem [shape: f32[2,34,34,4], index: 0, kind: input, shape index: {}]
  %s1 = inlined_call_operand.vmem [shape: f32[2,32,32,4], index: 1, kind: input, shape index: {}]
  %s2 = inlined_call_operand.vmem [shape: f32[9,4,4], index: 2, kind: input, shape index: {}]
  %s3 = inlined_call_operand.vmem [shape: f32[1,4], index: 3, kind: input, shape index: {}]
  %s4 = inlined_call_operand.vmem [shape: f32[2,32,32,4], index: 4, kind: output, shape index: {}]
  %s5 = sld [smem:[#allocation0]]
  $region56: #{up_project_forward.3} parent=0
    _
  %s7 = ssub.s32 1, %s5
  %s8 = scalar_select 0, %s7, %s5
  loop: start=0, step=1, limit=10
  $region2: #{up_project_forward.3} parent=0 // loop_pre_header
    _
  $region3: #{up_project_forward.3} parent=0 // loop_header
    %s10 = sphi 0, %s14
    %p11 = scmp.ge.s32.totalorder %s10, 10
    %s17 = sphi 0, %s29
    %s18 = sphi 0, %s25
    %s19 = sphi 0, %s17
    %s20 = sphi 0, %s18
    %s21 = sphi 0, %s19
    %s22 = sphi 0, %s20
    %s32 = sphi 0, %s34
    %s35 = sphi 0, %s32
    %s36 = sphi 0, %s35
    %s52 = sphi 0, %s36
    %s60 = sphi 0, %s62
    %s63 = sphi 0, %s60
    %s64 = sphi 0, %s63
    %s80 = sphi 0, %s64
    %s84 = sphi 0, %s84
    %s86 = sphi 0, %s84
    %s87 = sphi 0, %s86
    %s101 = sphi 0, %s87
    %s105 = sphi 0, %s105
    %s107 = sphi 0, %s105
    %s108 = sphi 0, %s107
    %s122 = sphi 0, %s108
    %s130 = sphi 0, %s132
    %s133 = sphi 0, %s130
    %s134 = sphi 0, %s133
    %s150 = sphi 0, %s134
  $region4: #{up_project_forward.3} parent=0 // loop_header_branch
    %13 = sbr.rel (%p11) target = $region8
  $region5: #{up_project_forward.3} parent=0 // loop_body
    %s15 = ssub.s32 %s10, 1
    %s16 = ssub.s32 %s10, 2
    %s23 = sadd.s32 1, %s18
    %p24 = scmp.ge.s32.totalorder %s23, 4
    %s25 = scalar_select %p24, 0, %s23
    %s26 = sadd.s32 1, %s17
    %s27 = scalar_select %p24, %s26, %s17
    %p28 = scmp.ge.s32.totalorder %s27, 2
    %s29 = scalar_select %p28, 0, %s27
    %s30 = ssub.s32 %s17, %s29
    %p31 = scmp.eq.s32.totalorder %s30, 0
    %s33 = sadd.s32 %s32, 1
    %s34 = scalar_select %p31, %s32, %s33
    %p37 = pneg %p31
    %p38 = scmp.eq.s32.totalorder %s10, 7
    %p39 = por %p37, %p38
    %p40 = scmp.ne.s32.totalorder %s32, %s35
    %p41 = scmp.eq.s32.totalorder %s10, 0
    %p42 = por %p40, %p41
    %p43 = scmp.ne.s32.totalorder %s32, %s35
    %p44 = scmp.eq.s32.totalorder %s15, 7
    %p45 = por %p43, %p44
    %p46 = scmp.ne.s32.totalorder %s35, %s36
    %p47 = scmp.eq.s32.totalorder %s15, 0
    %p48 = por %p46, %p47
    %p49 = scmp.ne.s32.totalorder %s35, %s36
    %p50 = scmp.eq.s32.totalorder %s16, 7
    %p51 = por %p49, %p50
    %p53 = scmp.ne.s32.totalorder %s36, %s52
    %p54 = scmp.eq.s32.totalorder %s16, 0
    %p55 = por %p53, %p54
    %s56 = ssub.s32 %s17, %s29
    %s57 = ssub.s32 %s18, %s25
    %s58 = sor.u32 %s56, %s57
    %p59 = scmp.eq.s32.totalorder %s58, 0
    %s61 = sadd.s32 %s60, 1
    %s62 = scalar_select %p59, %s60, %s61
    %p65 = pneg %p59
    %p66 = scmp.eq.s32.totalorder %s10, 7
    %p67 = por %p65, %p66
    %p68 = scmp.ne.s32.totalorder %s60, %s63
    %p69 = scmp.eq.s32.totalorder %s10, 0
    %p70 = por %p68, %p69
    %p71 = scmp.ne.s32.totalorder %s60, %s63
    %p72 = scmp.eq.s32.totalorder %s15, 7
    %p73 = por %p71, %p72
    %p74 = scmp.ne.s32.totalorder %s63, %s64
    %p75 = scmp.eq.s32.totalorder %s15, 0
    %p76 = por %p74, %p75
    %p77 = scmp.ne.s32.totalorder %s63, %s64
    %p78 = scmp.eq.s32.totalorder %s16, 7
    %p79 = por %p77, %p78
    %p81 = scmp.ne.s32.totalorder %s64, %s80
    %p82 = scmp.eq.s32.totalorder %s16, 0
    %p83 = por %p81, %p82
    %s85 = sadd.s32 %s84, 1
    %p88 = scmp.eq.s32.totalorder %s10, 7
    %p89 = scmp.ne.s32.totalorder %s84, %s86
    %p90 = scmp.eq.s32.totalorder %s10, 0
    %p91 = por %p89, %p90
    %p92 = scmp.ne.s32.totalorder %s84, %s86
    %p93 = scmp.eq.s32.totalorder %s15, 7
    %p94 = por %p92, %p93
    %p95 = scmp.ne.s32.totalorder %s86, %s87
    %p96 = scmp.eq.s32.totalorder %s15, 0
    %p97 = por %p95, %p96
    %p98 = scmp.ne.s32.totalorder %s86, %s87
    %p99 = scmp.eq.s32.totalorder %s16, 7
    %p100 = por %p98, %p99
    %p102 = scmp.ne.s32.totalorder %s87, %s101
    %p103 = scmp.eq.s32.totalorder %s16, 0
    %p104 = por %p102, %p103
    %s106 = sadd.s32 %s105, 1
    %p109 = scmp.eq.s32.totalorder %s10, 7
    %p110 = scmp.ne.s32.totalorder %s105, %s107
    %p111 = scmp.eq.s32.totalorder %s10, 0
    %p112 = por %p110, %p111
    %p113 = scmp.ne.s32.totalorder %s105, %s107
    %p114 = scmp.eq.s32.totalorder %s15, 7
    %p115 = por %p113, %p114
    %p116 = scmp.ne.s32.totalorder %s107, %s108
    %p117 = scmp.eq.s32.totalorder %s15, 0
    %p118 = por %p116, %p117
    %p119 = scmp.ne.s32.totalorder %s107, %s108
    %p120 = scmp.eq.s32.totalorder %s16, 7
    %p121 = por %p119, %p120
    %p123 = scmp.ne.s32.totalorder %s108, %s122
    %p124 = scmp.eq.s32.totalorder %s16, 0
    %p125 = por %p123, %p124
    %s126 = ssub.s32 %s17, %s29
    %s127 = ssub.s32 %s18, %s25
    %s128 = sor.u32 %s126, %s127
    %p129 = scmp.eq.s32.totalorder %s128, 0
    %s131 = sadd.s32 %s130, 1
    %s132 = scalar_select %p129, %s130, %s131
    %p135 = pneg %p129
    %p136 = scmp.eq.s32.totalorder %s10, 7
    %p137 = por %p135, %p136
    %p138 = scmp.ne.s32.totalorder %s130, %s133
    %p139 = scmp.eq.s32.totalorder %s10, 0
    %p140 = por %p138, %p139
    %p141 = scmp.ne.s32.totalorder %s130, %s133
    %p142 = scmp.eq.s32.totalorder %s15, 7
    %p143 = por %p141, %p142
    %p144 = scmp.ne.s32.totalorder %s133, %s134
    %p145 = scmp.eq.s32.totalorder %s15, 0
    %p146 = por %p144, %p145
    %p147 = scmp.ne.s32.totalorder %s133, %s134
    %p148 = scmp.eq.s32.totalorder %s16, 7
    %p149 = por %p147, %p148
    %p151 = scmp.ne.s32.totalorder %s134, %s150
    %p152 = scmp.eq.s32.totalorder %s16, 0
    %p153 = por %p151, %p152
    %p154 = scmp.le.s32.totalorder 1, %s10
    %p155 = scmp.lt.s32.totalorder %s10, 9
    %p156 = pnand %p154, %p155
    %p157 = pneg %p156
    // Predicated region
    $region9: #{up_project_forward.3} parent=5 // pred_check
      _
    $region10: #{up_project_forward.3} parent=5 // pred_check_branch
      %159 = sbr.rel (%p156) target = $region12
    $region11: #{up_project_forward.3} parent=5 // pred_region
      %s160 = ssub.s32 %s10, 1
      // Predicated region
      $region13: #{up_project_forward.3} parent=11 // pred_check
        %p161 = pneg %p97
      $region14: #{up_project_forward.3} parent=11 // pred_check_branch
        %163 = sbr.rel (%p161) target = $region16
      $region15: #{up_project_forward.3} parent=11 // pred_region
        _
      $region16: #{up_project_forward.3} parent=11 // pred_fallthru
        _
      // Predicated region
      $region17: #{up_project_forward.3} parent=11 // pred_check
        %p164 = pneg %p118
      $region18: #{up_project_forward.3} parent=11 // pred_check_branch
        %166 = sbr.rel (%p164) target = $region20
      $region19: #{up_project_forward.3} parent=11 // pred_region
        _
      $region20: #{up_project_forward.3} parent=11 // pred_fallthru
        _
    $region12: #{up_project_forward.3} parent=5 // pred_fallthru
      _
    %p167 = scmp.lt.s32.totalorder %s10, 8
    // Predicated region
    $region21: #{up_project_forward.3} parent=5 // pred_check
      %p168 = pneg %p167
    $region22: #{up_project_forward.3} parent=5 // pred_check_branch
      %170 = sbr.rel (%p168) target = $region24
    $region23: #{up_project_forward.3} parent=5 // pred_region
      // Predicated region
      $region25: #{up_project_forward.3} parent=23 // pred_check
        %p171 = pneg %p42
      $region26: #{up_project_forward.3} parent=23 // pred_check_branch
        %173 = sbr.rel (%p171) target = $region28
      $region27: #{up_project_forward.3} parent=23 // pred_region
        %p174 = scmp.lt.s32.totalorder %s17, 1
        %s175 = scalar_select %p174, %s17, 1
        %s176 = smul.addr %s175, 170
        %s177 = smul.addr %s176, 8
        %s178 = scalar_lea.vmem %s0, %s177
      $region28: #{up_project_forward.3} parent=23 // pred_fallthru
        _
      // Predicated region
      $region29: #{up_project_forward.3} parent=23 // pred_check
        %p179 = pneg %p70
      $region30: #{up_project_forward.3} parent=23 // pred_check_branch
        %181 = sbr.rel (%p179) target = $region32
      $region31: #{up_project_forward.3} parent=23 // pred_region
        %s182 = smul.u32 8, %s18
        %p183 = scmp.lt.s32.totalorder %s17, 1
        %s184 = scalar_select %p183, %s17, 1
        %p185 = scmp.lt.s32.totalorder %s182, 31
        %s186 = scalar_select %p185, %s182, 31
        %s187 = smul.addr %s186, 4
        %s188 = smul.addr %s184, 128
        %s189 = sadd.s32 %s187, %s188
        %s190 = smul.addr %s189, 8
        %s191 = scalar_lea.vmem %s1, %s190
        %s192 = smul.u32 8, %s18
      $region32: #{up_project_forward.3} parent=23 // pred_fallthru
        _
    $region24: #{up_project_forward.3} parent=5 // pred_fallthru
      _
    %p193 = scmp.le.s32.totalorder 1, %s10
    %p194 = scmp.lt.s32.totalorder %s10, 9
    %p195 = pnand %p193, %p194
    %p196 = pneg %p195
    // Predicated region
    $region33: #{up_project_forward.3} parent=5 // pred_check
      _
    $region34: #{up_project_forward.3} parent=5 // pred_check_branch
      %198 = sbr.rel (%p195) target = $region36
    $region35: #{up_project_forward.3} parent=5 // pred_region
      %s199 = ssub.s32 %s10, 1
      %p200 = scmp.lt.s32.totalorder %s19, 1
      %s201 = scalar_select %p200, %s19, 1
      %s202 = smul.addr %s201, 170
      %s203 = smul.addr %s202, 8
      %s204 = scalar_lea.vmem %s0, %s203
      %p205 = pneg %p48
      %p206 = pneg %p45
      %s207 = smul.u32 8, %s20
      %p208 = scmp.lt.s32.totalorder %s19, 1
      %s209 = scalar_select %p208, %s19, 1
      %p210 = scmp.lt.s32.totalorder %s207, 31
      %s211 = scalar_select %p210, %s207, 31
      %s212 = smul.addr %s211, 4
      %s213 = smul.addr %s209, 128
      %s214 = sadd.s32 %s212, %s213
      %s215 = smul.addr %s214, 8
      %s216 = scalar_lea.vmem %s1, %s215
      %p217 = pneg %p76
      %p218 = pneg %p73
      %p219 = pneg %p97
      %p220 = pneg %p94
      %p221 = pneg %p118
      %p222 = pneg %p115
      %p223 = pneg %p146
      %p224 = pneg %p143
      %s225 = smul.u32 8, %s20
      %p226 = scmp.lt.s32.totalorder %s19, 1
      %s227 = scalar_select %p226, %s19, 1
      %p228 = scmp.lt.s32.totalorder %s225, 31
      %s229 = scalar_select %p228, %s225, 31
      %s230 = smul.addr %s229, 4
      %s231 = smul.addr %s227, 128
      %s232 = sadd.s32 %s230, %s231
      %s233 = smul.addr %s232, 8
      %s234 = scalar_lea.vmem %s4, %s233
      %p235 = scmp.lt.s32.totalorder %s19, 1
      %s236 = scalar_select %p235, %s19, 1
      %s237 = smul.addr %s236, 170
      %s238 = smul.addr %s237, 8
      %s239 = scalar_lea.vmem %s0, %s238
      %s240 = smul.u32 8, %s20
      %p241 = scmp.lt.s32.totalorder %s19, 1
      %s242 = scalar_select %p241, %s19, 1
      %p243 = scmp.lt.s32.totalorder %s240, 31
      %s244 = scalar_select %p243, %s240, 31
      %s245 = smul.addr %s244, 4
      %s246 = smul.addr %s242, 128
      %s247 = sadd.s32 %s245, %s246
      %s248 = smul.addr %s247, 8
      %s249 = scalar_lea.vmem %s1, %s248
      %s250 = smul.u32 8, %s20
      %s251 = smul.u32 8, %s20
      %p252 = scmp.lt.s32.totalorder %s19, 1
      %s253 = scalar_select %p252, %s19, 1
      %p254 = scmp.lt.s32.totalorder %s251, 31
      %s255 = scalar_select %p254, %s251, 31
      %s256 = smul.addr %s255, 4
      %s257 = smul.addr %s253, 128
      %s258 = sadd.s32 %s256, %s257
      %s259 = smul.addr %s258, 8
      %s260 = scalar_lea.vmem %s4, %s259
      %s261 = smul.u32 8, %s20
      %s262 = smul.u32 %s20, 8
      loop: start=0, step=1, limit=8
      $region37: #{up_project_forward.3} parent=35 // loop_pre_header
        _
      $region38: #{up_project_forward.3} parent=35 // loop_header
        %s264 = sphi 0, %s268
        %p265 = scmp.ge.s32.totalorder %s264, 8
      $region39: #{up_project_forward.3} parent=35 // loop_header_branch
        %267 = sbr.rel (%p265) target = $region43
      $region40: #{up_project_forward.3} parent=35 // loop_body
        %v269 = vld [vmem:[%s3] sm:$0x1]
        %v271 = vlaneseq
        %v272 = vshrl.u32 %v271, 7
        %v273 = vsub.s32 0, %v272
        %v274 = vrot.slane %v269, %v273
        %v276 = vadd.f32 %v274, 0.0
        %s277 = sadd.s32 %s262, %s264
        %s278 = smul.u32 %s277, 40
        %s279 = scalar_lea.vmem %s239, %s278
        %v280 = vld [vmem:[%s279] sm:$0xff]
        %v281 = vld [vmem:[%s279 + $0x8] sm:$0xff]
        %v282 = vld [vmem:[%s279 + $0x10] sm:$0xff]
        %v283 = vld [vmem:[%s279 + $0x18] sm:$0xff]
        %v284 = vld [vmem:[%s279 + $0x20] sm:$0x3]
        %v285 = vld [vmem:[%s2] sm:$0xf]
        %vm286 = vcmask 31744
        %v288 = vsel %vm286, %v280, 0
        %v291 = vsel %vm286, %v281, 0
        %v294 = vsel %vm286, %v282, 0
        %v297 = vsel %vm286, %v283, 0
        %vm299 = vcmask 1043456
        %v301 = vsel %vm299, %v285, 0
        %303 = vmatprep.subr.mxu0 0.0
        %304 = vmatpush1.msra.mxu0 0.0
        %305 = vmatprep.subr.mxu0 0.0
        %306 = vmatpush1.msra.mxu0 0.0
        %307 = vmatprep.subr.mxu0 0.0
        %308 = vmatpush1.msra.mxu0 0.0
        %309 = vmatprep.subr.mxu0 0.0
        %310 = vmatpush1.msra.mxu0 0.0
        %311 = vmatprep.subr.mxu0 0.0
        %312 = vmatpush1.msra.mxu0 0.0
        %313 = vmatprep.subr.mxu0 0.0
        %314 = vmatpush1.msra.mxu0 0.0
        %315 = vmatprep.subr.mxu0 0.0
        %316 = vmatpush1.msra.mxu0 0.0
        %317 = vmatprep.subr.mxu0 0.0
        %318 = vmatpush1.msra.mxu0 0.0
        %319 = vmatprep.subr.mxu0 0.0
        %320 = vmatpush1.msra.mxu0 0.0
        %321 = vmatprep.subr.mxu0 0.0
        %322 = vmatpush1.msra.mxu0 0.0
        %323 = vmatprep.subr.mxu0 0.0
        %324 = vmatpush1.msra.mxu0 0.0
        %325 = vmatprep.subr.mxu0 0.0
        %326 = vmatpush1.msra.mxu0 0.0
        %327 = vmatprep.subr.mxu0 0.0
        %328 = vmatpush1.msra.mxu0 0.0
        %329 = vmatprep.subr.mxu0 0.0
        %330 = vmatpush1.msra.mxu0 0.0
        %331 = vmatprep.subr.mxu0 0.0
        %332 = vmatpush1.msra.mxu0 0.0
        %333 = vmatprep.subr.mxu0 0.0
        %334 = vmatpush1.msra.mxu0 %v301
        %335 = vmatprep.subr.mxu0 0.0
        %336 = vmatpush2.msra.mxu0 0.0
        %337 = vmatprep.subr.mxu0 0.0
        %338 = vmatpush2.msra.mxu0 0.0
        %339 = vmatprep.subr.mxu0 0.0
        %340 = vmatpush2.msra.mxu0 0.0
        %341 = vmatprep.subr.mxu0 0.0
        %342 = vmatpush2.msra.mxu0 0.0
        %343 = vmatprep.subr.mxu0 0.0
        %344 = vmatpush2.msra.mxu0 0.0
        %345 = vmatprep.subr.mxu0 0.0
        %346 = vmatpush2.msra.mxu0 0.0
        %347 = vmatprep.subr.mxu0 0.0
        %348 = vmatpush2.msra.mxu0 0.0
        %349 = vmatprep.subr.mxu0 0.0
        %350 = vmatpush2.msra.mxu0 0.0
        %351 = vmatprep.subr.mxu0 0.0
        %352 = vmatpush2.msra.mxu0 0.0
        %353 = vmatprep.subr.mxu0 0.0
        %354 = vmatpush2.msra.mxu0 0.0
        %355 = vmatprep.subr.mxu0 0.0
        %356 = vmatpush2.msra.mxu0 0.0
        %357 = vmatprep.subr.mxu0 0.0
        %358 = vmatpush2.msra.mxu0 0.0
        %359 = vmatprep.subr.mxu0 0.0
        %360 = vmatpush2.msra.mxu0 0.0
        %361 = vmatprep.subr.mxu0 0.0
        %362 = vmatpush2.msra.mxu0 0.0
        %363 = vmatprep.subr.mxu0 0.0
        %364 = vmatpush2.msra.mxu0 0.0
        %365 = vmatprep.subr.mxu0 0.0
        %366 = vmatpush2.msra.mxu0 0.0
        %367 = vmatprep.mubr.f32.mxu0 0.0
        %368 = vmatmul.mubr.f32.gmra.mxu0 %v288
        %v369 = vpop.f32.mrf.mxu0
        %v370 = vadd.f32 0.0, %v369
        %v371 = vpop.f32.mrf.mxu0
        %372 = vmatprep.mubr.f32.mxu0 0.0
        %373 = vmatmul.mubr.f32.gmra.mxu0 %v291
        %v374 = vpop.f32.mrf.mxu0
        %v375 = vadd.f32 0.0, %v374
        %v376 = vpop.f32.mrf.mxu0
        %377 = vmatprep.mubr.f32.mxu0 0.0
        %378 = vmatmul.mubr.f32.gmra.mxu0 %v294
        %v379 = vpop.f32.mrf.mxu0
        %v380 = vadd.f32 0.0, %v379
        %v381 = vpop.f32.mrf.mxu0
        %382 = vmatprep.mubr.f32.mxu0 0.0
        %383 = vmatmul.mubr.f32.gmra.mxu0 %v297
        %v384 = vpop.f32.mrf.mxu0
        %v385 = vadd.f32 0.0, %v384
        %v386 = vpop.f32.mrf.mxu0
        %387 = vdwg.mxu0
        %v388 = vadd.f32 %v276, %v370
        %v389 = vadd.f32 %v276, %v375
        %v390 = vadd.f32 %v276, %v380
        %v391 = vadd.f32 %v276, %v385
        %s392 = scalar_lea.vmem %s2, 4
        %v393 = vld [vmem:[%s392] sm:$0xf]
        %vm395 = vcmask 1046528
        %v396 = vrot.slane %v280, 1
        %v397 = vrot.slane %v281, 1
        %v398 = vsel %vm395, %v396, %v397
        %v399 = vrot.slane %v282, 1
        %v400 = vsel %vm395, %v397, %v399
        %v401 = vrot.slane %v283, 1
        %v402 = vsel %vm395, %v399, %v401
        %v403 = vrot.slane %v284, 1
        %v404 = vsel %vm395, %v401, %v403
        %v405 = vsel %vm286, %v398, 0
        %v407 = vsel %vm286, %v400, 0
        %v409 = vsel %vm286, %v402, 0
        %v411 = vsel %vm286, %v404, 0
        %v414 = vsel %vm299, %v393, 0
        %416 = vmatprep.subr.mxu0 0.0
        %417 = vmatpush1.msra.mxu0 0.0
        %418 = vmatprep.subr.mxu0 0.0
        %419 = vmatpush1.msra.mxu0 0.0
        %420 = vmatprep.subr.mxu0 0.0
        %421 = vmatpush1.msra.mxu0 0.0
        %422 = vmatprep.subr.mxu0 0.0
        %423 = vmatpush1.msra.mxu0 0.0
        %424 = vmatprep.subr.mxu0 0.0
        %425 = vmatpush1.msra.mxu0 0.0
        %426 = vmatprep.subr.mxu0 0.0
        %427 = vmatpush1.msra.mxu0 0.0
        %428 = vmatprep.subr.mxu0 0.0
        %429 = vmatpush1.msra.mxu0 0.0
        %430 = vmatprep.subr.mxu0 0.0
        %431 = vmatpush1.msra.mxu0 0.0
        %432 = vmatprep.subr.mxu0 0.0
        %433 = vmatpush1.msra.mxu0 0.0
        %434 = vmatprep.subr.mxu0 0.0
        %435 = vmatpush1.msra.mxu0 0.0
        %436 = vmatprep.subr.mxu0 0.0
        %437 = vmatpush1.msra.mxu0 0.0
        %438 = vmatprep.subr.mxu0 0.0
        %439 = vmatpush1.msra.mxu0 0.0
        %440 = vmatprep.subr.mxu0 0.0
        %441 = vmatpush1.msra.mxu0 0.0
        %442 = vmatprep.subr.mxu0 0.0
        %443 = vmatpush1.msra.mxu0 0.0
        %444 = vmatprep.subr.mxu0 0.0
        %445 = vmatpush1.msra.mxu0 0.0
        %446 = vmatprep.subr.mxu0 0.0
        %447 = vmatpush1.msra.mxu0 %v414
        %448 = vmatprep.subr.mxu0 0.0
        %449 = vmatpush2.msra.mxu0 0.0
        %450 = vmatprep.subr.mxu0 0.0
        %451 = vmatpush2.msra.mxu0 0.0
        %452 = vmatprep.subr.mxu0 0.0
        %453 = vmatpush2.msra.mxu0 0.0
        %454 = vmatprep.subr.mxu0 0.0
        %455 = vmatpush2.msra.mxu0 0.0
        %456 = vmatprep.subr.mxu0 0.0
        %457 = vmatpush2.msra.mxu0 0.0
        %458 = vmatprep.subr.mxu0 0.0
        %459 = vmatpush2.msra.mxu0 0.0
        %460 = vmatprep.subr.mxu0 0.0
        %461 = vmatpush2.msra.mxu0 0.0
        %462 = vmatprep.subr.mxu0 0.0
        %463 = vmatpush2.msra.mxu0 0.0
        %464 = vmatprep.subr.mxu0 0.0
        %465 = vmatpush2.msra.mxu0 0.0
        %466 = vmatprep.subr.mxu0 0.0
        %467 = vmatpush2.msra.mxu0 0.0
        %468 = vmatprep.subr.mxu0 0.0
        %469 = vmatpush2.msra.mxu0 0.0
        %470 = vmatprep.subr.mxu0 0.0
        %471 = vmatpush2.msra.mxu0 0.0
        %472 = vmatprep.subr.mxu0 0.0
        %473 = vmatpush2.msra.mxu0 0.0
        %474 = vmatprep.subr.mxu0 0.0
        %475 = vmatpush2.msra.mxu0 0.0
        %476 = vmatprep.subr.mxu0 0.0
        %477 = vmatpush2.msra.mxu0 0.0
        %478 = vmatprep.subr.mxu0 0.0
        %479 = vmatpush2.msra.mxu0 0.0
        %480 = vmatprep.mubr.f32.mxu0 0.0
        %481 = vmatmul.mubr.f32.gmra.mxu0 %v405
        %v482 = vpop.f32.mrf.mxu0
        %v483 = vadd.f32 0.0, %v482
        %v484 = vpop.f32.mrf.mxu0
        %485 = vmatprep.mubr.f32.mxu0 0.0
        %486 = vmatmul.mubr.f32.gmra.mxu0 %v407
        %v487 = vpop.f32.mrf.mxu0
        %v488 = vadd.f32 0.0, %v487
        %v489 = vpop.f32.mrf.mxu0
        %490 = vmatprep.mubr.f32.mxu0 0.0
        %491 = vmatmul.mubr.f32.gmra.mxu0 %v409
        %v492 = vpop.f32.mrf.mxu0
        %v493 = vadd.f32 0.0, %v492
        %v494 = vpop.f32.mrf.mxu0
        %495 = vmatprep.mubr.f32.mxu0 0.0
        %496 = vmatmul.mubr.f32.gmra.mxu0 %v411
        %v497 = vpop.f32.mrf.mxu0
        %v498 = vadd.f32 0.0, %v497
        %v499 = vpop.f32.mrf.mxu0
        %500 = vdwg.mxu0
        %v501 = vadd.f32 %v388, %v483
        %v502 = vadd.f32 %v389, %v488
        %v503 = vadd.f32 %v390, %v493
        %v504 = vadd.f32 %v391, %v498
        %s505 = scalar_lea.vmem %s2, 8
        %v506 = vld [vmem:[%s505] sm:$0xf]
        %vm507 = vcmask 1045504
        %v508 = vrot.slane %v280, 2
        %v509 = vrot.slane %v281, 2
        %v510 = vsel %vm507, %v508, %v509
        %v511 = vrot.slane %v282, 2
        %v512 = vsel %vm507, %v509, %v511
        %v513 = vrot.slane %v283, 2
        %v514 = vsel %vm507, %v511, %v513
        %v515 = vrot.slane %v284, 2
        %v516 = vsel %vm507, %v513, %v515
        %v517 = vsel %vm286, %v510, 0
        %v519 = vsel %vm286, %v512, 0
        %v521 = vsel %vm286, %v514, 0
        %v523 = vsel %vm286, %v516, 0
        %v526 = vsel %vm299, %v506, 0
        %528 = vmatprep.subr.mxu0 0.0
        %529 = vmatpush1.msra.mxu0 0.0
        %530 = vmatprep.subr.mxu0 0.0
        %531 = vmatpush1.msra.mxu0 0.0
        %532 = vmatprep.subr.mxu0 0.0
        %533 = vmatpush1.msra.mxu0 0.0
        %534 = vmatprep.subr.mxu0 0.0
        %535 = vmatpush1.msra.mxu0 0.0
        %536 = vmatprep.subr.mxu0 0.0
        %537 = vmatpush1.msra.mxu0 0.0
        %538 = vmatprep.subr.mxu0 0.0
        %539 = vmatpush1.msra.mxu0 0.0
        %540 = vmatprep.subr.mxu0 0.0
        %541 = vmatpush1.msra.mxu0 0.0
        %542 = vmatprep.subr.mxu0 0.0
        %543 = vmatpush1.msra.mxu0 0.0
        %544 = vmatprep.subr.mxu0 0.0
        %545 = vmatpush1.msra.mxu0 0.0
        %546 = vmatprep.subr.mxu0 0.0
        %547 = vmatpush1.msra.mxu0 0.0
        %548 = vmatprep.subr.mxu0 0.0
        %549 = vmatpush1.msra.mxu0 0.0
        %550 = vmatprep.subr.mxu0 0.0
        %551 = vmatpush1.msra.mxu0 0.0
        %552 = vmatprep.subr.mxu0 0.0
        %553 = vmatpush1.msra.mxu0 0.0
        %554 = vmatprep.subr.mxu0 0.0
        %555 = vmatpush1.msra.mxu0 0.0
        %556 = vmatprep.subr.mxu0 0.0
        %557 = vmatpush1.msra.mxu0 0.0
        %558 = vmatprep.subr.mxu0 0.0
        %559 = vmatpush1.msra.mxu0 %v526
        %560 = vmatprep.subr.mxu0 0.0
        %561 = vmatpush2.msra.mxu0 0.0
        %562 = vmatprep.subr.mxu0 0.0
        %563 = vmatpush2.msra.mxu0 0.0
        %564 = vmatprep.subr.mxu0 0.0
        %565 = vmatpush2.msra.mxu0 0.0
        %566 = vmatprep.subr.mxu0 0.0
        %567 = vmatpush2.msra.mxu0 0.0
        %568 = vmatprep.subr.mxu0 0.0
        %569 = vmatpush2.msra.mxu0 0.0
        %570 = vmatprep.subr.mxu0 0.0
        %571 = vmatpush2.msra.mxu0 0.0
        %572 = vmatprep.subr.mxu0 0.0
        %573 = vmatpush2.msra.mxu0 0.0
        %574 = vmatprep.subr.mxu0 0.0
        %575 = vmatpush2.msra.mxu0 0.0
        %576 = vmatprep.subr.mxu0 0.0
        %577 = vmatpush2.msra.mxu0 0.0
        %578 = vmatprep.subr.mxu0 0.0
        %579 = vmatpush2.msra.mxu0 0.0
        %580 = vmatprep.subr.mxu0 0.0
        %581 = vmatpush2.msra.mxu0 0.0
        %582 = vmatprep.subr.mxu0 0.0
        %583 = vmatpush2.msra.mxu0 0.0
        %584 = vmatprep.subr.mxu0 0.0
        %585 = vmatpush2.msra.mxu0 0.0
        %586 = vmatprep.subr.mxu0 0.0
        %587 = vmatpush2.msra.mxu0 0.0
        %588 = vmatprep.subr.mxu0 0.0
        %589 = vmatpush2.msra.mxu0 0.0
        %590 = vmatprep.subr.mxu0 0.0
        %591 = vmatpush2.msra.mxu0 0.0
        %592 = vmatprep.mubr.f32.mxu0 0.0
        %593 = vmatmul.mubr.f32.gmra.mxu0 %v517
        %v594 = vpop.f32.mrf.mxu0
        %v595 = vadd.f32 0.0, %v594
        %v596 = vpop.f32.mrf.mxu0
        %597 = vmatprep.mubr.f32.mxu0 0.0
        %598 = vmatmul.mubr.f32.gmra.mxu0 %v519
        %v599 = vpop.f32.mrf.mxu0
        %v600 = vadd.f32 0.0, %v599
        %v601 = vpop.f32.mrf.mxu0
        %602 = vmatprep.mubr.f32.mxu0 0.0
        %603 = vmatmul.mubr.f32.gmra.mxu0 %v521
        %v604 = vpop.f32.mrf.mxu0
        %v605 = vadd.f32 0.0, %v604
        %v606 = vpop.f32.mrf.mxu0
        %607 = vmatprep.mubr.f32.mxu0 0.0
        %608 = vmatmul.mubr.f32.gmra.mxu0 %v523
        %v609 = vpop.f32.mrf.mxu0
        %v610 = vadd.f32 0.0, %v609
        %v611 = vpop.f32.mrf.mxu0
        %612 = vdwg.mxu0
        %v613 = vadd.f32 %v501, %v595
        %v614 = vadd.f32 %v502, %v600
        %v615 = vadd.f32 %v503, %v605
        %v616 = vadd.f32 %v504, %v610
        %s617 = sadd.s32 %s277, 1
        %s618 = smul.u32 %s617, 40
        %s619 = scalar_lea.vmem %s239, %s618
        %v620 = vld [vmem:[%s619] sm:$0xff]
        %v621 = vld [vmem:[%s619 + $0x8] sm:$0xff]
        %v622 = vld [vmem:[%s619 + $0x10] sm:$0xff]
        %v623 = vld [vmem:[%s619 + $0x18] sm:$0xff]
        %v624 = vld [vmem:[%s619 + $0x20] sm:$0x3]
        %s625 = scalar_lea.vmem %s2, 12
        %v626 = vld [vmem:[%s625] sm:$0xf]
        %v628 = vsel %vm286, %v620, 0
        %v631 = vsel %vm286, %v621, 0
        %v634 = vsel %vm286, %v622, 0
        %v637 = vsel %vm286, %v623, 0
        %v640 = vsel %vm299, %v626, 0
        %642 = vmatprep.subr.mxu0 0.0
        %643 = vmatpush1.msra.mxu0 0.0
        %644 = vmatprep.subr.mxu0 0.0
        %645 = vmatpush1.msra.mxu0 0.0
        %646 = vmatprep.subr.mxu0 0.0
        %647 = vmatpush1.msra.mxu0 0.0
        %648 = vmatprep.subr.mxu0 0.0
        %649 = vmatpush1.msra.mxu0 0.0
        %650 = vmatprep.subr.mxu0 0.0
        %651 = vmatpush1.msra.mxu0 0.0
        %652 = vmatprep.subr.mxu0 0.0
        %653 = vmatpush1.msra.mxu0 0.0
        %654 = vmatprep.subr.mxu0 0.0
        %655 = vmatpush1.msra.mxu0 0.0
        %656 = vmatprep.subr.mxu0 0.0
        %657 = vmatpush1.msra.mxu0 0.0
        %658 = vmatprep.subr.mxu0 0.0
        %659 = vmatpush1.msra.mxu0 0.0
        %660 = vmatprep.subr.mxu0 0.0
        %661 = vmatpush1.msra.mxu0 0.0
        %662 = vmatprep.subr.mxu0 0.0
        %663 = vmatpush1.msra.mxu0 0.0
        %664 = vmatprep.subr.mxu0 0.0
        %665 = vmatpush1.msra.mxu0 0.0
        %666 = vmatprep.subr.mxu0 0.0
        %667 = vmatpush1.msra.mxu0 0.0
        %668 = vmatprep.subr.mxu0 0.0
        %669 = vmatpush1.msra.mxu0 0.0
        %670 = vmatprep.subr.mxu0 0.0
        %671 = vmatpush1.msra.mxu0 0.0
        %672 = vmatprep.subr.mxu0 0.0
        %673 = vmatpush1.msra.mxu0 %v640
        %674 = vmatprep.subr.mxu0 0.0
        %675 = vmatpush2.msra.mxu0 0.0
        %676 = vmatprep.subr.mxu0 0.0
        %677 = vmatpush2.msra.mxu0 0.0
        %678 = vmatprep.subr.mxu0 0.0
        %679 = vmatpush2.msra.mxu0 0.0
        %680 = vmatprep.subr.mxu0 0.0
        %681 = vmatpush2.msra.mxu0 0.0
        %682 = vmatprep.subr.mxu0 0.0
        %683 = vmatpush2.msra.mxu0 0.0
        %684 = vmatprep.subr.mxu0 0.0
        %685 = vmatpush2.msra.mxu0 0.0
        %686 = vmatprep.subr.mxu0 0.0
        %687 = vmatpush2.msra.mxu0 0.0
        %688 = vmatprep.subr.mxu0 0.0
        %689 = vmatpush2.msra.mxu0 0.0
        %690 = vmatprep.subr.mxu0 0.0
        %691 = vmatpush2.msra.mxu0 0.0
        %692 = vmatprep.subr.mxu0 0.0
        %693 = vmatpush2.msra.mxu0 0.0
        %694 = vmatprep.subr.mxu0 0.0
        %695 = vmatpush2.msra.mxu0 0.0
        %696 = vmatprep.subr.mxu0 0.0
        %697 = vmatpush2.msra.mxu0 0.0
        %698 = vmatprep.subr.mxu0 0.0
        %699 = vmatpush2.msra.mxu0 0.0
        %700 = vmatprep.subr.mxu0 0.0
        %701 = vmatpush2.msra.mxu0 0.0
        %702 = vmatprep.subr.mxu0 0.0
        %703 = vmatpush2.msra.mxu0 0.0
        %704 = vmatprep.subr.mxu0 0.0
        %705 = vmatpush2.msra.mxu0 0.0
        %706 = vmatprep.mubr.f32.mxu0 0.0
        %707 = vmatmul.mubr.f32.gmra.mxu0 %v628
        %v708 = vpop.f32.mrf.mxu0
        %v709 = vadd.f32 0.0, %v708
        %v710 = vpop.f32.mrf.mxu0
        %711 = vmatprep.mubr.f32.mxu0 0.0
        %712 = vmatmul.mubr.f32.gmra.mxu0 %v631
        %v713 = vpop.f32.mrf.mxu0
        %v714 = vadd.f32 0.0, %v713
        %v715 = vpop.f32.mrf.mxu0
        %716 = vmatprep.mubr.f32.mxu0 0.0
        %717 = vmatmul.mubr.f32.gmra.mxu0 %v634
        %v718 = vpop.f32.mrf.mxu0
        %v719 = vadd.f32 0.0, %v718
        %v720 = vpop.f32.mrf.mxu0
        %721 = vmatprep.mubr.f32.mxu0 0.0
        %722 = vmatmul.mubr.f32.gmra.mxu0 %v637
        %v723 = vpop.f32.mrf.mxu0
        %v724 = vadd.f32 0.0, %v723
        %v725 = vpop.f32.mrf.mxu0
        %726 = vdwg.mxu0
        %v727 = vadd.f32 %v613, %v709
        %v728 = vadd.f32 %v614, %v714
        %v729 = vadd.f32 %v615, %v719
        %v730 = vadd.f32 %v616, %v724
        %s731 = scalar_lea.vmem %s2, 16
        %v732 = vld [vmem:[%s731] sm:$0xf]
        %v734 = vrot.slane %v620, 1
        %v735 = vrot.slane %v621, 1
        %v736 = vsel %vm395, %v734, %v735
        %v737 = vrot.slane %v622, 1
        %v738 = vsel %vm395, %v735, %v737
        %v739 = vrot.slane %v623, 1
        %v740 = vsel %vm395, %v737, %v739
        %v741 = vrot.slane %v624, 1
        %v742 = vsel %vm395, %v739, %v741
        %v743 = vsel %vm286, %v736, 0
        %v745 = vsel %vm286, %v738, 0
        %v747 = vsel %vm286, %v740, 0
        %v749 = vsel %vm286, %v742, 0
        %v752 = vsel %vm299, %v732, 0
        %754 = vmatprep.subr.mxu0 0.0
        %755 = vmatpush1.msra.mxu0 0.0
        %756 = vmatprep.subr.mxu0 0.0
        %757 = vmatpush1.msra.mxu0 0.0
        %758 = vmatprep.subr.mxu0 0.0
        %759 = vmatpush1.msra.mxu0 0.0
        %760 = vmatprep.subr.mxu0 0.0
        %761 = vmatpush1.msra.mxu0 0.0
        %762 = vmatprep.subr.mxu0 0.0
        %763 = vmatpush1.msra.mxu0 0.0
        %764 = vmatprep.subr.mxu0 0.0
        %765 = vmatpush1.msra.mxu0 0.0
        %766 = vmatprep.subr.mxu0 0.0
        %767 = vmatpush1.msra.mxu0 0.0
        %768 = vmatprep.subr.mxu0 0.0
        %769 = vmatpush1.msra.mxu0 0.0
        %770 = vmatprep.subr.mxu0 0.0
        %771 = vmatpush1.msra.mxu0 0.0
        %772 = vmatprep.subr.mxu0 0.0
        %773 = vmatpush1.msra.mxu0 0.0
        %774 = vmatprep.subr.mxu0 0.0
        %775 = vmatpush1.msra.mxu0 0.0
        %776 = vmatprep.subr.mxu0 0.0
        %777 = vmatpush1.msra.mxu0 0.0
        %778 = vmatprep.subr.mxu0 0.0
        %779 = vmatpush1.msra.mxu0 0.0
        %780 = vmatprep.subr.mxu0 0.0
        %781 = vmatpush1.msra.mxu0 0.0
        %782 = vmatprep.subr.mxu0 0.0
        %783 = vmatpush1.msra.mxu0 0.0
        %784 = vmatprep.subr.mxu0 0.0
        %785 = vmatpush1.msra.mxu0 %v752
        %786 = vmatprep.subr.mxu0 0.0
        %787 = vmatpush2.msra.mxu0 0.0
        %788 = vmatprep.subr.mxu0 0.0
        %789 = vmatpush2.msra.mxu0 0.0
        %790 = vmatprep.subr.mxu0 0.0
        %791 = vmatpush2.msra.mxu0 0.0
        %792 = vmatprep.subr.mxu0 0.0
        %793 = vmatpush2.msra.mxu0 0.0
        %794 = vmatprep.subr.mxu0 0.0
        %795 = vmatpush2.msra.mxu0 0.0
        %796 = vmatprep.subr.mxu0 0.0
        %797 = vmatpush2.msra.mxu0 0.0
        %798 = vmatprep.subr.mxu0 0.0
        %799 = vmatpush2.msra.mxu0 0.0
        %800 = vmatprep.subr.mxu0 0.0
        %801 = vmatpush2.msra.mxu0 0.0
        %802 = vmatprep.subr.mxu0 0.0
        %803 = vmatpush2.msra.mxu0 0.0
        %804 = vmatprep.subr.mxu0 0.0
        %805 = vmatpush2.msra.mxu0 0.0
        %806 = vmatprep.subr.mxu0 0.0
        %807 = vmatpush2.msra.mxu0 0.0
        %808 = vmatprep.subr.mxu0 0.0
        %809 = vmatpush2.msra.mxu0 0.0
        %810 = vmatprep.subr.mxu0 0.0
        %811 = vmatpush2.msra.mxu0 0.0
        %812 = vmatprep.subr.mxu0 0.0
        %813 = vmatpush2.msra.mxu0 0.0
        %814 = vmatprep.subr.mxu0 0.0
        %815 = vmatpush2.msra.mxu0 0.0
        %816 = vmatprep.subr.mxu0 0.0
        %817 = vmatpush2.msra.mxu0 0.0
        %818 = vmatprep.mubr.f32.mxu0 0.0
        %819 = vmatmul.mubr.f32.gmra.mxu0 %v743
        %v820 = vpop.f32.mrf.mxu0
        %v821 = vadd.f32 0.0, %v820
        %v822 = vpop.f32.mrf.mxu0
        %823 = vmatprep.mubr.f32.mxu0 0.0
        %824 = vmatmul.mubr.f32.gmra.mxu0 %v745
        %v825 = vpop.f32.mrf.mxu0
        %v826 = vadd.f32 0.0, %v825
        %v827 = vpop.f32.mrf.mxu0
        %828 = vmatprep.mubr.f32.mxu0 0.0
        %829 = vmatmul.mubr.f32.gmra.mxu0 %v747
        %v830 = vpop.f32.mrf.mxu0
        %v831 = vadd.f32 0.0, %v830
        %v832 = vpop.f32.mrf.mxu0
        %833 = vmatprep.mubr.f32.mxu0 0.0
        %834 = vmatmul.mubr.f32.gmra.mxu0 %v749
        %v835 = vpop.f32.mrf.mxu0
        %v836 = vadd.f32 0.0, %v835
        %v837 = vpop.f32.mrf.mxu0
        %838 = vdwg.mxu0
        %v839 = vadd.f32 %v727, %v821
        %v840 = vadd.f32 %v728, %v826
        %v841 = vadd.f32 %v729, %v831
        %v842 = vadd.f32 %v730, %v836
        %s843 = scalar_lea.vmem %s2, 20
        %v844 = vld [vmem:[%s843] sm:$0xf]
        %v845 = vrot.slane %v620, 2
        %v846 = vrot.slane %v621, 2
        %v847 = vsel %vm507, %v845, %v846
        %v848 = vrot.slane %v622, 2
        %v849 = vsel %vm507, %v846, %v848
        %v850 = vrot.slane %v623, 2
        %v851 = vsel %vm507, %v848, %v850
        %v852 = vrot.slane %v624, 2
        %v853 = vsel %vm507, %v850, %v852
        %v854 = vsel %vm286, %v847, 0
        %v856 = vsel %vm286, %v849, 0
        %v858 = vsel %vm286, %v851, 0
        %v860 = vsel %vm286, %v853, 0
        %v863 = vsel %vm299, %v844, 0
        %865 = vmatprep.subr.mxu0 0.0
        %866 = vmatpush1.msra.mxu0 0.0
        %867 = vmatprep.subr.mxu0 0.0
        %868 = vmatpush1.msra.mxu0 0.0
        %869 = vmatprep.subr.mxu0 0.0
        %870 = vmatpush1.msra.mxu0 0.0
        %871 = vmatprep.subr.mxu0 0.0
        %872 = vmatpush1.msra.mxu0 0.0
        %873 = vmatprep.subr.mxu0 0.0
        %874 = vmatpush1.msra.mxu0 0.0
        %875 = vmatprep.subr.mxu0 0.0
        %876 = vmatpush1.msra.mxu0 0.0
        %877 = vmatprep.subr.mxu0 0.0
        %878 = vmatpush1.msra.mxu0 0.0
        %879 = vmatprep.subr.mxu0 0.0
        %880 = vmatpush1.msra.mxu0 0.0
        %881 = vmatprep.subr.mxu0 0.0
        %882 = vmatpush1.msra.mxu0 0.0
        %883 = vmatprep.subr.mxu0 0.0
        %884 = vmatpush1.msra.mxu0 0.0
        %885 = vmatprep.subr.mxu0 0.0
        %886 = vmatpush1.msra.mxu0 0.0
        %887 = vmatprep.subr.mxu0 0.0
        %888 = vmatpush1.msra.mxu0 0.0
        %889 = vmatprep.subr.mxu0 0.0
        %890 = vmatpush1.msra.mxu0 0.0
        %891 = vmatprep.subr.mxu0 0.0
        %892 = vmatpush1.msra.mxu0 0.0
        %893 = vmatprep.subr.mxu0 0.0
        %894 = vmatpush1.msra.mxu0 0.0
        %895 = vmatprep.subr.mxu0 0.0
        %896 = vmatpush1.msra.mxu0 %v863
        %897 = vmatprep.subr.mxu0 0.0
        %898 = vmatpush2.msra.mxu0 0.0
        %899 = vmatprep.subr.mxu0 0.0
        %900 = vmatpush2.msra.mxu0 0.0
        %901 = vmatprep.subr.mxu0 0.0
        %902 = vmatpush2.msra.mxu0 0.0
        %903 = vmatprep.subr.mxu0 0.0
        %904 = vmatpush2.msra.mxu0 0.0
        %905 = vmatprep.subr.mxu0 0.0
        %906 = vmatpush2.msra.mxu0 0.0
        %907 = vmatprep.subr.mxu0 0.0
        %908 = vmatpush2.msra.mxu0 0.0
        %909 = vmatprep.subr.mxu0 0.0
        %910 = vmatpush2.msra.mxu0 0.0
        %911 = vmatprep.subr.mxu0 0.0
        %912 = vmatpush2.msra.mxu0 0.0
        %913 = vmatprep.subr.mxu0 0.0
        %914 = vmatpush2.msra.mxu0 0.0
        %915 = vmatprep.subr.mxu0 0.0
        %916 = vmatpush2.msra.mxu0 0.0
        %917 = vmatprep.subr.mxu0 0.0
        %918 = vmatpush2.msra.mxu0 0.0
        %919 = vmatprep.subr.mxu0 0.0
        %920 = vmatpush2.msra.mxu0 0.0
        %921 = vmatprep.subr.mxu0 0.0
        %922 = vmatpush2.msra.mxu0 0.0
        %923 = vmatprep.subr.mxu0 0.0
        %924 = vmatpush2.msra.mxu0 0.0
        %925 = vmatprep.subr.mxu0 0.0
        %926 = vmatpush2.msra.mxu0 0.0
        %927 = vmatprep.subr.mxu0 0.0
        %928 = vmatpush2.msra.mxu0 0.0
        %929 = vmatprep.mubr.f32.mxu0 0.0
        %930 = vmatmul.mubr.f32.gmra.mxu0 %v854
        %v931 = vpop.f32.mrf.mxu0
        %v932 = vadd.f32 0.0, %v931
        %v933 = vpop.f32.mrf.mxu0
        %934 = vmatprep.mubr.f32.mxu0 0.0
        %935 = vmatmul.mubr.f32.gmra.mxu0 %v856
        %v936 = vpop.f32.mrf.mxu0
        %v937 = vadd.f32 0.0, %v936
        %v938 = vpop.f32.mrf.mxu0
        %939 = vmatprep.mubr.f32.mxu0 0.0
        %940 = vmatmul.mubr.f32.gmra.mxu0 %v858
        %v941 = vpop.f32.mrf.mxu0
        %v942 = vadd.f32 0.0, %v941
        %v943 = vpop.f32.mrf.mxu0
        %944 = vmatprep.mubr.f32.mxu0 0.0
        %945 = vmatmul.mubr.f32.gmra.mxu0 %v860
        %v946 = vpop.f32.mrf.mxu0
        %v947 = vadd.f32 0.0, %v946
        %v948 = vpop.f32.mrf.mxu0
        %949 = vdwg.mxu0
        %v950 = vadd.f32 %v839, %v932
        %v951 = vadd.f32 %v840, %v937
        %v952 = vadd.f32 %v841, %v942
        %v953 = vadd.f32 %v842, %v947
        %s954 = sadd.s32 %s277, 2
        %s955 = smul.u32 %s954, 40
        %s956 = scalar_lea.vmem %s239, %s955
        %v957 = vld [vmem:[%s956] sm:$0xff]
        %v958 = vld [vmem:[%s956 + $0x8] sm:$0xff]
        %v959 = vld [vmem:[%s956 + $0x10] sm:$0xff]
        %v960 = vld [vmem:[%s956 + $0x18] sm:$0xff]
        %v961 = vld [vmem:[%s956 + $0x20] sm:$0x3]
        %s962 = scalar_lea.vmem %s2, 24
        %v963 = vld [vmem:[%s962] sm:$0xf]
        %v965 = vsel %vm286, %v957, 0
        %v968 = vsel %vm286, %v958, 0
        %v971 = vsel %vm286, %v959, 0
        %v974 = vsel %vm286, %v960, 0
        %v977 = vsel %vm299, %v963, 0
        %979 = vmatprep.subr.mxu0 0.0
        %980 = vmatpush1.msra.mxu0 0.0
        %981 = vmatprep.subr.mxu0 0.0
        %982 = vmatpush1.msra.mxu0 0.0
        %983 = vmatprep.subr.mxu0 0.0
        %984 = vmatpush1.msra.mxu0 0.0
        %985 = vmatprep.subr.mxu0 0.0
        %986 = vmatpush1.msra.mxu0 0.0
        %987 = vmatprep.subr.mxu0 0.0
        %988 = vmatpush1.msra.mxu0 0.0
        %989 = vmatprep.subr.mxu0 0.0
        %990 = vmatpush1.msra.mxu0 0.0
        %991 = vmatprep.subr.mxu0 0.0
        %992 = vmatpush1.msra.mxu0 0.0
        %993 = vmatprep.subr.mxu0 0.0
        %994 = vmatpush1.msra.mxu0 0.0
        %995 = vmatprep.subr.mxu0 0.0
        %996 = vmatpush1.msra.mxu0 0.0
        %997 = vmatprep.subr.mxu0 0.0
        %998 = vmatpush1.msra.mxu0 0.0
        %999 = vmatprep.subr.mxu0 0.0
        %1000 = vmatpush1.msra.mxu0 0.0
        %1001 = vmatprep.subr.mxu0 0.0
        %1002 = vmatpush1.msra.mxu0 0.0
        %1003 = vmatprep.subr.mxu0 0.0
        %1004 = vmatpush1.msra.mxu0 0.0
        %1005 = vmatprep.subr.mxu0 0.0
        %1006 = vmatpush1.msra.mxu0 0.0
        %1007 = vmatprep.subr.mxu0 0.0
        %1008 = vmatpush1.msra.mxu0 0.0
        %1009 = vmatprep.subr.mxu0 0.0
        %1010 = vmatpush1.msra.mxu0 %v977
        %1011 = vmatprep.subr.mxu0 0.0
        %1012 = vmatpush2.msra.mxu0 0.0
        %1013 = vmatprep.subr.mxu0 0.0
        %1014 = vmatpush2.msra.mxu0 0.0
        %1015 = vmatprep.subr.mxu0 0.0
        %1016 = vmatpush2.msra.mxu0 0.0
        %1017 = vmatprep.subr.mxu0 0.0
        %1018 = vmatpush2.msra.mxu0 0.0
        %1019 = vmatprep.subr.mxu0 0.0
        %1020 = vmatpush2.msra.mxu0 0.0
        %1021 = vmatprep.subr.mxu0 0.0
        %1022 = vmatpush2.msra.mxu0 0.0
        %1023 = vmatprep.subr.mxu0 0.0
        %1024 = vmatpush2.msra.mxu0 0.0
        %1025 = vmatprep.subr.mxu0 0.0
        %1026 = vmatpush2.msra.mxu0 0.0
        %1027 = vmatprep.subr.mxu0 0.0
        %1028 = vmatpush2.msra.mxu0 0.0
        %1029 = vmatprep.subr.mxu0 0.0
        %1030 = vmatpush2.msra.mxu0 0.0
        %1031 = vmatprep.subr.mxu0 0.0
        %1032 = vmatpush2.msra.mxu0 0.0
        %1033 = vmatprep.subr.mxu0 0.0
        %1034 = vmatpush2.msra.mxu0 0.0
        %1035 = vmatprep.subr.mxu0 0.0
        %1036 = vmatpush2.msra.mxu0 0.0
        %1037 = vmatprep.subr.mxu0 0.0
        %1038 = vmatpush2.msra.mxu0 0.0
        %1039 = vmatprep.subr.mxu0 0.0
        %1040 = vmatpush2.msra.mxu0 0.0
        %1041 = vmatprep.subr.mxu0 0.0
        %1042 = vmatpush2.msra.mxu0 0.0
        %1043 = vmatprep.mubr.f32.mxu0 0.0
        %1044 = vmatmul.mubr.f32.gmra.mxu0 %v965
        %v1045 = vpop.f32.mrf.mxu0
        %v1046 = vadd.f32 0.0, %v1045
        %v1047 = vpop.f32.mrf.mxu0
        %1048 = vmatprep.mubr.f32.mxu0 0.0
        %1049 = vmatmul.mubr.f32.gmra.mxu0 %v968
        %v1050 = vpop.f32.mrf.mxu0
        %v1051 = vadd.f32 0.0, %v1050
        %v1052 = vpop.f32.mrf.mxu0
        %1053 = vmatprep.mubr.f32.mxu0 0.0
        %1054 = vmatmul.mubr.f32.gmra.mxu0 %v971
        %v1055 = vpop.f32.mrf.mxu0
        %v1056 = vadd.f32 0.0, %v1055
        %v1057 = vpop.f32.mrf.mxu0
        %1058 = vmatprep.mubr.f32.mxu0 0.0
        %1059 = vmatmul.mubr.f32.gmra.mxu0 %v974
        %v1060 = vpop.f32.mrf.mxu0
        %v1061 = vadd.f32 0.0, %v1060
        %v1062 = vpop.f32.mrf.mxu0
        %1063 = vdwg.mxu0
        %v1064 = vadd.f32 %v950, %v1046
        %v1065 = vadd.f32 %v951, %v1051
        %v1066 = vadd.f32 %v952, %v1056
        %v1067 = vadd.f32 %v953, %v1061
        %s1068 = scalar_lea.vmem %s2, 28
        %v1069 = vld [vmem:[%s1068] sm:$0xf]
        %v1071 = vrot.slane %v957, 1
        %v1072 = vrot.slane %v958, 1
        %v1073 = vsel %vm395, %v1071, %v1072
        %v1074 = vrot.slane %v959, 1
        %v1075 = vsel %vm395, %v1072, %v1074
        %v1076 = vrot.slane %v960, 1
        %v1077 = vsel %vm395, %v1074, %v1076
        %v1078 = vrot.slane %v961, 1
        %v1079 = vsel %vm395, %v1076, %v1078
        %v1080 = vsel %vm286, %v1073, 0
        %v1082 = vsel %vm286, %v1075, 0
        %v1084 = vsel %vm286, %v1077, 0
        %v1086 = vsel %vm286, %v1079, 0
        %v1089 = vsel %vm299, %v1069, 0
        %1091 = vmatprep.subr.mxu0 0.0
        %1092 = vmatpush1.msra.mxu0 0.0
        %1093 = vmatprep.subr.mxu0 0.0
        %1094 = vmatpush1.msra.mxu0 0.0
        %1095 = vmatprep.subr.mxu0 0.0
        %1096 = vmatpush1.msra.mxu0 0.0
        %1097 = vmatprep.subr.mxu0 0.0
        %1098 = vmatpush1.msra.mxu0 0.0
        %1099 = vmatprep.subr.mxu0 0.0
        %1100 = vmatpush1.msra.mxu0 0.0
        %1101 = vmatprep.subr.mxu0 0.0
        %1102 = vmatpush1.msra.mxu0 0.0
        %1103 = vmatprep.subr.mxu0 0.0
        %1104 = vmatpush1.msra.mxu0 0.0
        %1105 = vmatprep.subr.mxu0 0.0
        %1106 = vmatpush1.msra.mxu0 0.0
        %1107 = vmatprep.subr.mxu0 0.0
        %1108 = vmatpush1.msra.mxu0 0.0
        %1109 = vmatprep.subr.mxu0 0.0
        %1110 = vmatpush1.msra.mxu0 0.0
        %1111 = vmatprep.subr.mxu0 0.0
        %1112 = vmatpush1.msra.mxu0 0.0
        %1113 = vmatprep.subr.mxu0 0.0
        %1114 = vmatpush1.msra.mxu0 0.0
        %1115 = vmatprep.subr.mxu0 0.0
        %1116 = vmatpush1.msra.mxu0 0.0
        %1117 = vmatprep.subr.mxu0 0.0
        %1118 = vmatpush1.msra.mxu0 0.0
        %1119 = vmatprep.subr.mxu0 0.0
        %1120 = vmatpush1.msra.mxu0 0.0
        %1121 = vmatprep.subr.mxu0 0.0
        %1122 = vmatpush1.msra.mxu0 %v1089
        %1123 = vmatprep.subr.mxu0 0.0
        %1124 = vmatpush2.msra.mxu0 0.0
        %1125 = vmatprep.subr.mxu0 0.0
        %1126 = vmatpush2.msra.mxu0 0.0
        %1127 = vmatprep.subr.mxu0 0.0
        %1128 = vmatpush2.msra.mxu0 0.0
        %1129 = vmatprep.subr.mxu0 0.0
        %1130 = vmatpush2.msra.mxu0 0.0
        %1131 = vmatprep.subr.mxu0 0.0
        %1132 = vmatpush2.msra.mxu0 0.0
        %1133 = vmatprep.subr.mxu0 0.0
        %1134 = vmatpush2.msra.mxu0 0.0
        %1135 = vmatprep.subr.mxu0 0.0
        %1136 = vmatpush2.msra.mxu0 0.0
        %1137 = vmatprep.subr.mxu0 0.0
        %1138 = vmatpush2.msra.mxu0 0.0
        %1139 = vmatprep.subr.mxu0 0.0
        %1140 = vmatpush2.msra.mxu0 0.0
        %1141 = vmatprep.subr.mxu0 0.0
        %1142 = vmatpush2.msra.mxu0 0.0
        %1143 = vmatprep.subr.mxu0 0.0
        %1144 = vmatpush2.msra.mxu0 0.0
        %1145 = vmatprep.subr.mxu0 0.0
        %1146 = vmatpush2.msra.mxu0 0.0
        %1147 = vmatprep.subr.mxu0 0.0
        %1148 = vmatpush2.msra.mxu0 0.0
        %1149 = vmatprep.subr.mxu0 0.0
        %1150 = vmatpush2.msra.mxu0 0.0
        %1151 = vmatprep.subr.mxu0 0.0
        %1152 = vmatpush2.msra.mxu0 0.0
        %1153 = vmatprep.subr.mxu0 0.0
        %1154 = vmatpush2.msra.mxu0 0.0
        %1155 = vmatprep.mubr.f32.mxu0 0.0
        %1156 = vmatmul.mubr.f32.gmra.mxu0 %v1080
        %v1157 = vpop.f32.mrf.mxu0
        %v1158 = vadd.f32 0.0, %v1157
        %v1159 = vpop.f32.mrf.mxu0
        %1160 = vmatprep.mubr.f32.mxu0 0.0
        %1161 = vmatmul.mubr.f32.gmra.mxu0 %v1082
        %v1162 = vpop.f32.mrf.mxu0
        %v1163 = vadd.f32 0.0, %v1162
        %v1164 = vpop.f32.mrf.mxu0
        %1165 = vmatprep.mubr.f32.mxu0 0.0
        %1166 = vmatmul.mubr.f32.gmra.mxu0 %v1084
        %v1167 = vpop.f32.mrf.mxu0
        %v1168 = vadd.f32 0.0, %v1167
        %v1169 = vpop.f32.mrf.mxu0
        %1170 = vmatprep.mubr.f32.mxu0 0.0
        %1171 = vmatmul.mubr.f32.gmra.mxu0 %v1086
        %v1172 = vpop.f32.mrf.mxu0
        %v1173 = vadd.f32 0.0, %v1172
        %v1174 = vpop.f32.mrf.mxu0
        %1175 = vdwg.mxu0
        %v1176 = vadd.f32 %v1064, %v1158
        %v1177 = vadd.f32 %v1065, %v1163
        %v1178 = vadd.f32 %v1066, %v1168
        %v1179 = vadd.f32 %v1067, %v1173
        %s1180 = scalar_lea.vmem %s2, 32
        %v1181 = vld [vmem:[%s1180] sm:$0xf]
        %v1182 = vrot.slane %v957, 2
        %v1183 = vrot.slane %v958, 2
        %v1184 = vsel %vm507, %v1182, %v1183
        %v1185 = vrot.slane %v959, 2
        %v1186 = vsel %vm507, %v1183, %v1185
        %v1187 = vrot.slane %v960, 2
        %v1188 = vsel %vm507, %v1185, %v1187
        %v1189 = vrot.slane %v961, 2
        %v1190 = vsel %vm507, %v1187, %v1189
        %v1191 = vsel %vm286, %v1184, 0
        %v1193 = vsel %vm286, %v1186, 0
        %v1195 = vsel %vm286, %v1188, 0
        %v1197 = vsel %vm286, %v1190, 0
        %v1200 = vsel %vm299, %v1181, 0
        %1202 = vmatprep.subr.mxu0 0.0
        %1203 = vmatpush1.msra.mxu0 0.0
        %1204 = vmatprep.subr.mxu0 0.0
        %1205 = vmatpush1.msra.mxu0 0.0
        %1206 = vmatprep.subr.mxu0 0.0
        %1207 = vmatpush1.msra.mxu0 0.0
        %1208 = vmatprep.subr.mxu0 0.0
        %1209 = vmatpush1.msra.mxu0 0.0
        %1210 = vmatprep.subr.mxu0 0.0
        %1211 = vmatpush1.msra.mxu0 0.0
        %1212 = vmatprep.subr.mxu0 0.0
        %1213 = vmatpush1.msra.mxu0 0.0
        %1214 = vmatprep.subr.mxu0 0.0
        %1215 = vmatpush1.msra.mxu0 0.0
        %1216 = vmatprep.subr.mxu0 0.0
        %1217 = vmatpush1.msra.mxu0 0.0
        %1218 = vmatprep.subr.mxu0 0.0
        %1219 = vmatpush1.msra.mxu0 0.0
        %1220 = vmatprep.subr.mxu0 0.0
        %1221 = vmatpush1.msra.mxu0 0.0
        %1222 = vmatprep.subr.mxu0 0.0
        %1223 = vmatpush1.msra.mxu0 0.0
        %1224 = vmatprep.subr.mxu0 0.0
        %1225 = vmatpush1.msra.mxu0 0.0
        %1226 = vmatprep.subr.mxu0 0.0
        %1227 = vmatpush1.msra.mxu0 0.0
        %1228 = vmatprep.subr.mxu0 0.0
        %1229 = vmatpush1.msra.mxu0 0.0
        %1230 = vmatprep.subr.mxu0 0.0
        %1231 = vmatpush1.msra.mxu0 0.0
        %1232 = vmatprep.subr.mxu0 0.0
        %1233 = vmatpush1.msra.mxu0 %v1200
        %1234 = vmatprep.subr.mxu0 0.0
        %1235 = vmatpush2.msra.mxu0 0.0
        %1236 = vmatprep.subr.mxu0 0.0
        %1237 = vmatpush2.msra.mxu0 0.0
        %1238 = vmatprep.subr.mxu0 0.0
        %1239 = vmatpush2.msra.mxu0 0.0
        %1240 = vmatprep.subr.mxu0 0.0
        %1241 = vmatpush2.msra.mxu0 0.0
        %1242 = vmatprep.subr.mxu0 0.0
        %1243 = vmatpush2.msra.mxu0 0.0
        %1244 = vmatprep.subr.mxu0 0.0
        %1245 = vmatpush2.msra.mxu0 0.0
        %1246 = vmatprep.subr.mxu0 0.0
        %1247 = vmatpush2.msra.mxu0 0.0
        %1248 = vmatprep.subr.mxu0 0.0
        %1249 = vmatpush2.msra.mxu0 0.0
        %1250 = vmatprep.subr.mxu0 0.0
        %1251 = vmatpush2.msra.mxu0 0.0
        %1252 = vmatprep.subr.mxu0 0.0
        %1253 = vmatpush2.msra.mxu0 0.0
        %1254 = vmatprep.subr.mxu0 0.0
        %1255 = vmatpush2.msra.mxu0 0.0
        %1256 = vmatprep.subr.mxu0 0.0
        %1257 = vmatpush2.msra.mxu0 0.0
        %1258 = vmatprep.subr.mxu0 0.0
        %1259 = vmatpush2.msra.mxu0 0.0
        %1260 = vmatprep.subr.mxu0 0.0
        %1261 = vmatpush2.msra.mxu0 0.0
        %1262 = vmatprep.subr.mxu0 0.0
        %1263 = vmatpush2.msra.mxu0 0.0
        %1264 = vmatprep.subr.mxu0 0.0
        %1265 = vmatpush2.msra.mxu0 0.0
        %1266 = vmatprep.mubr.f32.mxu0 0.0
        %1267 = vmatmul.mubr.f32.gmra.mxu0 %v1191
        %v1268 = vpop.f32.mrf.mxu0
        %v1269 = vadd.f32 0.0, %v1268
        %v1270 = vpop.f32.mrf.mxu0
        %1271 = vmatprep.mubr.f32.mxu0 0.0
        %1272 = vmatmul.mubr.f32.gmra.mxu0 %v1193
        %v1273 = vpop.f32.mrf.mxu0
        %v1274 = vadd.f32 0.0, %v1273
        %v1275 = vpop.f32.mrf.mxu0
        %1276 = vmatprep.mubr.f32.mxu0 0.0
        %1277 = vmatmul.mubr.f32.gmra.mxu0 %v1195
        %v1278 = vpop.f32.mrf.mxu0
        %v1279 = vadd.f32 0.0, %v1278
        %v1280 = vpop.f32.mrf.mxu0
        %1281 = vmatprep.mubr.f32.mxu0 0.0
        %1282 = vmatmul.mubr.f32.gmra.mxu0 %v1197
        %v1283 = vpop.f32.mrf.mxu0
        %v1284 = vadd.f32 0.0, %v1283
        %v1285 = vpop.f32.mrf.mxu0
        %1286 = vdwg.mxu0
        %v1287 = vadd.f32 %v1176, %v1269
        %v1288 = vadd.f32 %v1177, %v1274
        %v1289 = vadd.f32 %v1178, %v1279
        %v1290 = vadd.f32 %v1179, %v1284
        %s1291 = smul.u32 %s264, 32
        %s1292 = scalar_lea.vmem %s249, %s1291
        %v1293 = vld [vmem:[%s1292] sm:$0xff]
        %v1294 = vld [vmem:[%s1292 + $0x8] sm:$0xff]
        %v1295 = vld [vmem:[%s1292 + $0x10] sm:$0xff]
        %v1296 = vld [vmem:[%s1292 + $0x18] sm:$0xff]
        %v1297 = vadd.f32 %v1287, %v1293
        %v1298 = vadd.f32 %v1288, %v1294
        %v1299 = vadd.f32 %v1289, %v1295
        %v1300 = vadd.f32 %v1290, %v1296
        %v1301 = vmax.f32 %v1297, 0.0
        %v1302 = vmax.f32 %v1298, 0.0
        %v1303 = vmax.f32 %v1299, 0.0
        %v1304 = vmax.f32 %v1300, 0.0
        %s1305 = scalar_lea.vmem %s260, %s1291
        %1306 = vst.msk [vmem:[%s1305] sm:$0xff] %vm286, %v1301
        %1307 = vst.msk [vmem:[%s1305 + $0x8] sm:$0xff] %vm286, %v1302
        %1308 = vst.msk [vmem:[%s1305 + $0x10] sm:$0xff] %vm286, %v1303
        %1309 = vst.msk [vmem:[%s1305 + $0x18] sm:$0xff] %vm286, %v1304
      $region41: #{up_project_forward.3} parent=35 // loop_footer
        %s268 = sadd.s32 1, %s264
      $region42: #{up_project_forward.3} parent=35 // loop_footer_branch
        %263 = sbr.rel target = $region38
      $region43: #{up_project_forward.3} parent=35 // loop_exit
        _
      %s1310 = smul.u32 8, %s20
      %p1311 = scmp.lt.s32.totalorder %s19, 1
      %s1312 = scalar_select %p1311, %s19, 1
      %p1313 = scmp.lt.s32.totalorder %s1310, 31
      %s1314 = scalar_select %p1313, %s1310, 31
      %s1315 = smul.addr %s1314, 4
      %s1316 = smul.addr %s1312, 128
      %s1317 = sadd.s32 %s1315, %s1316
      %s1318 = smul.addr %s1317, 8
      %s1319 = scalar_lea.vmem %s4, %s1318
      // Predicated region
      $region44: #{up_project_forward.3} parent=35 // pred_check
        %p1320 = pneg %p143
      $region45: #{up_project_forward.3} parent=35 // pred_check_branch
        %1322 = sbr.rel (%p1320) target = $region47
      $region46: #{up_project_forward.3} parent=35 // pred_region
        %s1323 = smul.u32 8, %s20
      $region47: #{up_project_forward.3} parent=35 // pred_fallthru
        _
    $region36: #{up_project_forward.3} parent=5 // pred_fallthru
      _
    %p1324 = scmp.le.s32.totalorder 2, %s10
    // Predicated region
    $region48: #{up_project_forward.3} parent=5 // pred_check
      %p1325 = pneg %p1324
    $region49: #{up_project_forward.3} parent=5 // pred_check_branch
      %1327 = sbr.rel (%p1325) target = $region51
    $region50: #{up_project_forward.3} parent=5 // pred_region
      %s1328 = ssub.s32 %s10, 2
      // Predicated region
      $region52: #{up_project_forward.3} parent=50 // pred_check
        %p1329 = pneg %p149
      $region53: #{up_project_forward.3} parent=50 // pred_check_branch
        %1331 = sbr.rel (%p1329) target = $region55
      $region54: #{up_project_forward.3} parent=50 // pred_region
        %s1332 = smul.u32 8, %s22
        %p1333 = scmp.lt.s32.totalorder %s21, 1
        %s1334 = scalar_select %p1333, %s21, 1
        %p1335 = scmp.lt.s32.totalorder %s1332, 31
        %s1336 = scalar_select %p1335, %s1332, 31
        %s1337 = smul.addr %s1336, 4
        %s1338 = smul.addr %s1334, 128
        %s1339 = sadd.s32 %s1337, %s1338
        %s1340 = smul.addr %s1339, 8
        %s1341 = scalar_lea.vmem %s4, %s1340
      $region55: #{up_project_forward.3} parent=50 // pred_fallthru
        _
    $region51: #{up_project_forward.3} parent=5 // pred_fallthru
      _
  $region6: #{up_project_forward.3} parent=0 // loop_footer
    %s14 = sadd.s32 1, %s10
  $region7: #{up_project_forward.3} parent=0 // loop_footer_branch
    %9 = sbr.rel target = $region3
  $region8: #{up_project_forward.3} parent=0 // loop_exit
    _

</llo_original>
